<compile_context>
chip_gen: v7x
topology: tpu7x:2x2x1
jax: 0.10.0
libtpu: 0.0.40
codegen_flags: <defaults>
</compile_context>

<pallas_src>
import jax
import jax.numpy as jnp
from jax.experimental import pallas as pl
from jax.experimental.pallas import tpu as pltpu

# ------------------------- model config (scaled down) -------------------------
B, S = 2, 8            # batch, sequence length
H = 64                 # hidden size       (DeBERTa-base: 768)
NUM_HEADS = 4          # attention heads   (DeBERTa-base: 12)
HEAD_DIM = H // NUM_HEADS
FFN = 128              # intermediate size (DeBERTa-base: 3072)
NUM_LAYERS = 2         # encoder layers    (DeBERTa-base: 12)
VOCAB = 64             # vocab size (synthetic)
NUM_TAGS = 5           # num_aspect_tags
PAD_TAGS = 128         # lane-dense padded classifier width (sliced to NUM_TAGS outside)
LN_EPS = 1e-7          # DeBERTa layer-norm eps


# ------------------------------ fused Pallas kernel ----------------------------
def _fused_forward_kernel(
    x_ref, mask_ref, eg_ref, eb_ref,
    wqkv_ref, bqkv_ref, wo_ref, bo_ref, ln1g_ref, ln1b_ref,
    w1_ref, b1_ref, w2_ref, b2_ref, ln2g_ref, ln2b_ref,
    fcw_ref, fcb_ref, o_ref,
):
    """Whole forward pass in one kernel; everything lives in VMEM."""

    def layernorm(y, g, b):
        mu = jnp.mean(y, axis=-1, keepdims=True)
        var = jnp.mean((y - mu) ** 2, axis=-1, keepdims=True)
        return (y - mu) * jax.lax.rsqrt(var + LN_EPS) * g + b

    scale = 1.0 / (HEAD_DIM ** 0.5)

    # embedding LayerNorm (no residual / no zero tensor streamed in)
    x = layernorm(x_ref[...], eg_ref[...], eb_ref[...])            # (B*S, H)

    # additive key-position mask, computed once and reused by both layers: (B, 1, S)
    add_mask = ((1.0 - mask_ref[...]) * -1e9).reshape(B, 1, S)

    for l in range(NUM_LAYERS):   # unrolled; static index into stacked layer weights
        # ---- fused QKV projection: a single (B*S, H) @ (H, 3H) MXU call ----
        qkv = jnp.dot(x, wqkv_ref[l], preferred_element_type=jnp.float32) + bqkv_ref[l]

        # ---- multi-head attention, all heads handled inside this body ----
        ctx_heads = []
        for h in range(NUM_HEADS):
            lo = h * HEAD_DIM
            qh = (qkv[:, lo:lo + HEAD_DIM] * scale).reshape(B, S, HEAD_DIM)
            kh = qkv[:, H + lo:H + lo + HEAD_DIM].reshape(B, S, HEAD_DIM)
            vh = qkv[:, 2 * H + lo:2 * H + lo + HEAD_DIM].reshape(B, S, HEAD_DIM)

            # contract last dims -> no explicit k transpose
            s = jnp.einsum("bqd,bkd->bqk", qh, kh,
                           preferred_element_type=jnp.float32) + add_mask
            s = s - jnp.max(s, axis=-1, keepdims=True)
            p = jnp.exp(s)
            # softmax denominator via EUP approximate reciprocal
            p = p * pl.reciprocal(jnp.sum(p, axis=-1, keepdims=True), approx=True)

            ctx_h = jnp.einsum("bqk,bkd->bqd", p, vh,
                               preferred_element_type=jnp.float32)
            ctx_heads.append(ctx_h.reshape(B * S, HEAD_DIM))
        ctx = jnp.concatenate(ctx_heads, axis=-1)                   # (B*S, H)

        # attention output projection + residual + LayerNorm
        attn_out = jnp.dot(ctx, wo_ref[l], preferred_element_type=jnp.float32) + bo_ref[l]
        x = layernorm(attn_out + x, ln1g_ref[l], ln1b_ref[l])

        # feed-forward (tanh-GELU on the EUP) + residual + LayerNorm
        ff = jnp.dot(x, w1_ref[l], preferred_element_type=jnp.float32) + b1_ref[l]
        ff = jax.nn.gelu(ff, approximate=True)
        ff = jnp.dot(ff, w2_ref[l], preferred_element_type=jnp.float32) + b2_ref[l]
        x = layernorm(ff + x, ln2g_ref[l], ln2b_ref[l])

    # dropout(0.3) is identity at inference; classifier stores a lane-dense (B*S, 128) slab
    o_ref[...] = jnp.dot(x, fcw_ref[...], preferred_element_type=jnp.float32) + fcb_ref[...]


# -------------------------- parameter initialization --------------------------
def init_params(key):
    keys = iter(jax.random.split(key, 4 * NUM_LAYERS + 2))

    def nrm(shape, s=0.02):
        return (s * jax.random.normal(next(keys), shape)).astype(jnp.float32)

    zeros = lambda shape: jnp.zeros(shape, jnp.float32)
    ones = lambda shape: jnp.ones(shape, jnp.float32)

    wqkv, bqkv, wo, bo = [], [], [], []
    ln1_g, ln1_b, w1, b1, w2, b2, ln2_g, ln2_b = [], [], [], [], [], [], [], []
    for _ in range(NUM_LAYERS):
        wqkv.append(nrm((H, 3 * H)));   bqkv.append(zeros((1, 3 * H)))
        wo.append(nrm((H, H)));         bo.append(zeros((1, H)))
        ln1_g.append(ones((1, H)));     ln1_b.append(zeros((1, H)))
        w1.append(nrm((H, FFN)));       b1.append(zeros((1, FFN)))
        w2.append(nrm((FFN, H)));       b2.append(zeros((1, H)))
        ln2_g.append(ones((1, H)));     ln2_b.append(zeros((1, H)))

    # classifier weight zero-padded to a lane-dense width (PAD_TAGS=128)
    fc_w_pad = jnp.zeros((H, PAD_TAGS), jnp.float32).at[:, :NUM_TAGS].set(
        nrm((H, NUM_TAGS)))

    return {
        "emb": nrm((VOCAB, H)),
        "emb_ln_g": ones((1, H)), "emb_ln_b": zeros((1, H)),
        "wqkv": jnp.stack(wqkv), "bqkv": jnp.stack(bqkv),
        "wo": jnp.stack(wo), "bo": jnp.stack(bo),
        "ln1_g": jnp.stack(ln1_g), "ln1_b": jnp.stack(ln1_b),
        "w1": jnp.stack(w1), "b1": jnp.stack(b1),
        "w2": jnp.stack(w2), "b2": jnp.stack(b2),
        "ln2_g": jnp.stack(ln2_g), "ln2_b": jnp.stack(ln2_b),
        "fc_w_pad": fc_w_pad, "fc_b_pad": zeros((1, PAD_TAGS)),
    }


# --------------------------------- forward ------------------------------------
@jax.jit
def aspect_extraction_forward(params, input_ids, attention_mask):
    """input_ids: (B, S) int32; attention_mask: (B, S) {0,1} -> logits (B, S, NUM_TAGS)."""
    # embedding gather is XLA glue; everything downstream runs in ONE Pallas kernel
    x = jnp.take(params["emb"], input_ids.reshape(-1), axis=0)      # (B*S, H)
    mask_f = attention_mask.astype(jnp.float32)                     # (B, S)

    logits_pad = pl.pallas_call(
        _fused_forward_kernel,
        out_shape=jax.ShapeDtypeStruct((B * S, PAD_TAGS), jnp.float32),
        compiler_params=pltpu.CompilerParams(vmem_limit_bytes=32 * 1024 * 1024),
    )(
        x, mask_f,
        params["emb_ln_g"], params["emb_ln_b"],
        params["wqkv"], params["bqkv"], params["wo"], params["bo"],
        params["ln1_g"], params["ln1_b"],
        params["w1"], params["b1"], params["w2"], params["b2"],
        params["ln2_g"], params["ln2_b"],
        params["fc_w_pad"], params["fc_b_pad"],
    )

    # single narrow slice happens once, outside the kernel
    return logits_pad[:, :NUM_TAGS].reshape(B, S, NUM_TAGS)


# ----------------------------------- main --------------------------------------
if __name__ == "__main__":
    key = jax.random.PRNGKey(0)
    pkey, ikey = jax.random.split(key)

    params = init_params(pkey)
    input_ids = jax.random.randint(ikey, (B, S), 0, VOCAB, dtype=jnp.int32)
    attention_mask = jnp.ones((B, S), dtype=jnp.int32).at[:, S - 2:].set(0)

    out = aspect_extraction_forward(params, input_ids, attention_mask)
    jax.block_until_ready(out)
    assert out.shape == (B, S, NUM_TAGS) and out.dtype == jnp.float32
    print("KERNEL_OK")
</pallas_src>

<mosaic_0001>
module attributes {stable_mosaic.version = 11 : i64} {
  func.func @_fused_forward_kernel(%arg0: memref<16x64xf32, #tpu.memory_space<vmem>>, %arg1: memref<2x8xf32, #tpu.memory_space<vmem>>, %arg2: memref<1x64xf32, #tpu.memory_space<vmem>>, %arg3: memref<1x64xf32, #tpu.memory_space<vmem>>, %arg4: memref<2x64x192xf32, #tpu.memory_space<vmem>>, %arg5: memref<2x1x192xf32, #tpu.memory_space<vmem>>, %arg6: memref<2x64x64xf32, #tpu.memory_space<vmem>>, %arg7: memref<2x1x64xf32, #tpu.memory_space<vmem>>, %arg8: memref<2x1x64xf32, #tpu.memory_space<vmem>>, %arg9: memref<2x1x64xf32, #tpu.memory_space<vmem>>, %arg10: memref<2x64x128xf32, #tpu.memory_space<vmem>>, %arg11: memref<2x1x128xf32, #tpu.memory_space<vmem>>, %arg12: memref<2x128x64xf32, #tpu.memory_space<vmem>>, %arg13: memref<2x1x64xf32, #tpu.memory_space<vmem>>, %arg14: memref<2x1x64xf32, #tpu.memory_space<vmem>>, %arg15: memref<2x1x64xf32, #tpu.memory_space<vmem>>, %arg16: memref<64x128xf32, #tpu.memory_space<vmem>>, %arg17: memref<1x128xf32, #tpu.memory_space<vmem>>, %arg18: memref<16x128xf32, #tpu.memory_space<vmem>>) attributes {dimension_semantics = [], scalar_prefetch = 0 : i64, scratch_operands = 0 : i64, tpu.core_type = #tpu.core_type<tc>} {
    %c0 = arith.constant 0 : index
    %c0_0 = arith.constant 0 : index
    %0 = vector.load %arg0[%c0, %c0_0] : memref<16x64xf32, #tpu.memory_space<vmem>>, vector<16x64xf32>
    %c0_1 = arith.constant 0 : index
    %c0_2 = arith.constant 0 : index
    %1 = vector.load %arg2[%c0_1, %c0_2] : memref<1x64xf32, #tpu.memory_space<vmem>>, vector<1x64xf32>
    %c0_3 = arith.constant 0 : index
    %c0_4 = arith.constant 0 : index
    %2 = vector.load %arg3[%c0_3, %c0_4] : memref<1x64xf32, #tpu.memory_space<vmem>>, vector<1x64xf32>
    %cst = arith.constant dense<0.000000e+00> : vector<16xf32>
    %3 = vector.multi_reduction <add>, %0, %cst [1] : vector<16x64xf32> to vector<16xf32>
    %4 = vector.shape_cast %3 : vector<16xf32> to vector<16x1xf32>
    %cst_5 = arith.constant 6.400000e+01 : f32
    %5 = vector.broadcast %cst_5 : f32 to vector<16x1xf32>
    %6 = arith.divf %4, %5 : vector<16x1xf32>
    %7 = vector.broadcast %6 : vector<16x1xf32> to vector<16x64xf32>
    %8 = arith.subf %0, %7 : vector<16x64xf32>
    %9 = arith.mulf %8, %8 : vector<16x64xf32>
    %cst_6 = arith.constant dense<0.000000e+00> : vector<16xf32>
    %10 = vector.multi_reduction <add>, %9, %cst_6 [1] : vector<16x64xf32> to vector<16xf32>
    %11 = vector.shape_cast %10 : vector<16xf32> to vector<16x1xf32>
    %cst_7 = arith.constant 6.400000e+01 : f32
    %12 = vector.broadcast %cst_7 : f32 to vector<16x1xf32>
    %13 = arith.divf %11, %12 : vector<16x1xf32>
    %14 = vector.broadcast %6 : vector<16x1xf32> to vector<16x64xf32>
    %15 = arith.subf %0, %14 : vector<16x64xf32>
    %cst_8 = arith.constant 1.000000e-07 : f32
    %16 = vector.broadcast %cst_8 : f32 to vector<16x1xf32>
    %17 = arith.addf %13, %16 : vector<16x1xf32>
    %18 = math.rsqrt %17 : vector<16x1xf32>
    %19 = vector.broadcast %18 : vector<16x1xf32> to vector<16x64xf32>
    %20 = arith.mulf %15, %19 : vector<16x64xf32>
    %21 = vector.broadcast %1 : vector<1x64xf32> to vector<16x64xf32>
    %22 = arith.mulf %20, %21 : vector<16x64xf32>
    %23 = vector.broadcast %2 : vector<1x64xf32> to vector<16x64xf32>
    %24 = arith.addf %22, %23 : vector<16x64xf32>
    %c0_9 = arith.constant 0 : index
    %c0_10 = arith.constant 0 : index
    %25 = vector.load %arg1[%c0_9, %c0_10] : memref<2x8xf32, #tpu.memory_space<vmem>>, vector<2x8xf32>
    %cst_11 = arith.constant 1.000000e+00 : f32
    %26 = vector.broadcast %cst_11 : f32 to vector<2x8xf32>
    %27 = arith.subf %26, %25 : vector<2x8xf32>
    %cst_12 = arith.constant -1.000000e+09 : f32
    %28 = vector.broadcast %cst_12 : f32 to vector<2x8xf32>
    %29 = arith.mulf %27, %28 : vector<2x8xf32>
    %30 = vector.shape_cast %29 : vector<2x8xf32> to vector<2x1x8xf32>
    %c0_13 = arith.constant 0 : index
    %c0_14 = arith.constant 0 : index
    %c0_15 = arith.constant 0 : index
    %31 = vector.load %arg4[%c0_13, %c0_14, %c0_15] : memref<2x64x192xf32, #tpu.memory_space<vmem>>, vector<1x64x192xf32>
    %32 = vector.shape_cast %31 : vector<1x64x192xf32> to vector<64x192xf32>
    %cst_16 = arith.constant dense<0.000000e+00> : vector<16x192xf32>
    %33 = tpu.matmul %24, %32, %cst_16 {dimension_numbers = #tpu.dot_dimension_numbers<[1], [0], [0], [1], [0, 0, 1, 1], [], []>} : vector<16x64xf32>, vector<64x192xf32>, vector<16x192xf32> -> vector<16x192xf32>
    %c0_17 = arith.constant 0 : index
    %c0_18 = arith.constant 0 : index
    %c0_19 = arith.constant 0 : index
    %34 = vector.load %arg5[%c0_17, %c0_18, %c0_19] : memref<2x1x192xf32, #tpu.memory_space<vmem>>, vector<1x1x192xf32>
    %35 = vector.shape_cast %34 : vector<1x1x192xf32> to vector<1x192xf32>
    %36 = vector.broadcast %35 : vector<1x192xf32> to vector<16x192xf32>
    %37 = arith.addf %33, %36 : vector<16x192xf32>
    %38 = vector.extract_strided_slice %37 {offsets = [0, 0], sizes = [16, 16], strides = [1, 1]} : vector<16x192xf32> to vector<16x16xf32>
    %cst_20 = arith.constant 2.500000e-01 : f32
    %39 = vector.broadcast %cst_20 : f32 to vector<16x16xf32>
    %40 = arith.mulf %38, %39 : vector<16x16xf32>
    %41 = vector.shape_cast %40 : vector<16x16xf32> to vector<2x8x16xf32>
    %42 = vector.extract_strided_slice %37 {offsets = [0, 64], sizes = [16, 16], strides = [1, 1]} : vector<16x192xf32> to vector<16x16xf32>
    %43 = vector.shape_cast %42 : vector<16x16xf32> to vector<2x8x16xf32>
    %44 = vector.extract_strided_slice %37 {offsets = [0, 128], sizes = [16, 16], strides = [1, 1]} : vector<16x192xf32> to vector<16x16xf32>
    %45 = vector.shape_cast %44 : vector<16x16xf32> to vector<2x8x16xf32>
    "tpu.trace_start"() <{level = 10 : i32, message = "bqd,bkd->bqk"}> : () -> ()
    %cst_21 = arith.constant dense<0.000000e+00> : vector<2x8x8xf32>
    %46 = tpu.matmul %41, %43, %cst_21 {dimension_numbers = #tpu.dot_dimension_numbers<[2], [2], [1], [1], [0, 0, 0, 1, 1, 1], [0], [0]>} : vector<2x8x16xf32>, vector<2x8x16xf32>, vector<2x8x8xf32> -> vector<2x8x8xf32>
    "tpu.trace_stop"() : () -> ()
    %47 = vector.broadcast %30 : vector<2x1x8xf32> to vector<2x8x8xf32>
    %48 = arith.addf %46, %47 : vector<2x8x8xf32>
    %cst_22 = arith.constant dense<0xFF800000> : vector<2x8xf32>
    %49 = vector.multi_reduction <maximumf>, %48, %cst_22 [2] : vector<2x8x8xf32> to vector<2x8xf32>
    %50 = vector.shape_cast %49 : vector<2x8xf32> to vector<2x8x1xf32>
    %51 = vector.broadcast %50 : vector<2x8x1xf32> to vector<2x8x8xf32>
    %52 = arith.subf %48, %51 : vector<2x8x8xf32>
    %53 = math.exp %52 : vector<2x8x8xf32>
    %cst_23 = arith.constant dense<0.000000e+00> : vector<2x8xf32>
    %54 = vector.multi_reduction <add>, %53, %cst_23 [2] : vector<2x8x8xf32> to vector<2x8xf32>
    %55 = vector.shape_cast %54 : vector<2x8xf32> to vector<2x8x1xf32>
    %56 = tpu.reciprocal %55 {approx = true} : vector<2x8x1xf32> -> vector<2x8x1xf32>
    %57 = vector.broadcast %56 : vector<2x8x1xf32> to vector<2x8x8xf32>
    %58 = arith.mulf %53, %57 : vector<2x8x8xf32>
    "tpu.trace_start"() <{level = 10 : i32, message = "bqk,bkd->bqd"}> : () -> ()
    %cst_24 = arith.constant dense<0.000000e+00> : vector<2x8x16xf32>
    %59 = tpu.matmul %58, %45, %cst_24 {dimension_numbers = #tpu.dot_dimension_numbers<[2], [1], [1], [2], [0, 0, 0, 1, 1, 2], [0], [0]>} : vector<2x8x8xf32>, vector<2x8x16xf32>, vector<2x8x16xf32> -> vector<2x8x16xf32>
    "tpu.trace_stop"() : () -> ()
    %60 = vector.shape_cast %59 : vector<2x8x16xf32> to vector<16x16xf32>
    %61 = vector.extract_strided_slice %37 {offsets = [0, 16], sizes = [16, 16], strides = [1, 1]} : vector<16x192xf32> to vector<16x16xf32>
    %cst_25 = arith.constant 2.500000e-01 : f32
    %62 = vector.broadcast %cst_25 : f32 to vector<16x16xf32>
    %63 = arith.mulf %61, %62 : vector<16x16xf32>
    %64 = vector.shape_cast %63 : vector<16x16xf32> to vector<2x8x16xf32>
    %65 = vector.extract_strided_slice %37 {offsets = [0, 80], sizes = [16, 16], strides = [1, 1]} : vector<16x192xf32> to vector<16x16xf32>
    %66 = vector.shape_cast %65 : vector<16x16xf32> to vector<2x8x16xf32>
    %67 = vector.extract_strided_slice %37 {offsets = [0, 144], sizes = [16, 16], strides = [1, 1]} : vector<16x192xf32> to vector<16x16xf32>
    %68 = vector.shape_cast %67 : vector<16x16xf32> to vector<2x8x16xf32>
    "tpu.trace_start"() <{level = 10 : i32, message = "bqd,bkd->bqk"}> : () -> ()
    %cst_26 = arith.constant dense<0.000000e+00> : vector<2x8x8xf32>
    %69 = tpu.matmul %64, %66, %cst_26 {dimension_numbers = #tpu.dot_dimension_numbers<[2], [2], [1], [1], [0, 0, 0, 1, 1, 1], [0], [0]>} : vector<2x8x16xf32>, vector<2x8x16xf32>, vector<2x8x8xf32> -> vector<2x8x8xf32>
    "tpu.trace_stop"() : () -> ()
    %70 = vector.broadcast %30 : vector<2x1x8xf32> to vector<2x8x8xf32>
    %71 = arith.addf %69, %70 : vector<2x8x8xf32>
    %cst_27 = arith.constant dense<0xFF800000> : vector<2x8xf32>
    %72 = vector.multi_reduction <maximumf>, %71, %cst_27 [2] : vector<2x8x8xf32> to vector<2x8xf32>
    %73 = vector.shape_cast %72 : vector<2x8xf32> to vector<2x8x1xf32>
    %74 = vector.broadcast %73 : vector<2x8x1xf32> to vector<2x8x8xf32>
    %75 = arith.subf %71, %74 : vector<2x8x8xf32>
    %76 = math.exp %75 : vector<2x8x8xf32>
    %cst_28 = arith.constant dense<0.000000e+00> : vector<2x8xf32>
    %77 = vector.multi_reduction <add>, %76, %cst_28 [2] : vector<2x8x8xf32> to vector<2x8xf32>
    %78 = vector.shape_cast %77 : vector<2x8xf32> to vector<2x8x1xf32>
    %79 = tpu.reciprocal %78 {approx = true} : vector<2x8x1xf32> -> vector<2x8x1xf32>
    %80 = vector.broadcast %79 : vector<2x8x1xf32> to vector<2x8x8xf32>
    %81 = arith.mulf %76, %80 : vector<2x8x8xf32>
    "tpu.trace_start"() <{level = 10 : i32, message = "bqk,bkd->bqd"}> : () -> ()
    %cst_29 = arith.constant dense<0.000000e+00> : vector<2x8x16xf32>
    %82 = tpu.matmul %81, %68, %cst_29 {dimension_numbers = #tpu.dot_dimension_numbers<[2], [1], [1], [2], [0, 0, 0, 1, 1, 2], [0], [0]>} : vector<2x8x8xf32>, vector<2x8x16xf32>, vector<2x8x16xf32> -> vector<2x8x16xf32>
    "tpu.trace_stop"() : () -> ()
    %83 = vector.shape_cast %82 : vector<2x8x16xf32> to vector<16x16xf32>
    %84 = vector.extract_strided_slice %37 {offsets = [0, 32], sizes = [16, 16], strides = [1, 1]} : vector<16x192xf32> to vector<16x16xf32>
    %cst_30 = arith.constant 2.500000e-01 : f32
    %85 = vector.broadcast %cst_30 : f32 to vector<16x16xf32>
    %86 = arith.mulf %84, %85 : vector<16x16xf32>
    %87 = vector.shape_cast %86 : vector<16x16xf32> to vector<2x8x16xf32>
    %88 = vector.extract_strided_slice %37 {offsets = [0, 96], sizes = [16, 16], strides = [1, 1]} : vector<16x192xf32> to vector<16x16xf32>
    %89 = vector.shape_cast %88 : vector<16x16xf32> to vector<2x8x16xf32>
    %90 = vector.extract_strided_slice %37 {offsets = [0, 160], sizes = [16, 16], strides = [1, 1]} : vector<16x192xf32> to vector<16x16xf32>
    %91 = vector.shape_cast %90 : vector<16x16xf32> to vector<2x8x16xf32>
    "tpu.trace_start"() <{level = 10 : i32, message = "bqd,bkd->bqk"}> : () -> ()
    %cst_31 = arith.constant dense<0.000000e+00> : vector<2x8x8xf32>
    %92 = tpu.matmul %87, %89, %cst_31 {dimension_numbers = #tpu.dot_dimension_numbers<[2], [2], [1], [1], [0, 0, 0, 1, 1, 1], [0], [0]>} : vector<2x8x16xf32>, vector<2x8x16xf32>, vector<2x8x8xf32> -> vector<2x8x8xf32>
    "tpu.trace_stop"() : () -> ()
    %93 = vector.broadcast %30 : vector<2x1x8xf32> to vector<2x8x8xf32>
    %94 = arith.addf %92, %93 : vector<2x8x8xf32>
    %cst_32 = arith.constant dense<0xFF800000> : vector<2x8xf32>
    %95 = vector.multi_reduction <maximumf>, %94, %cst_32 [2] : vector<2x8x8xf32> to vector<2x8xf32>
    %96 = vector.shape_cast %95 : vector<2x8xf32> to vector<2x8x1xf32>
    %97 = vector.broadcast %96 : vector<2x8x1xf32> to vector<2x8x8xf32>
    %98 = arith.subf %94, %97 : vector<2x8x8xf32>
    %99 = math.exp %98 : vector<2x8x8xf32>
    %cst_33 = arith.constant dense<0.000000e+00> : vector<2x8xf32>
    %100 = vector.multi_reduction <add>, %99, %cst_33 [2] : vector<2x8x8xf32> to vector<2x8xf32>
    %101 = vector.shape_cast %100 : vector<2x8xf32> to vector<2x8x1xf32>
    %102 = tpu.reciprocal %101 {approx = true} : vector<2x8x1xf32> -> vector<2x8x1xf32>
    %103 = vector.broadcast %102 : vector<2x8x1xf32> to vector<2x8x8xf32>
    %104 = arith.mulf %99, %103 : vector<2x8x8xf32>
    "tpu.trace_start"() <{level = 10 : i32, message = "bqk,bkd->bqd"}> : () -> ()
    %cst_34 = arith.constant dense<0.000000e+00> : vector<2x8x16xf32>
    %105 = tpu.matmul %104, %91, %cst_34 {dimension_numbers = #tpu.dot_dimension_numbers<[2], [1], [1], [2], [0, 0, 0, 1, 1, 2], [0], [0]>} : vector<2x8x8xf32>, vector<2x8x16xf32>, vector<2x8x16xf32> -> vector<2x8x16xf32>
    "tpu.trace_stop"() : () -> ()
    %106 = vector.shape_cast %105 : vector<2x8x16xf32> to vector<16x16xf32>
    %107 = vector.extract_strided_slice %37 {offsets = [0, 48], sizes = [16, 16], strides = [1, 1]} : vector<16x192xf32> to vector<16x16xf32>
    %cst_35 = arith.constant 2.500000e-01 : f32
    %108 = vector.broadcast %cst_35 : f32 to vector<16x16xf32>
    %109 = arith.mulf %107, %108 : vector<16x16xf32>
    %110 = vector.shape_cast %109 : vector<16x16xf32> to vector<2x8x16xf32>
    %111 = vector.extract_strided_slice %37 {offsets = [0, 112], sizes = [16, 16], strides = [1, 1]} : vector<16x192xf32> to vector<16x16xf32>
    %112 = vector.shape_cast %111 : vector<16x16xf32> to vector<2x8x16xf32>
    %113 = vector.extract_strided_slice %37 {offsets = [0, 176], sizes = [16, 16], strides = [1, 1]} : vector<16x192xf32> to vector<16x16xf32>
    %114 = vector.shape_cast %113 : vector<16x16xf32> to vector<2x8x16xf32>
    "tpu.trace_start"() <{level = 10 : i32, message = "bqd,bkd->bqk"}> : () -> ()
    %cst_36 = arith.constant dense<0.000000e+00> : vector<2x8x8xf32>
    %115 = tpu.matmul %110, %112, %cst_36 {dimension_numbers = #tpu.dot_dimension_numbers<[2], [2], [1], [1], [0, 0, 0, 1, 1, 1], [0], [0]>} : vector<2x8x16xf32>, vector<2x8x16xf32>, vector<2x8x8xf32> -> vector<2x8x8xf32>
    "tpu.trace_stop"() : () -> ()
    %116 = vector.broadcast %30 : vector<2x1x8xf32> to vector<2x8x8xf32>
    %117 = arith.addf %115, %116 : vector<2x8x8xf32>
    %cst_37 = arith.constant dense<0xFF800000> : vector<2x8xf32>
    %118 = vector.multi_reduction <maximumf>, %117, %cst_37 [2] : vector<2x8x8xf32> to vector<2x8xf32>
    %119 = vector.shape_cast %118 : vector<2x8xf32> to vector<2x8x1xf32>
    %120 = vector.broadcast %119 : vector<2x8x1xf32> to vector<2x8x8xf32>
    %121 = arith.subf %117, %120 : vector<2x8x8xf32>
    %122 = math.exp %121 : vector<2x8x8xf32>
    %cst_38 = arith.constant dense<0.000000e+00> : vector<2x8xf32>
    %123 = vector.multi_reduction <add>, %122, %cst_38 [2] : vector<2x8x8xf32> to vector<2x8xf32>
    %124 = vector.shape_cast %123 : vector<2x8xf32> to vector<2x8x1xf32>
    %125 = tpu.reciprocal %124 {approx = true} : vector<2x8x1xf32> -> vector<2x8x1xf32>
    %126 = vector.broadcast %125 : vector<2x8x1xf32> to vector<2x8x8xf32>
    %127 = arith.mulf %122, %126 : vector<2x8x8xf32>
    "tpu.trace_start"() <{level = 10 : i32, message = "bqk,bkd->bqd"}> : () -> ()
    %cst_39 = arith.constant dense<0.000000e+00> : vector<2x8x16xf32>
    %128 = tpu.matmul %127, %114, %cst_39 {dimension_numbers = #tpu.dot_dimension_numbers<[2], [1], [1], [2], [0, 0, 0, 1, 1, 2], [0], [0]>} : vector<2x8x8xf32>, vector<2x8x16xf32>, vector<2x8x16xf32> -> vector<2x8x16xf32>
    "tpu.trace_stop"() : () -> ()
    %129 = vector.shape_cast %128 : vector<2x8x16xf32> to vector<16x16xf32>
    %130 = tpu.concatenate %60, %83, %106, %129 in 1 : vector<16x16xf32>, vector<16x16xf32>, vector<16x16xf32>, vector<16x16xf32> -> vector<16x64xf32>
    %c0_40 = arith.constant 0 : index
    %c0_41 = arith.constant 0 : index
    %c0_42 = arith.constant 0 : index
    %131 = vector.load %arg6[%c0_40, %c0_41, %c0_42] : memref<2x64x64xf32, #tpu.memory_space<vmem>>, vector<1x64x64xf32>
    %132 = vector.shape_cast %131 : vector<1x64x64xf32> to vector<64x64xf32>
    %cst_43 = arith.constant dense<0.000000e+00> : vector<16x64xf32>
    %133 = tpu.matmul %130, %132, %cst_43 {dimension_numbers = #tpu.dot_dimension_numbers<[1], [0], [0], [1], [0, 0, 1, 1], [], []>} : vector<16x64xf32>, vector<64x64xf32>, vector<16x64xf32> -> vector<16x64xf32>
    %c0_44 = arith.constant 0 : index
    %c0_45 = arith.constant 0 : index
    %c0_46 = arith.constant 0 : index
    %134 = vector.load %arg7[%c0_44, %c0_45, %c0_46] : memref<2x1x64xf32, #tpu.memory_space<vmem>>, vector<1x1x64xf32>
    %135 = vector.shape_cast %134 : vector<1x1x64xf32> to vector<1x64xf32>
    %136 = vector.broadcast %135 : vector<1x64xf32> to vector<16x64xf32>
    %137 = arith.addf %133, %136 : vector<16x64xf32>
    %138 = arith.addf %137, %24 : vector<16x64xf32>
    %c0_47 = arith.constant 0 : index
    %c0_48 = arith.constant 0 : index
    %c0_49 = arith.constant 0 : index
    %139 = vector.load %arg8[%c0_47, %c0_48, %c0_49] : memref<2x1x64xf32, #tpu.memory_space<vmem>>, vector<1x1x64xf32>
    %140 = vector.shape_cast %139 : vector<1x1x64xf32> to vector<1x64xf32>
    %c0_50 = arith.constant 0 : index
    %c0_51 = arith.constant 0 : index
    %c0_52 = arith.constant 0 : index
    %141 = vector.load %arg9[%c0_50, %c0_51, %c0_52] : memref<2x1x64xf32, #tpu.memory_space<vmem>>, vector<1x1x64xf32>
    %142 = vector.shape_cast %141 : vector<1x1x64xf32> to vector<1x64xf32>
    %cst_53 = arith.constant dense<0.000000e+00> : vector<16xf32>
    %143 = vector.multi_reduction <add>, %138, %cst_53 [1] : vector<16x64xf32> to vector<16xf32>
    %144 = vector.shape_cast %143 : vector<16xf32> to vector<16x1xf32>
    %cst_54 = arith.constant 6.400000e+01 : f32
    %145 = vector.broadcast %cst_54 : f32 to vector<16x1xf32>
    %146 = arith.divf %144, %145 : vector<16x1xf32>
    %147 = vector.broadcast %146 : vector<16x1xf32> to vector<16x64xf32>
    %148 = arith.subf %138, %147 : vector<16x64xf32>
    %149 = arith.mulf %148, %148 : vector<16x64xf32>
    %cst_55 = arith.constant dense<0.000000e+00> : vector<16xf32>
    %150 = vector.multi_reduction <add>, %149, %cst_55 [1] : vector<16x64xf32> to vector<16xf32>
    %151 = vector.shape_cast %150 : vector<16xf32> to vector<16x1xf32>
    %cst_56 = arith.constant 6.400000e+01 : f32
    %152 = vector.broadcast %cst_56 : f32 to vector<16x1xf32>
    %153 = arith.divf %151, %152 : vector<16x1xf32>
    %154 = vector.broadcast %146 : vector<16x1xf32> to vector<16x64xf32>
    %155 = arith.subf %138, %154 : vector<16x64xf32>
    %cst_57 = arith.constant 1.000000e-07 : f32
    %156 = vector.broadcast %cst_57 : f32 to vector<16x1xf32>
    %157 = arith.addf %153, %156 : vector<16x1xf32>
    %158 = math.rsqrt %157 : vector<16x1xf32>
    %159 = vector.broadcast %158 : vector<16x1xf32> to vector<16x64xf32>
    %160 = arith.mulf %155, %159 : vector<16x64xf32>
    %161 = vector.broadcast %140 : vector<1x64xf32> to vector<16x64xf32>
    %162 = arith.mulf %160, %161 : vector<16x64xf32>
    %163 = vector.broadcast %142 : vector<1x64xf32> to vector<16x64xf32>
    %164 = arith.addf %162, %163 : vector<16x64xf32>
    %c0_58 = arith.constant 0 : index
    %c0_59 = arith.constant 0 : index
    %c0_60 = arith.constant 0 : index
    %165 = vector.load %arg10[%c0_58, %c0_59, %c0_60] : memref<2x64x128xf32, #tpu.memory_space<vmem>>, vector<1x64x128xf32>
    %166 = vector.shape_cast %165 : vector<1x64x128xf32> to vector<64x128xf32>
    %cst_61 = arith.constant dense<0.000000e+00> : vector<16x128xf32>
    %167 = tpu.matmul %164, %166, %cst_61 {dimension_numbers = #tpu.dot_dimension_numbers<[1], [0], [0], [1], [0, 0, 1, 1], [], []>} : vector<16x64xf32>, vector<64x128xf32>, vector<16x128xf32> -> vector<16x128xf32>
    %c0_62 = arith.constant 0 : index
    %c0_63 = arith.constant 0 : index
    %c0_64 = arith.constant 0 : index
    %168 = vector.load %arg11[%c0_62, %c0_63, %c0_64] : memref<2x1x128xf32, #tpu.memory_space<vmem>>, vector<1x1x128xf32>
    %169 = vector.shape_cast %168 : vector<1x1x128xf32> to vector<1x128xf32>
    %170 = vector.broadcast %169 : vector<1x128xf32> to vector<16x128xf32>
    %171 = arith.addf %167, %170 : vector<16x128xf32>
    %172 = arith.mulf %171, %171 : vector<16x128xf32>
    %173 = arith.mulf %171, %172 : vector<16x128xf32>
    %cst_65 = arith.constant 4.471500e-02 : f32
    %174 = vector.broadcast %cst_65 : f32 to vector<16x128xf32>
    %175 = arith.mulf %174, %173 : vector<16x128xf32>
    %176 = arith.addf %171, %175 : vector<16x128xf32>
    %cst_66 = arith.constant 0.797884583 : f32
    %177 = vector.broadcast %cst_66 : f32 to vector<16x128xf32>
    %178 = arith.mulf %177, %176 : vector<16x128xf32>
    %179 = math.tanh %178 : vector<16x128xf32>
    %cst_67 = arith.constant 1.000000e+00 : f32
    %180 = vector.broadcast %cst_67 : f32 to vector<16x128xf32>
    %181 = arith.addf %180, %179 : vector<16x128xf32>
    %cst_68 = arith.constant 5.000000e-01 : f32
    %182 = vector.broadcast %cst_68 : f32 to vector<16x128xf32>
    %183 = arith.mulf %182, %181 : vector<16x128xf32>
    %184 = arith.mulf %171, %183 : vector<16x128xf32>
    %c0_69 = arith.constant 0 : index
    %c0_70 = arith.constant 0 : index
    %c0_71 = arith.constant 0 : index
    %185 = vector.load %arg12[%c0_69, %c0_70, %c0_71] : memref<2x128x64xf32, #tpu.memory_space<vmem>>, vector<1x128x64xf32>
    %186 = vector.shape_cast %185 : vector<1x128x64xf32> to vector<128x64xf32>
    %cst_72 = arith.constant dense<0.000000e+00> : vector<16x64xf32>
    %187 = tpu.matmul %184, %186, %cst_72 {dimension_numbers = #tpu.dot_dimension_numbers<[1], [0], [0], [1], [0, 0, 1, 1], [], []>} : vector<16x128xf32>, vector<128x64xf32>, vector<16x64xf32> -> vector<16x64xf32>
    %c0_73 = arith.constant 0 : index
    %c0_74 = arith.constant 0 : index
    %c0_75 = arith.constant 0 : index
    %188 = vector.load %arg13[%c0_73, %c0_74, %c0_75] : memref<2x1x64xf32, #tpu.memory_space<vmem>>, vector<1x1x64xf32>
    %189 = vector.shape_cast %188 : vector<1x1x64xf32> to vector<1x64xf32>
    %190 = vector.broadcast %189 : vector<1x64xf32> to vector<16x64xf32>
    %191 = arith.addf %187, %190 : vector<16x64xf32>
    %192 = arith.addf %191, %164 : vector<16x64xf32>
    %c0_76 = arith.constant 0 : index
    %c0_77 = arith.constant 0 : index
    %c0_78 = arith.constant 0 : index
    %193 = vector.load %arg14[%c0_76, %c0_77, %c0_78] : memref<2x1x64xf32, #tpu.memory_space<vmem>>, vector<1x1x64xf32>
    %194 = vector.shape_cast %193 : vector<1x1x64xf32> to vector<1x64xf32>
    %c0_79 = arith.constant 0 : index
    %c0_80 = arith.constant 0 : index
    %c0_81 = arith.constant 0 : index
    %195 = vector.load %arg15[%c0_79, %c0_80, %c0_81] : memref<2x1x64xf32, #tpu.memory_space<vmem>>, vector<1x1x64xf32>
    %196 = vector.shape_cast %195 : vector<1x1x64xf32> to vector<1x64xf32>
    %cst_82 = arith.constant dense<0.000000e+00> : vector<16xf32>
    %197 = vector.multi_reduction <add>, %192, %cst_82 [1] : vector<16x64xf32> to vector<16xf32>
    %198 = vector.shape_cast %197 : vector<16xf32> to vector<16x1xf32>
    %cst_83 = arith.constant 6.400000e+01 : f32
    %199 = vector.broadcast %cst_83 : f32 to vector<16x1xf32>
    %200 = arith.divf %198, %199 : vector<16x1xf32>
    %201 = vector.broadcast %200 : vector<16x1xf32> to vector<16x64xf32>
    %202 = arith.subf %192, %201 : vector<16x64xf32>
    %203 = arith.mulf %202, %202 : vector<16x64xf32>
    %cst_84 = arith.constant dense<0.000000e+00> : vector<16xf32>
    %204 = vector.multi_reduction <add>, %203, %cst_84 [1] : vector<16x64xf32> to vector<16xf32>
    %205 = vector.shape_cast %204 : vector<16xf32> to vector<16x1xf32>
    %cst_85 = arith.constant 6.400000e+01 : f32
    %206 = vector.broadcast %cst_85 : f32 to vector<16x1xf32>
    %207 = arith.divf %205, %206 : vector<16x1xf32>
    %208 = vector.broadcast %200 : vector<16x1xf32> to vector<16x64xf32>
    %209 = arith.subf %192, %208 : vector<16x64xf32>
    %cst_86 = arith.constant 1.000000e-07 : f32
    %210 = vector.broadcast %cst_86 : f32 to vector<16x1xf32>
    %211 = arith.addf %207, %210 : vector<16x1xf32>
    %212 = math.rsqrt %211 : vector<16x1xf32>
    %213 = vector.broadcast %212 : vector<16x1xf32> to vector<16x64xf32>
    %214 = arith.mulf %209, %213 : vector<16x64xf32>
    %215 = vector.broadcast %194 : vector<1x64xf32> to vector<16x64xf32>
    %216 = arith.mulf %214, %215 : vector<16x64xf32>
    %217 = vector.broadcast %196 : vector<1x64xf32> to vector<16x64xf32>
    %218 = arith.addf %216, %217 : vector<16x64xf32>
    %c1 = arith.constant 1 : index
    %c0_87 = arith.constant 0 : index
    %c0_88 = arith.constant 0 : index
    %219 = vector.load %arg4[%c1, %c0_87, %c0_88] : memref<2x64x192xf32, #tpu.memory_space<vmem>>, vector<1x64x192xf32>
    %220 = vector.shape_cast %219 : vector<1x64x192xf32> to vector<64x192xf32>
    %cst_89 = arith.constant dense<0.000000e+00> : vector<16x192xf32>
    %221 = tpu.matmul %218, %220, %cst_89 {dimension_numbers = #tpu.dot_dimension_numbers<[1], [0], [0], [1], [0, 0, 1, 1], [], []>} : vector<16x64xf32>, vector<64x192xf32>, vector<16x192xf32> -> vector<16x192xf32>
    %c1_90 = arith.constant 1 : index
    %c0_91 = arith.constant 0 : index
    %c0_92 = arith.constant 0 : index
    %222 = vector.load %arg5[%c1_90, %c0_91, %c0_92] : memref<2x1x192xf32, #tpu.memory_space<vmem>>, vector<1x1x192xf32>
    %223 = vector.shape_cast %222 : vector<1x1x192xf32> to vector<1x192xf32>
    %224 = vector.broadcast %223 : vector<1x192xf32> to vector<16x192xf32>
    %225 = arith.addf %221, %224 : vector<16x192xf32>
    %226 = vector.extract_strided_slice %225 {offsets = [0, 0], sizes = [16, 16], strides = [1, 1]} : vector<16x192xf32> to vector<16x16xf32>
    %cst_93 = arith.constant 2.500000e-01 : f32
    %227 = vector.broadcast %cst_93 : f32 to vector<16x16xf32>
    %228 = arith.mulf %226, %227 : vector<16x16xf32>
    %229 = vector.shape_cast %228 : vector<16x16xf32> to vector<2x8x16xf32>
    %230 = vector.extract_strided_slice %225 {offsets = [0, 64], sizes = [16, 16], strides = [1, 1]} : vector<16x192xf32> to vector<16x16xf32>
    %231 = vector.shape_cast %230 : vector<16x16xf32> to vector<2x8x16xf32>
    %232 = vector.extract_strided_slice %225 {offsets = [0, 128], sizes = [16, 16], strides = [1, 1]} : vector<16x192xf32> to vector<16x16xf32>
    %233 = vector.shape_cast %232 : vector<16x16xf32> to vector<2x8x16xf32>
    "tpu.trace_start"() <{level = 10 : i32, message = "bqd,bkd->bqk"}> : () -> ()
    %cst_94 = arith.constant dense<0.000000e+00> : vector<2x8x8xf32>
    %234 = tpu.matmul %229, %231, %cst_94 {dimension_numbers = #tpu.dot_dimension_numbers<[2], [2], [1], [1], [0, 0, 0, 1, 1, 1], [0], [0]>} : vector<2x8x16xf32>, vector<2x8x16xf32>, vector<2x8x8xf32> -> vector<2x8x8xf32>
    "tpu.trace_stop"() : () -> ()
    %235 = vector.broadcast %30 : vector<2x1x8xf32> to vector<2x8x8xf32>
    %236 = arith.addf %234, %235 : vector<2x8x8xf32>
    %cst_95 = arith.constant dense<0xFF800000> : vector<2x8xf32>
    %237 = vector.multi_reduction <maximumf>, %236, %cst_95 [2] : vector<2x8x8xf32> to vector<2x8xf32>
    %238 = vector.shape_cast %237 : vector<2x8xf32> to vector<2x8x1xf32>
    %239 = vector.broadcast %238 : vector<2x8x1xf32> to vector<2x8x8xf32>
    %240 = arith.subf %236, %239 : vector<2x8x8xf32>
    %241 = math.exp %240 : vector<2x8x8xf32>
    %cst_96 = arith.constant dense<0.000000e+00> : vector<2x8xf32>
    %242 = vector.multi_reduction <add>, %241, %cst_96 [2] : vector<2x8x8xf32> to vector<2x8xf32>
    %243 = vector.shape_cast %242 : vector<2x8xf32> to vector<2x8x1xf32>
    %244 = tpu.reciprocal %243 {approx = true} : vector<2x8x1xf32> -> vector<2x8x1xf32>
    %245 = vector.broadcast %244 : vector<2x8x1xf32> to vector<2x8x8xf32>
    %246 = arith.mulf %241, %245 : vector<2x8x8xf32>
    "tpu.trace_start"() <{level = 10 : i32, message = "bqk,bkd->bqd"}> : () -> ()
    %cst_97 = arith.constant dense<0.000000e+00> : vector<2x8x16xf32>
    %247 = tpu.matmul %246, %233, %cst_97 {dimension_numbers = #tpu.dot_dimension_numbers<[2], [1], [1], [2], [0, 0, 0, 1, 1, 2], [0], [0]>} : vector<2x8x8xf32>, vector<2x8x16xf32>, vector<2x8x16xf32> -> vector<2x8x16xf32>
    "tpu.trace_stop"() : () -> ()
    %248 = vector.shape_cast %247 : vector<2x8x16xf32> to vector<16x16xf32>
    %249 = vector.extract_strided_slice %225 {offsets = [0, 16], sizes = [16, 16], strides = [1, 1]} : vector<16x192xf32> to vector<16x16xf32>
    %cst_98 = arith.constant 2.500000e-01 : f32
    %250 = vector.broadcast %cst_98 : f32 to vector<16x16xf32>
    %251 = arith.mulf %249, %250 : vector<16x16xf32>
    %252 = vector.shape_cast %251 : vector<16x16xf32> to vector<2x8x16xf32>
    %253 = vector.extract_strided_slice %225 {offsets = [0, 80], sizes = [16, 16], strides = [1, 1]} : vector<16x192xf32> to vector<16x16xf32>
    %254 = vector.shape_cast %253 : vector<16x16xf32> to vector<2x8x16xf32>
    %255 = vector.extract_strided_slice %225 {offsets = [0, 144], sizes = [16, 16], strides = [1, 1]} : vector<16x192xf32> to vector<16x16xf32>
    %256 = vector.shape_cast %255 : vector<16x16xf32> to vector<2x8x16xf32>
    "tpu.trace_start"() <{level = 10 : i32, message = "bqd,bkd->bqk"}> : () -> ()
    %cst_99 = arith.constant dense<0.000000e+00> : vector<2x8x8xf32>
    %257 = tpu.matmul %252, %254, %cst_99 {dimension_numbers = #tpu.dot_dimension_numbers<[2], [2], [1], [1], [0, 0, 0, 1, 1, 1], [0], [0]>} : vector<2x8x16xf32>, vector<2x8x16xf32>, vector<2x8x8xf32> -> vector<2x8x8xf32>
    "tpu.trace_stop"() : () -> ()
    %258 = vector.broadcast %30 : vector<2x1x8xf32> to vector<2x8x8xf32>
    %259 = arith.addf %257, %258 : vector<2x8x8xf32>
    %cst_100 = arith.constant dense<0xFF800000> : vector<2x8xf32>
    %260 = vector.multi_reduction <maximumf>, %259, %cst_100 [2] : vector<2x8x8xf32> to vector<2x8xf32>
    %261 = vector.shape_cast %260 : vector<2x8xf32> to vector<2x8x1xf32>
    %262 = vector.broadcast %261 : vector<2x8x1xf32> to vector<2x8x8xf32>
    %263 = arith.subf %259, %262 : vector<2x8x8xf32>
    %264 = math.exp %263 : vector<2x8x8xf32>
    %cst_101 = arith.constant dense<0.000000e+00> : vector<2x8xf32>
    %265 = vector.multi_reduction <add>, %264, %cst_101 [2] : vector<2x8x8xf32> to vector<2x8xf32>
    %266 = vector.shape_cast %265 : vector<2x8xf32> to vector<2x8x1xf32>
    %267 = tpu.reciprocal %266 {approx = true} : vector<2x8x1xf32> -> vector<2x8x1xf32>
    %268 = vector.broadcast %267 : vector<2x8x1xf32> to vector<2x8x8xf32>
    %269 = arith.mulf %264, %268 : vector<2x8x8xf32>
    "tpu.trace_start"() <{level = 10 : i32, message = "bqk,bkd->bqd"}> : () -> ()
    %cst_102 = arith.constant dense<0.000000e+00> : vector<2x8x16xf32>
    %270 = tpu.matmul %269, %256, %cst_102 {dimension_numbers = #tpu.dot_dimension_numbers<[2], [1], [1], [2], [0, 0, 0, 1, 1, 2], [0], [0]>} : vector<2x8x8xf32>, vector<2x8x16xf32>, vector<2x8x16xf32> -> vector<2x8x16xf32>
    "tpu.trace_stop"() : () -> ()
    %271 = vector.shape_cast %270 : vector<2x8x16xf32> to vector<16x16xf32>
    %272 = vector.extract_strided_slice %225 {offsets = [0, 32], sizes = [16, 16], strides = [1, 1]} : vector<16x192xf32> to vector<16x16xf32>
    %cst_103 = arith.constant 2.500000e-01 : f32
    %273 = vector.broadcast %cst_103 : f32 to vector<16x16xf32>
    %274 = arith.mulf %272, %273 : vector<16x16xf32>
    %275 = vector.shape_cast %274 : vector<16x16xf32> to vector<2x8x16xf32>
    %276 = vector.extract_strided_slice %225 {offsets = [0, 96], sizes = [16, 16], strides = [1, 1]} : vector<16x192xf32> to vector<16x16xf32>
    %277 = vector.shape_cast %276 : vector<16x16xf32> to vector<2x8x16xf32>
    %278 = vector.extract_strided_slice %225 {offsets = [0, 160], sizes = [16, 16], strides = [1, 1]} : vector<16x192xf32> to vector<16x16xf32>
    %279 = vector.shape_cast %278 : vector<16x16xf32> to vector<2x8x16xf32>
    "tpu.trace_start"() <{level = 10 : i32, message = "bqd,bkd->bqk"}> : () -> ()
    %cst_104 = arith.constant dense<0.000000e+00> : vector<2x8x8xf32>
    %280 = tpu.matmul %275, %277, %cst_104 {dimension_numbers = #tpu.dot_dimension_numbers<[2], [2], [1], [1], [0, 0, 0, 1, 1, 1], [0], [0]>} : vector<2x8x16xf32>, vector<2x8x16xf32>, vector<2x8x8xf32> -> vector<2x8x8xf32>
    "tpu.trace_stop"() : () -> ()
    %281 = vector.broadcast %30 : vector<2x1x8xf32> to vector<2x8x8xf32>
    %282 = arith.addf %280, %281 : vector<2x8x8xf32>
    %cst_105 = arith.constant dense<0xFF800000> : vector<2x8xf32>
    %283 = vector.multi_reduction <maximumf>, %282, %cst_105 [2] : vector<2x8x8xf32> to vector<2x8xf32>
    %284 = vector.shape_cast %283 : vector<2x8xf32> to vector<2x8x1xf32>
    %285 = vector.broadcast %284 : vector<2x8x1xf32> to vector<2x8x8xf32>
    %286 = arith.subf %282, %285 : vector<2x8x8xf32>
    %287 = math.exp %286 : vector<2x8x8xf32>
    %cst_106 = arith.constant dense<0.000000e+00> : vector<2x8xf32>
    %288 = vector.multi_reduction <add>, %287, %cst_106 [2] : vector<2x8x8xf32> to vector<2x8xf32>
    %289 = vector.shape_cast %288 : vector<2x8xf32> to vector<2x8x1xf32>
    %290 = tpu.reciprocal %289 {approx = true} : vector<2x8x1xf32> -> vector<2x8x1xf32>
    %291 = vector.broadcast %290 : vector<2x8x1xf32> to vector<2x8x8xf32>
    %292 = arith.mulf %287, %291 : vector<2x8x8xf32>
    "tpu.trace_start"() <{level = 10 : i32, message = "bqk,bkd->bqd"}> : () -> ()
    %cst_107 = arith.constant dense<0.000000e+00> : vector<2x8x16xf32>
    %293 = tpu.matmul %292, %279, %cst_107 {dimension_numbers = #tpu.dot_dimension_numbers<[2], [1], [1], [2], [0, 0, 0, 1, 1, 2], [0], [0]>} : vector<2x8x8xf32>, vector<2x8x16xf32>, vector<2x8x16xf32> -> vector<2x8x16xf32>
    "tpu.trace_stop"() : () -> ()
    %294 = vector.shape_cast %293 : vector<2x8x16xf32> to vector<16x16xf32>
    %295 = vector.extract_strided_slice %225 {offsets = [0, 48], sizes = [16, 16], strides = [1, 1]} : vector<16x192xf32> to vector<16x16xf32>
    %cst_108 = arith.constant 2.500000e-01 : f32
    %296 = vector.broadcast %cst_108 : f32 to vector<16x16xf32>
    %297 = arith.mulf %295, %296 : vector<16x16xf32>
    %298 = vector.shape_cast %297 : vector<16x16xf32> to vector<2x8x16xf32>
    %299 = vector.extract_strided_slice %225 {offsets = [0, 112], sizes = [16, 16], strides = [1, 1]} : vector<16x192xf32> to vector<16x16xf32>
    %300 = vector.shape_cast %299 : vector<16x16xf32> to vector<2x8x16xf32>
    %301 = vector.extract_strided_slice %225 {offsets = [0, 176], sizes = [16, 16], strides = [1, 1]} : vector<16x192xf32> to vector<16x16xf32>
    %302 = vector.shape_cast %301 : vector<16x16xf32> to vector<2x8x16xf32>
    "tpu.trace_start"() <{level = 10 : i32, message = "bqd,bkd->bqk"}> : () -> ()
    %cst_109 = arith.constant dense<0.000000e+00> : vector<2x8x8xf32>
    %303 = tpu.matmul %298, %300, %cst_109 {dimension_numbers = #tpu.dot_dimension_numbers<[2], [2], [1], [1], [0, 0, 0, 1, 1, 1], [0], [0]>} : vector<2x8x16xf32>, vector<2x8x16xf32>, vector<2x8x8xf32> -> vector<2x8x8xf32>
    "tpu.trace_stop"() : () -> ()
    %304 = vector.broadcast %30 : vector<2x1x8xf32> to vector<2x8x8xf32>
    %305 = arith.addf %303, %304 : vector<2x8x8xf32>
    %cst_110 = arith.constant dense<0xFF800000> : vector<2x8xf32>
    %306 = vector.multi_reduction <maximumf>, %305, %cst_110 [2] : vector<2x8x8xf32> to vector<2x8xf32>
    %307 = vector.shape_cast %306 : vector<2x8xf32> to vector<2x8x1xf32>
    %308 = vector.broadcast %307 : vector<2x8x1xf32> to vector<2x8x8xf32>
    %309 = arith.subf %305, %308 : vector<2x8x8xf32>
    %310 = math.exp %309 : vector<2x8x8xf32>
    %cst_111 = arith.constant dense<0.000000e+00> : vector<2x8xf32>
    %311 = vector.multi_reduction <add>, %310, %cst_111 [2] : vector<2x8x8xf32> to vector<2x8xf32>
    %312 = vector.shape_cast %311 : vector<2x8xf32> to vector<2x8x1xf32>
    %313 = tpu.reciprocal %312 {approx = true} : vector<2x8x1xf32> -> vector<2x8x1xf32>
    %314 = vector.broadcast %313 : vector<2x8x1xf32> to vector<2x8x8xf32>
    %315 = arith.mulf %310, %314 : vector<2x8x8xf32>
    "tpu.trace_start"() <{level = 10 : i32, message = "bqk,bkd->bqd"}> : () -> ()
    %cst_112 = arith.constant dense<0.000000e+00> : vector<2x8x16xf32>
    %316 = tpu.matmul %315, %302, %cst_112 {dimension_numbers = #tpu.dot_dimension_numbers<[2], [1], [1], [2], [0, 0, 0, 1, 1, 2], [0], [0]>} : vector<2x8x8xf32>, vector<2x8x16xf32>, vector<2x8x16xf32> -> vector<2x8x16xf32>
    "tpu.trace_stop"() : () -> ()
    %317 = vector.shape_cast %316 : vector<2x8x16xf32> to vector<16x16xf32>
    %318 = tpu.concatenate %248, %271, %294, %317 in 1 : vector<16x16xf32>, vector<16x16xf32>, vector<16x16xf32>, vector<16x16xf32> -> vector<16x64xf32>
    %c1_113 = arith.constant 1 : index
    %c0_114 = arith.constant 0 : index
    %c0_115 = arith.constant 0 : index
    %319 = vector.load %arg6[%c1_113, %c0_114, %c0_115] : memref<2x64x64xf32, #tpu.memory_space<vmem>>, vector<1x64x64xf32>
    %320 = vector.shape_cast %319 : vector<1x64x64xf32> to vector<64x64xf32>
    %cst_116 = arith.constant dense<0.000000e+00> : vector<16x64xf32>
    %321 = tpu.matmul %318, %320, %cst_116 {dimension_numbers = #tpu.dot_dimension_numbers<[1], [0], [0], [1], [0, 0, 1, 1], [], []>} : vector<16x64xf32>, vector<64x64xf32>, vector<16x64xf32> -> vector<16x64xf32>
    %c1_117 = arith.constant 1 : index
    %c0_118 = arith.constant 0 : index
    %c0_119 = arith.constant 0 : index
    %322 = vector.load %arg7[%c1_117, %c0_118, %c0_119] : memref<2x1x64xf32, #tpu.memory_space<vmem>>, vector<1x1x64xf32>
    %323 = vector.shape_cast %322 : vector<1x1x64xf32> to vector<1x64xf32>
    %324 = vector.broadcast %323 : vector<1x64xf32> to vector<16x64xf32>
    %325 = arith.addf %321, %324 : vector<16x64xf32>
    %326 = arith.addf %325, %218 : vector<16x64xf32>
    %c1_120 = arith.constant 1 : index
    %c0_121 = arith.constant 0 : index
    %c0_122 = arith.constant 0 : index
    %327 = vector.load %arg8[%c1_120, %c0_121, %c0_122] : memref<2x1x64xf32, #tpu.memory_space<vmem>>, vector<1x1x64xf32>
    %328 = vector.shape_cast %327 : vector<1x1x64xf32> to vector<1x64xf32>
    %c1_123 = arith.constant 1 : index
    %c0_124 = arith.constant 0 : index
    %c0_125 = arith.constant 0 : index
    %329 = vector.load %arg9[%c1_123, %c0_124, %c0_125] : memref<2x1x64xf32, #tpu.memory_space<vmem>>, vector<1x1x64xf32>
    %330 = vector.shape_cast %329 : vector<1x1x64xf32> to vector<1x64xf32>
    %cst_126 = arith.constant dense<0.000000e+00> : vector<16xf32>
    %331 = vector.multi_reduction <add>, %326, %cst_126 [1] : vector<16x64xf32> to vector<16xf32>
    %332 = vector.shape_cast %331 : vector<16xf32> to vector<16x1xf32>
    %cst_127 = arith.constant 6.400000e+01 : f32
    %333 = vector.broadcast %cst_127 : f32 to vector<16x1xf32>
    %334 = arith.divf %332, %333 : vector<16x1xf32>
    %335 = vector.broadcast %334 : vector<16x1xf32> to vector<16x64xf32>
    %336 = arith.subf %326, %335 : vector<16x64xf32>
    %337 = arith.mulf %336, %336 : vector<16x64xf32>
    %cst_128 = arith.constant dense<0.000000e+00> : vector<16xf32>
    %338 = vector.multi_reduction <add>, %337, %cst_128 [1] : vector<16x64xf32> to vector<16xf32>
    %339 = vector.shape_cast %338 : vector<16xf32> to vector<16x1xf32>
    %cst_129 = arith.constant 6.400000e+01 : f32
    %340 = vector.broadcast %cst_129 : f32 to vector<16x1xf32>
    %341 = arith.divf %339, %340 : vector<16x1xf32>
    %342 = vector.broadcast %334 : vector<16x1xf32> to vector<16x64xf32>
    %343 = arith.subf %326, %342 : vector<16x64xf32>
    %cst_130 = arith.constant 1.000000e-07 : f32
    %344 = vector.broadcast %cst_130 : f32 to vector<16x1xf32>
    %345 = arith.addf %341, %344 : vector<16x1xf32>
    %346 = math.rsqrt %345 : vector<16x1xf32>
    %347 = vector.broadcast %346 : vector<16x1xf32> to vector<16x64xf32>
    %348 = arith.mulf %343, %347 : vector<16x64xf32>
    %349 = vector.broadcast %328 : vector<1x64xf32> to vector<16x64xf32>
    %350 = arith.mulf %348, %349 : vector<16x64xf32>
    %351 = vector.broadcast %330 : vector<1x64xf32> to vector<16x64xf32>
    %352 = arith.addf %350, %351 : vector<16x64xf32>
    %c1_131 = arith.constant 1 : index
    %c0_132 = arith.constant 0 : index
    %c0_133 = arith.constant 0 : index
    %353 = vector.load %arg10[%c1_131, %c0_132, %c0_133] : memref<2x64x128xf32, #tpu.memory_space<vmem>>, vector<1x64x128xf32>
    %354 = vector.shape_cast %353 : vector<1x64x128xf32> to vector<64x128xf32>
    %cst_134 = arith.constant dense<0.000000e+00> : vector<16x128xf32>
    %355 = tpu.matmul %352, %354, %cst_134 {dimension_numbers = #tpu.dot_dimension_numbers<[1], [0], [0], [1], [0, 0, 1, 1], [], []>} : vector<16x64xf32>, vector<64x128xf32>, vector<16x128xf32> -> vector<16x128xf32>
    %c1_135 = arith.constant 1 : index
    %c0_136 = arith.constant 0 : index
    %c0_137 = arith.constant 0 : index
    %356 = vector.load %arg11[%c1_135, %c0_136, %c0_137] : memref<2x1x128xf32, #tpu.memory_space<vmem>>, vector<1x1x128xf32>
    %357 = vector.shape_cast %356 : vector<1x1x128xf32> to vector<1x128xf32>
    %358 = vector.broadcast %357 : vector<1x128xf32> to vector<16x128xf32>
    %359 = arith.addf %355, %358 : vector<16x128xf32>
    %360 = arith.mulf %359, %359 : vector<16x128xf32>
    %361 = arith.mulf %359, %360 : vector<16x128xf32>
    %cst_138 = arith.constant 4.471500e-02 : f32
    %362 = vector.broadcast %cst_138 : f32 to vector<16x128xf32>
    %363 = arith.mulf %362, %361 : vector<16x128xf32>
    %364 = arith.addf %359, %363 : vector<16x128xf32>
    %cst_139 = arith.constant 0.797884583 : f32
    %365 = vector.broadcast %cst_139 : f32 to vector<16x128xf32>
    %366 = arith.mulf %365, %364 : vector<16x128xf32>
    %367 = math.tanh %366 : vector<16x128xf32>
    %cst_140 = arith.constant 1.000000e+00 : f32
    %368 = vector.broadcast %cst_140 : f32 to vector<16x128xf32>
    %369 = arith.addf %368, %367 : vector<16x128xf32>
    %cst_141 = arith.constant 5.000000e-01 : f32
    %370 = vector.broadcast %cst_141 : f32 to vector<16x128xf32>
    %371 = arith.mulf %370, %369 : vector<16x128xf32>
    %372 = arith.mulf %359, %371 : vector<16x128xf32>
    %c1_142 = arith.constant 1 : index
    %c0_143 = arith.constant 0 : index
    %c0_144 = arith.constant 0 : index
    %373 = vector.load %arg12[%c1_142, %c0_143, %c0_144] : memref<2x128x64xf32, #tpu.memory_space<vmem>>, vector<1x128x64xf32>
    %374 = vector.shape_cast %373 : vector<1x128x64xf32> to vector<128x64xf32>
    %cst_145 = arith.constant dense<0.000000e+00> : vector<16x64xf32>
    %375 = tpu.matmul %372, %374, %cst_145 {dimension_numbers = #tpu.dot_dimension_numbers<[1], [0], [0], [1], [0, 0, 1, 1], [], []>} : vector<16x128xf32>, vector<128x64xf32>, vector<16x64xf32> -> vector<16x64xf32>
    %c1_146 = arith.constant 1 : index
    %c0_147 = arith.constant 0 : index
    %c0_148 = arith.constant 0 : index
    %376 = vector.load %arg13[%c1_146, %c0_147, %c0_148] : memref<2x1x64xf32, #tpu.memory_space<vmem>>, vector<1x1x64xf32>
    %377 = vector.shape_cast %376 : vector<1x1x64xf32> to vector<1x64xf32>
    %378 = vector.broadcast %377 : vector<1x64xf32> to vector<16x64xf32>
    %379 = arith.addf %375, %378 : vector<16x64xf32>
    %380 = arith.addf %379, %352 : vector<16x64xf32>
    %c1_149 = arith.constant 1 : index
    %c0_150 = arith.constant 0 : index
    %c0_151 = arith.constant 0 : index
    %381 = vector.load %arg14[%c1_149, %c0_150, %c0_151] : memref<2x1x64xf32, #tpu.memory_space<vmem>>, vector<1x1x64xf32>
    %382 = vector.shape_cast %381 : vector<1x1x64xf32> to vector<1x64xf32>
    %c1_152 = arith.constant 1 : index
    %c0_153 = arith.constant 0 : index
    %c0_154 = arith.constant 0 : index
    %383 = vector.load %arg15[%c1_152, %c0_153, %c0_154] : memref<2x1x64xf32, #tpu.memory_space<vmem>>, vector<1x1x64xf32>
    %384 = vector.shape_cast %383 : vector<1x1x64xf32> to vector<1x64xf32>
    %cst_155 = arith.constant dense<0.000000e+00> : vector<16xf32>
    %385 = vector.multi_reduction <add>, %380, %cst_155 [1] : vector<16x64xf32> to vector<16xf32>
    %386 = vector.shape_cast %385 : vector<16xf32> to vector<16x1xf32>
    %cst_156 = arith.constant 6.400000e+01 : f32
    %387 = vector.broadcast %cst_156 : f32 to vector<16x1xf32>
    %388 = arith.divf %386, %387 : vector<16x1xf32>
    %389 = vector.broadcast %388 : vector<16x1xf32> to vector<16x64xf32>
    %390 = arith.subf %380, %389 : vector<16x64xf32>
    %391 = arith.mulf %390, %390 : vector<16x64xf32>
    %cst_157 = arith.constant dense<0.000000e+00> : vector<16xf32>
    %392 = vector.multi_reduction <add>, %391, %cst_157 [1] : vector<16x64xf32> to vector<16xf32>
    %393 = vector.shape_cast %392 : vector<16xf32> to vector<16x1xf32>
    %cst_158 = arith.constant 6.400000e+01 : f32
    %394 = vector.broadcast %cst_158 : f32 to vector<16x1xf32>
    %395 = arith.divf %393, %394 : vector<16x1xf32>
    %396 = vector.broadcast %388 : vector<16x1xf32> to vector<16x64xf32>
    %397 = arith.subf %380, %396 : vector<16x64xf32>
    %cst_159 = arith.constant 1.000000e-07 : f32
    %398 = vector.broadcast %cst_159 : f32 to vector<16x1xf32>
    %399 = arith.addf %395, %398 : vector<16x1xf32>
    %400 = math.rsqrt %399 : vector<16x1xf32>
    %401 = vector.broadcast %400 : vector<16x1xf32> to vector<16x64xf32>
    %402 = arith.mulf %397, %401 : vector<16x64xf32>
    %403 = vector.broadcast %382 : vector<1x64xf32> to vector<16x64xf32>
    %404 = arith.mulf %402, %403 : vector<16x64xf32>
    %405 = vector.broadcast %384 : vector<1x64xf32> to vector<16x64xf32>
    %406 = arith.addf %404, %405 : vector<16x64xf32>
    %c0_160 = arith.constant 0 : index
    %c0_161 = arith.constant 0 : index
    %407 = vector.load %arg16[%c0_160, %c0_161] : memref<64x128xf32, #tpu.memory_space<vmem>>, vector<64x128xf32>
    %cst_162 = arith.constant dense<0.000000e+00> : vector<16x128xf32>
    %408 = tpu.matmul %406, %407, %cst_162 {dimension_numbers = #tpu.dot_dimension_numbers<[1], [0], [0], [1], [0, 0, 1, 1], [], []>} : vector<16x64xf32>, vector<64x128xf32>, vector<16x128xf32> -> vector<16x128xf32>
    %c0_163 = arith.constant 0 : index
    %c0_164 = arith.constant 0 : index
    %409 = vector.load %arg17[%c0_163, %c0_164] : memref<1x128xf32, #tpu.memory_space<vmem>>, vector<1x128xf32>
    %410 = vector.broadcast %409 : vector<1x128xf32> to vector<16x128xf32>
    %411 = arith.addf %408, %410 : vector<16x128xf32>
    %c0_165 = arith.constant 0 : index
    %c0_166 = arith.constant 0 : index
    %412 = vector.load %arg18[%c0_165, %c0_166] : memref<16x128xf32, #tpu.memory_space<vmem>>, vector<16x128xf32>
    tpu.vector_store %arg18[%c0_165, %c0_166], %411 {strides = array<i32>} : memref<16x128xf32, #tpu.memory_space<vmem>>, vector<16x128xf32>,
    return
  }
}

</mosaic_0001>

<llo_original>
// kernel: aspect_extraction_forward.1
$region0: #{aspect_extraction_forward.1}
  #allocation0 [shape = 'u32[]', space=smem, size = 0x4, offset = 0x4, fixed_abs, tag = 'smem constant byte address 0x4 - core index']
  #allocation1 [shape = 'u32[144,128]{1,0:T(1,128)}', space=vmem, size = 0x12000, scoped, tag = 'internal scratch']
  %s0 = inlined_call_operand.vmem [shape: f32[16,64], index: 0, kind: input, shape index: {}]
  %s1 = inlined_call_operand.vmem [shape: f32[2,8], index: 1, kind: input, shape index: {}]
  %s2 = inlined_call_operand.vmem [shape: f32[1,64], index: 2, kind: input, shape index: {}]
  %s3 = inlined_call_operand.vmem [shape: f32[1,64], index: 3, kind: input, shape index: {}]
  %s4 = inlined_call_operand.vmem [shape: f32[2,64,192], index: 4, kind: input, shape index: {}]
  %s5 = inlined_call_operand.vmem [shape: f32[2,1,192], index: 5, kind: input, shape index: {}]
  %s6 = inlined_call_operand.vmem [shape: f32[2,64,64], index: 6, kind: input, shape index: {}]
  %s7 = inlined_call_operand.vmem [shape: f32[2,1,64], index: 7, kind: input, shape index: {}]
  %s8 = inlined_call_operand.vmem [shape: f32[2,1,64], index: 8, kind: input, shape index: {}]
  %s9 = inlined_call_operand.vmem [shape: f32[2,1,64], index: 9, kind: input, shape index: {}]
  %s10 = inlined_call_operand.hbm [shape: f32[2,64,128], index: 10, kind: input, shape index: {}]
  %s11 = inlined_call_operand.vmem [shape: f32[2,1,128], index: 11, kind: input, shape index: {}]
  %s12 = inlined_call_operand.vmem [shape: f32[2,128,64], index: 12, kind: input, shape index: {}]
  %s13 = inlined_call_operand.vmem [shape: f32[2,1,64], index: 13, kind: input, shape index: {}]
  %s14 = inlined_call_operand.vmem [shape: f32[2,1,64], index: 14, kind: input, shape index: {}]
  %s15 = inlined_call_operand.vmem [shape: f32[2,1,64], index: 15, kind: input, shape index: {}]
  %s16 = inlined_call_operand.vmem [shape: f32[64,128], index: 16, kind: input, shape index: {}]
  %s17 = inlined_call_operand.vmem [shape: f32[1,128], index: 17, kind: input, shape index: {}]
  %s18 = inlined_call_operand.vmem [shape: f32[16,128], index: 18, kind: output, shape index: {}]
  %s19 = sld [smem:[#allocation0]]
  $region86: #{aspect_extraction_forward.1} parent=0
    _
  %s21 = ssub.s32 1, %s19
  %s22 = scalar_select 0, %s21, %s19
  $region1: #{aspect_extraction_forward.1} parent=0
    #allocation2 [shape = 'u8[65536]{0}', space=vmem, size = 0x10000, scoped, tag = 'input window, operand 10, single buffered']
    #allocation3 [shape = 's32[1]{0}', space=sflag, size = 0x4, scoped, tag = 'scoped memory for aspect_extraction_forward.1']
    %23 = vsyncpa [#allocation3], 0
    // Predicated region
    $region2: #{aspect_extraction_forward.1} parent=1 // pred_check
      _
    $region3: #{aspect_extraction_forward.1} parent=1 // pred_check_branch
      %25 = sbr.rel (0) target = $region5
    $region4: #{aspect_extraction_forward.1} parent=1 // pred_region
      _
    $region5: #{aspect_extraction_forward.1} parent=1 // pred_fallthru
      _
    // Predicated region
    $region6: #{aspect_extraction_forward.1} parent=1 // pred_check
      _
    $region7: #{aspect_extraction_forward.1} parent=1 // pred_check_branch
      %27 = sbr.rel (0) target = $region9
    $region8: #{aspect_extraction_forward.1} parent=1 // pred_region
      _
    $region9: #{aspect_extraction_forward.1} parent=1 // pred_fallthru
      _
    // Predicated region
    $region10: #{aspect_extraction_forward.1} parent=1 // pred_check
      _
    $region11: #{aspect_extraction_forward.1} parent=1 // pred_check_branch
      %29 = sbr.rel (0) target = $region13
    $region12: #{aspect_extraction_forward.1} parent=1 // pred_region
      _
    $region13: #{aspect_extraction_forward.1} parent=1 // pred_fallthru
      _
    // Predicated region
    $region14: #{aspect_extraction_forward.1} parent=1 // pred_check
      _
    $region15: #{aspect_extraction_forward.1} parent=1 // pred_check_branch
      %31 = sbr.rel (0) target = $region17
    $region16: #{aspect_extraction_forward.1} parent=1 // pred_region
      _
    $region17: #{aspect_extraction_forward.1} parent=1 // pred_fallthru
      _
    // Predicated region
    $region18: #{aspect_extraction_forward.1} parent=1 // pred_check
      _
    $region19: #{aspect_extraction_forward.1} parent=1 // pred_check_branch
      %33 = sbr.rel (0) target = $region21
    $region20: #{aspect_extraction_forward.1} parent=1 // pred_region
      _
    $region21: #{aspect_extraction_forward.1} parent=1 // pred_fallthru
      _
    // Predicated region
    $region22: #{aspect_extraction_forward.1} parent=1 // pred_check
      _
    $region23: #{aspect_extraction_forward.1} parent=1 // pred_check_branch
      %35 = sbr.rel (0) target = $region25
    $region24: #{aspect_extraction_forward.1} parent=1 // pred_region
      _
    $region25: #{aspect_extraction_forward.1} parent=1 // pred_fallthru
      _
    // Predicated region
    $region26: #{aspect_extraction_forward.1} parent=1 // pred_check
      _
    $region27: #{aspect_extraction_forward.1} parent=1 // pred_check_branch
      %37 = sbr.rel (0) target = $region29
    $region28: #{aspect_extraction_forward.1} parent=1 // pred_region
      _
    $region29: #{aspect_extraction_forward.1} parent=1 // pred_fallthru
      _
    // Predicated region
    $region30: #{aspect_extraction_forward.1} parent=1 // pred_check
      _
    $region31: #{aspect_extraction_forward.1} parent=1 // pred_check_branch
      %39 = sbr.rel (0) target = $region33
    $region32: #{aspect_extraction_forward.1} parent=1 // pred_region
      _
    $region33: #{aspect_extraction_forward.1} parent=1 // pred_fallthru
      _
    // Predicated region
    $region34: #{aspect_extraction_forward.1} parent=1 // pred_check
      _
    $region35: #{aspect_extraction_forward.1} parent=1 // pred_check_branch
      %41 = sbr.rel (0) target = $region37
    $region36: #{aspect_extraction_forward.1} parent=1 // pred_region
      _
    $region37: #{aspect_extraction_forward.1} parent=1 // pred_fallthru
      _
    // Predicated region
    $region38: #{aspect_extraction_forward.1} parent=1 // pred_check
      _
    $region39: #{aspect_extraction_forward.1} parent=1 // pred_check_branch
      %43 = sbr.rel (0) target = $region41
    $region40: #{aspect_extraction_forward.1} parent=1 // pred_region
      _
    $region41: #{aspect_extraction_forward.1} parent=1 // pred_fallthru
      _
    // Predicated region
    $region42: #{aspect_extraction_forward.1} parent=1 // pred_check
      _
    $region43: #{aspect_extraction_forward.1} parent=1 // pred_check_branch
      %45 = sbr.rel (0) target = $region45
    $region44: #{aspect_extraction_forward.1} parent=1 // pred_region
      %s47 = ssub.s32 2048, 2048
      %48 = vsyncadd [#allocation3], %s47
      %s49 = sshll.u32 [#allocation2], 4
      %s50 = int_to_ptr.vmem [resolvable:$true] %s49
      %55 = dma.hbm_to_vmem [thread:$0]  %s10, 2048, %s50, [#allocation3], 128, 128, 8
    $region45: #{aspect_extraction_forward.1} parent=1 // pred_fallthru
      _
    // Predicated region
    $region46: #{aspect_extraction_forward.1} parent=1 // pred_check
      _
    $region47: #{aspect_extraction_forward.1} parent=1 // pred_check_branch
      %57 = sbr.rel (0) target = $region49
    $region48: #{aspect_extraction_forward.1} parent=1 // pred_region
      _
    $region49: #{aspect_extraction_forward.1} parent=1 // pred_fallthru
      _
    // Predicated region
    $region50: #{aspect_extraction_forward.1} parent=1 // pred_check
      _
    $region51: #{aspect_extraction_forward.1} parent=1 // pred_check_branch
      %59 = sbr.rel (0) target = $region53
    $region52: #{aspect_extraction_forward.1} parent=1 // pred_region
      _
    $region53: #{aspect_extraction_forward.1} parent=1 // pred_fallthru
      _
    // Predicated region
    $region54: #{aspect_extraction_forward.1} parent=1 // pred_check
      _
    $region55: #{aspect_extraction_forward.1} parent=1 // pred_check_branch
      %61 = sbr.rel (0) target = $region57
    $region56: #{aspect_extraction_forward.1} parent=1 // pred_region
      _
    $region57: #{aspect_extraction_forward.1} parent=1 // pred_fallthru
      _
    // Predicated region
    $region58: #{aspect_extraction_forward.1} parent=1 // pred_check
      _
    $region59: #{aspect_extraction_forward.1} parent=1 // pred_check_branch
      %63 = sbr.rel (0) target = $region61
    $region60: #{aspect_extraction_forward.1} parent=1 // pred_region
      _
    $region61: #{aspect_extraction_forward.1} parent=1 // pred_fallthru
      _
    // Predicated region
    $region62: #{aspect_extraction_forward.1} parent=1 // pred_check
      _
    $region63: #{aspect_extraction_forward.1} parent=1 // pred_check_branch
      %65 = sbr.rel (0) target = $region65
    $region64: #{aspect_extraction_forward.1} parent=1 // pred_region
      _
    $region65: #{aspect_extraction_forward.1} parent=1 // pred_fallthru
      _
    // Predicated region
    $region66: #{aspect_extraction_forward.1} parent=1 // pred_check
      _
    $region67: #{aspect_extraction_forward.1} parent=1 // pred_check_branch
      %67 = sbr.rel (0) target = $region69
    $region68: #{aspect_extraction_forward.1} parent=1 // pred_region
      _
    $region69: #{aspect_extraction_forward.1} parent=1 // pred_fallthru
      _
    // Predicated region
    $region70: #{aspect_extraction_forward.1} parent=1 // pred_check
      _
    $region71: #{aspect_extraction_forward.1} parent=1 // pred_check_branch
      %69 = sbr.rel (0) target = $region73
    $region72: #{aspect_extraction_forward.1} parent=1 // pred_region
      _
    $region73: #{aspect_extraction_forward.1} parent=1 // pred_fallthru
      _
    // Predicated region
    $region74: #{aspect_extraction_forward.1} parent=1 // pred_check
      _
    $region75: #{aspect_extraction_forward.1} parent=1 // pred_check_branch
      %71 = sbr.rel (0) target = $region77
    $region76: #{aspect_extraction_forward.1} parent=1 // pred_region
      %72 = dma.done [#allocation3], 2048
    $region77: #{aspect_extraction_forward.1} parent=1 // pred_fallthru
      _
    %v73 = vld [vmem:[%s0] sm:$0xff]
    %v74 = vld [vmem:[%s0 + $0x8] sm:$0xff]
    %v75 = vld [vmem:[%s2] sm:$0x1]
    %v76 = vld [vmem:[%s3] sm:$0x1]
    %vm77 = vcmask 523264
    %v78 = vsel %vm77, %v73, 0.0
    %79 = vadd.xlane.f32.xlu0 %v78
    %v80 = vpop.xlane.xlu0 %79
    %v81 = vsel %vm77, %v74, 0.0
    %82 = vadd.xlane.f32.xlu0 %v81
    %v83 = vpop.xlane.xlu0 %82
    %v84 = vrcp.pop 64.0
    %v85 = vmul.f32 %v80, %v84
    %v86 = vmul.f32 %v83, %v84
    %v87 = vsub.f32 %v73, %v85
    %v88 = vsub.f32 %v74, %v86
    %v89 = vmul.f32 %v87, %v87
    %v90 = vmul.f32 %v88, %v88
    %v91 = vsel %vm77, %v89, 0.0
    %92 = vadd.xlane.f32.xlu0 %v91
    %v93 = vpop.xlane.xlu0 %92
    %v94 = vsel %vm77, %v90, 0.0
    %95 = vadd.xlane.f32.xlu0 %v94
    %v96 = vpop.xlane.xlu0 %95
    %v97 = vmul.f32 %v93, %v84
    %v98 = vmul.f32 %v96, %v84
    %v99 = vadd.f32 %v97, 1e-07
    %v100 = vadd.f32 %v98, 1e-07
    %v101 = vrsqrt.pop %v99
    %v102 = vrsqrt.pop %v100
    %v103 = vmul.f32 %v87, %v101
    %v104 = vmul.f32 %v88, %v102
    %v106 = vlaneseq
    %v107 = vshrl.u32 %v106, 7
    %v108 = vsub.s32 0, %v107
    %v109 = vrot.slane %v75, %v108
    %v111 = vmul.f32 %v103, %v109
    %v112 = vmul.f32 %v104, %v109
    %v114 = vlaneseq
    %v115 = vshrl.u32 %v114, 7
    %v116 = vsub.s32 0, %v115
    %v117 = vrot.slane %v76, %v116
    %v119 = vadd.f32 %v111, %v117
    %v120 = vadd.f32 %v112, %v117
    %v121 = vld [vmem:[%s1] sm:$0x3]
    %v122 = vsub.f32 1.0, %v121
    %v123 = vmul.f32 %v122, -1e+09
    %v126 = vunpack.c.l.s4 1966171168
    %v127 = vunpack.c.0.s8 %v126
    %v128 = vlaneseq
    %v129 = vshrl.u32 %v128, 7
    %v130 = vsub.s32 %v127, %v129
    %v131 = vrot.slane %v123, %v130
    %v132 = vcombine.high %v131, %v131
    %v134 = vunpack.c.l.s4 1966171168
    %v135 = vunpack.c.0.s8 %v134
    %v136 = vlaneseq
    %v137 = vshrl.u32 %v136, 7
    %v138 = vsub.s32 %v135, %v137
    %v139 = vrot.slane %v131, %v138
    %v141 = vunpack.c.l.s4 1966171168
    %v142 = vunpack.c.0.s8 %v141
    %v143 = vlaneseq
    %v144 = vshrl.u32 %v143, 7
    %v145 = vsub.s32 %v142, %v144
    %v146 = vrot.slane %v132, %v145
    %v147 = vld [vmem:[%s4] sm:$0xff]
    %v148 = vld [vmem:[%s4 + $0x8] sm:$0xff]
    %v149 = vld [vmem:[%s4 + $0x10] sm:$0xff]
    %v150 = vld [vmem:[%s4 + $0x18] sm:$0xff]
    %v151 = vld [vmem:[%s4 + $0x20] sm:$0xff]
    %v152 = vld [vmem:[%s4 + $0x28] sm:$0xff]
    %v153 = vld [vmem:[%s4 + $0x30] sm:$0xff]
    %v154 = vld [vmem:[%s4 + $0x38] sm:$0xff]
    %v155 = vld [vmem:[%s4 + $0x40] sm:$0xff]
    %v156 = vld [vmem:[%s4 + $0x48] sm:$0xff]
    %v157 = vld [vmem:[%s4 + $0x50] sm:$0xff]
    %v158 = vld [vmem:[%s4 + $0x58] sm:$0xff]
    %v159 = vld [vmem:[%s4 + $0x60] sm:$0xff]
    %v160 = vld [vmem:[%s4 + $0x68] sm:$0xff]
    %v161 = vld [vmem:[%s4 + $0x70] sm:$0xff]
    %v162 = vld [vmem:[%s4 + $0x78] sm:$0xff]
    %v163 = vld [vmem:[%s5] sm:$0x3]
    %v165 = vlaneseq
    %v166 = vshrl.u32 %v165, 7
    %v167 = vsub.s32 0, %v166
    %v168 = vrot.slane %v163, %v167
    %v169 = vlaneseq
    %v170 = vshrl.u32 %v169, 7
    %v171 = vsub.s32 1, %v170
    %v172 = vrot.slane %v163, %v171
    %v176 = vsel %vm77, %v119, 0
    %v179 = vsel %vm77, %v120, 0
    %181 = vmatprep.subr.mxu0 %v148
    %182 = vmatpush1.msra.mxu0 %v147
    %183 = vmatprep.subr.mxu0 %v150
    %184 = vmatpush1.msra.mxu0 %v149
    %185 = vmatprep.subr.mxu0 %v152
    %186 = vmatpush1.msra.mxu0 %v151
    %187 = vmatprep.subr.mxu0 %v154
    %188 = vmatpush1.msra.mxu0 %v153
    %189 = vmatprep.subr.mxu0 %v156
    %190 = vmatpush1.msra.mxu0 %v155
    %191 = vmatprep.subr.mxu0 %v158
    %192 = vmatpush1.msra.mxu0 %v157
    %193 = vmatprep.subr.mxu0 %v160
    %194 = vmatpush1.msra.mxu0 %v159
    %195 = vmatprep.subr.mxu0 %v162
    %196 = vmatpush1.msra.mxu0 %v161
    %197 = vmatprep.subr.mxu0 0.0
    %198 = vmatpush1.msra.mxu0 0.0
    %199 = vmatprep.subr.mxu0 0.0
    %200 = vmatpush1.msra.mxu0 0.0
    %201 = vmatprep.subr.mxu0 0.0
    %202 = vmatpush1.msra.mxu0 0.0
    %203 = vmatprep.subr.mxu0 0.0
    %204 = vmatpush1.msra.mxu0 0.0
    %205 = vmatprep.subr.mxu0 0.0
    %206 = vmatpush1.msra.mxu0 0.0
    %207 = vmatprep.subr.mxu0 0.0
    %208 = vmatpush1.msra.mxu0 0.0
    %209 = vmatprep.subr.mxu0 0.0
    %210 = vmatpush1.msra.mxu0 0.0
    %211 = vmatprep.subr.mxu0 0.0
    %212 = vmatpush1.msra.mxu0 0.0
    %213 = vmatprep.subr.mxu0 0.0
    %214 = vmatpush1.msra.mxu0 0.0
    %215 = vmatprep.subr.mxu0 0.0
    %216 = vmatpush1.msra.mxu0 0.0
    %217 = vmatprep.subr.mxu0 0.0
    %218 = vmatpush1.msra.mxu0 0.0
    %219 = vmatprep.subr.mxu0 0.0
    %220 = vmatpush1.msra.mxu0 0.0
    %221 = vmatprep.subr.mxu0 0.0
    %222 = vmatpush1.msra.mxu0 0.0
    %223 = vmatprep.subr.mxu0 0.0
    %224 = vmatpush1.msra.mxu0 0.0
    %225 = vmatprep.subr.mxu0 0.0
    %226 = vmatpush1.msra.mxu0 0.0
    %227 = vmatprep.subr.mxu0 0.0
    %228 = vmatpush1.msra.mxu0 0.0
    %229 = vmatprep.subr.mxu0 0.0
    %230 = vmatpush1.msra.mxu0 0.0
    %231 = vmatprep.subr.mxu0 0.0
    %232 = vmatpush1.msra.mxu0 0.0
    %233 = vmatprep.subr.mxu0 0.0
    %234 = vmatpush1.msra.mxu0 0.0
    %235 = vmatprep.subr.mxu0 0.0
    %236 = vmatpush1.msra.mxu0 0.0
    %237 = vmatprep.subr.mxu0 0.0
    %238 = vmatpush1.msra.mxu0 0.0
    %239 = vmatprep.subr.mxu0 0.0
    %240 = vmatpush1.msra.mxu0 0.0
    %241 = vmatprep.subr.mxu0 0.0
    %242 = vmatpush1.msra.mxu0 0.0
    %243 = vmatprep.subr.mxu0 0.0
    %244 = vmatpush1.msra.mxu0 0.0
    %245 = vmatprep.mubr.f32.mxu0 0.0
    %246 = vmatmul.mubr.f32.gmra.mrb[0].mxu0 %v176
    %v247 = vpop.f32.mrb[0].mxu0
    %v248 = vadd.f32 %v168, %v247
    %v249 = vpop.f32.mrb[0].mxu0
    %v250 = vadd.f32 %v172, %v249
    %251 = vmatprep.mubr.f32.mxu0 0.0
    %252 = vmatmul.mubr.f32.gmra.mrb[0].mxu0 %v179
    %v253 = vpop.f32.mrb[0].mxu0
    %v254 = vadd.f32 %v168, %v253
    %v255 = vpop.f32.mrb[0].mxu0
    %v256 = vadd.f32 %v172, %v255
    %257 = vdwg.mxu0
    %v258 = vmul.f32 %v248, 0.25
    %v259 = vmul.f32 %v254, 0.25
    %v260 = vlaneseq
    %v261 = vshrl.u32 %v260, 7
    %v262 = vsub.s32 0, %v261
    %v263 = vrot.slane %v139, %v262
    %v264 = vlaneseq
    %v265 = vshrl.u32 %v264, 7
    %v266 = vsub.s32 0, %v265
    %v267 = vrot.slane %v146, %v266
    %271 = vrot.lane.b32.xlu0 %v248, 64
    %v272 = vpop.permute.xlu0 %271
    %vm273 = vcmask 130048
    %v275 = vsel %vm273, %v258, 0
    %v277 = vsel %vm273, %v272, 0
    %279 = vmatprep.subr.mxu0 0.0
    %280 = vmatpush1.xpose.msra.mxu0 %v277
    %281 = vmatprep.subr.mxu0 0.0
    %282 = vmatpush1.xpose.msra.mxu0 0.0
    %283 = vmatprep.subr.mxu0 0.0
    %284 = vmatpush1.xpose.msra.mxu0 0.0
    %285 = vmatprep.subr.mxu0 0.0
    %286 = vmatpush1.xpose.msra.mxu0 0.0
    %287 = vmatprep.subr.mxu0 0.0
    %288 = vmatpush1.xpose.msra.mxu0 0.0
    %289 = vmatprep.subr.mxu0 0.0
    %290 = vmatpush1.xpose.msra.mxu0 0.0
    %291 = vmatprep.subr.mxu0 0.0
    %292 = vmatpush1.xpose.msra.mxu0 0.0
    %293 = vmatprep.subr.mxu0 0.0
    %294 = vmatpush1.xpose.msra.mxu0 0.0
    %295 = vmatprep.subr.mxu0 0.0
    %296 = vmatpush1.xpose.msra.mxu0 0.0
    %297 = vmatprep.subr.mxu0 0.0
    %298 = vmatpush1.xpose.msra.mxu0 0.0
    %299 = vmatprep.subr.mxu0 0.0
    %300 = vmatpush1.xpose.msra.mxu0 0.0
    %301 = vmatprep.subr.mxu0 0.0
    %302 = vmatpush1.xpose.msra.mxu0 0.0
    %303 = vmatprep.subr.mxu0 0.0
    %304 = vmatpush1.xpose.msra.mxu0 0.0
    %305 = vmatprep.subr.mxu0 0.0
    %306 = vmatpush1.xpose.msra.mxu0 0.0
    %307 = vmatprep.subr.mxu0 0.0
    %308 = vmatpush1.xpose.msra.mxu0 0.0
    %309 = vmatprep.subr.mxu0 0.0
    %310 = vmatpush1.xpose.msra.mxu0 0.0
    %311 = vmatprep.subr.mxu0 0.0
    %312 = vmatpush1.xpose.msra.mxu0 0.0
    %313 = vmatprep.subr.mxu0 0.0
    %314 = vmatpush1.xpose.msra.mxu0 0.0
    %315 = vmatprep.subr.mxu0 0.0
    %316 = vmatpush1.xpose.msra.mxu0 0.0
    %317 = vmatprep.subr.mxu0 0.0
    %318 = vmatpush1.xpose.msra.mxu0 0.0
    %319 = vmatprep.subr.mxu0 0.0
    %320 = vmatpush1.xpose.msra.mxu0 0.0
    %321 = vmatprep.subr.mxu0 0.0
    %322 = vmatpush1.xpose.msra.mxu0 0.0
    %323 = vmatprep.subr.mxu0 0.0
    %324 = vmatpush1.xpose.msra.mxu0 0.0
    %325 = vmatprep.subr.mxu0 0.0
    %326 = vmatpush1.xpose.msra.mxu0 0.0
    %327 = vmatprep.subr.mxu0 0.0
    %328 = vmatpush1.xpose.msra.mxu0 0.0
    %329 = vmatprep.subr.mxu0 0.0
    %330 = vmatpush1.xpose.msra.mxu0 0.0
    %331 = vmatprep.subr.mxu0 0.0
    %332 = vmatpush1.xpose.msra.mxu0 0.0
    %333 = vmatprep.subr.mxu0 0.0
    %334 = vmatpush1.xpose.msra.mxu0 0.0
    %335 = vmatprep.subr.mxu0 0.0
    %336 = vmatpush1.xpose.msra.mxu0 0.0
    %337 = vmatprep.subr.mxu0 0.0
    %338 = vmatpush1.xpose.msra.mxu0 0.0
    %339 = vmatprep.subr.mxu0 0.0
    %340 = vmatpush1.xpose.msra.mxu0 0.0
    %341 = vmatprep.subr.mxu0 0.0
    %342 = vmatpush1.xpose.msra.mxu0 0.0
    %343 = vmatprep.mubr.f32.mxu0 0.0
    %344 = vmatmul.mubr.f32.gmra.mrb[0].mxu0 %v275
    %v345 = vpop.f32.mrb[0].mxu0
    %v346 = vadd.f32 %v263, %v345
    %v347 = vpop.f32.mrb[0].mxu0
    %348 = vdwg.mxu0
    %350 = vrot.lane.b32.xlu0 %v254, 64
    %v351 = vpop.permute.xlu0 %350
    %v353 = vsel %vm273, %v259, 0
    %v355 = vsel %vm273, %v351, 0
    %357 = vmatprep.subr.mxu0 0.0
    %358 = vmatpush1.xpose.msra.mxu0 %v355
    %359 = vmatprep.subr.mxu0 0.0
    %360 = vmatpush1.xpose.msra.mxu0 0.0
    %361 = vmatprep.subr.mxu0 0.0
    %362 = vmatpush1.xpose.msra.mxu0 0.0
    %363 = vmatprep.subr.mxu0 0.0
    %364 = vmatpush1.xpose.msra.mxu0 0.0
    %365 = vmatprep.subr.mxu0 0.0
    %366 = vmatpush1.xpose.msra.mxu0 0.0
    %367 = vmatprep.subr.mxu0 0.0
    %368 = vmatpush1.xpose.msra.mxu0 0.0
    %369 = vmatprep.subr.mxu0 0.0
    %370 = vmatpush1.xpose.msra.mxu0 0.0
    %371 = vmatprep.subr.mxu0 0.0
    %372 = vmatpush1.xpose.msra.mxu0 0.0
    %373 = vmatprep.subr.mxu0 0.0
    %374 = vmatpush1.xpose.msra.mxu0 0.0
    %375 = vmatprep.subr.mxu0 0.0
    %376 = vmatpush1.xpose.msra.mxu0 0.0
    %377 = vmatprep.subr.mxu0 0.0
    %378 = vmatpush1.xpose.msra.mxu0 0.0
    %379 = vmatprep.subr.mxu0 0.0
    %380 = vmatpush1.xpose.msra.mxu0 0.0
    %381 = vmatprep.subr.mxu0 0.0
    %382 = vmatpush1.xpose.msra.mxu0 0.0
    %383 = vmatprep.subr.mxu0 0.0
    %384 = vmatpush1.xpose.msra.mxu0 0.0
    %385 = vmatprep.subr.mxu0 0.0
    %386 = vmatpush1.xpose.msra.mxu0 0.0
    %387 = vmatprep.subr.mxu0 0.0
    %388 = vmatpush1.xpose.msra.mxu0 0.0
    %389 = vmatprep.subr.mxu0 0.0
    %390 = vmatpush1.xpose.msra.mxu0 0.0
    %391 = vmatprep.subr.mxu0 0.0
    %392 = vmatpush1.xpose.msra.mxu0 0.0
    %393 = vmatprep.subr.mxu0 0.0
    %394 = vmatpush1.xpose.msra.mxu0 0.0
    %395 = vmatprep.subr.mxu0 0.0
    %396 = vmatpush1.xpose.msra.mxu0 0.0
    %397 = vmatprep.subr.mxu0 0.0
    %398 = vmatpush1.xpose.msra.mxu0 0.0
    %399 = vmatprep.subr.mxu0 0.0
    %400 = vmatpush1.xpose.msra.mxu0 0.0
    %401 = vmatprep.subr.mxu0 0.0
    %402 = vmatpush1.xpose.msra.mxu0 0.0
    %403 = vmatprep.subr.mxu0 0.0
    %404 = vmatpush1.xpose.msra.mxu0 0.0
    %405 = vmatprep.subr.mxu0 0.0
    %406 = vmatpush1.xpose.msra.mxu0 0.0
    %407 = vmatprep.subr.mxu0 0.0
    %408 = vmatpush1.xpose.msra.mxu0 0.0
    %409 = vmatprep.subr.mxu0 0.0
    %410 = vmatpush1.xpose.msra.mxu0 0.0
    %411 = vmatprep.subr.mxu0 0.0
    %412 = vmatpush1.xpose.msra.mxu0 0.0
    %413 = vmatprep.subr.mxu0 0.0
    %414 = vmatpush1.xpose.msra.mxu0 0.0
    %415 = vmatprep.subr.mxu0 0.0
    %416 = vmatpush1.xpose.msra.mxu0 0.0
    %417 = vmatprep.subr.mxu0 0.0
    %418 = vmatpush1.xpose.msra.mxu0 0.0
    %419 = vmatprep.subr.mxu0 0.0
    %420 = vmatpush1.xpose.msra.mxu0 0.0
    %421 = vmatprep.mubr.f32.mxu0 0.0
    %422 = vmatmul.mubr.f32.gmra.mrb[0].mxu0 %v353
    %v423 = vpop.f32.mrb[0].mxu0
    %v424 = vadd.f32 %v267, %v423
    %v425 = vpop.f32.mrb[0].mxu0
    %426 = vdwg.mxu0
    %vm427 = vcmask 64512
    %v428 = vsel %vm427, %v346, -inf
    %429 = vmax.xlane.f32.xlu0 %v428
    %v430 = vpop.xlane.xlu0 %429
    %v431 = vsel %vm427, %v424, -inf
    %432 = vmax.xlane.f32.xlu0 %v431
    %v433 = vpop.xlane.xlu0 %432
    %v434 = vsub.f32 %v346, %v430
    %v435 = vsub.f32 %v424, %v433
    %v436 = vmul.f32 %v434, 1.442695
    %v437 = vpow.pop %v436
    %v438 = vmul.f32 %v435, 1.442695
    %v439 = vpow.pop %v438
    %v440 = vsel %vm427, %v437, 0.0
    %441 = vadd.xlane.f32.xlu0 %v440
    %v442 = vpop.xlane.xlu0 %441
    %v443 = vsel %vm427, %v439, 0.0
    %444 = vadd.xlane.f32.xlu0 %v443
    %v445 = vpop.xlane.xlu0 %444
    %v446 = vrcp.pop %v442
    %v447 = vrcp.pop %v445
    %v448 = vmul.f32 %v437, %v446
    %v449 = vmul.f32 %v439, %v447
    %v451 = vsel %vm427, %v448, 0
    %453 = vmatprep.subr.mxu0 0.0
    %454 = vmatpush1.msra.mxu0 %v250
    %455 = vmatprep.subr.mxu0 0.0
    %456 = vmatpush1.msra.mxu0 0.0
    %457 = vmatprep.subr.mxu0 0.0
    %458 = vmatpush1.msra.mxu0 0.0
    %459 = vmatprep.subr.mxu0 0.0
    %460 = vmatpush1.msra.mxu0 0.0
    %461 = vmatprep.subr.mxu0 0.0
    %462 = vmatpush1.msra.mxu0 0.0
    %463 = vmatprep.subr.mxu0 0.0
    %464 = vmatpush1.msra.mxu0 0.0
    %465 = vmatprep.subr.mxu0 0.0
    %466 = vmatpush1.msra.mxu0 0.0
    %467 = vmatprep.subr.mxu0 0.0
    %468 = vmatpush1.msra.mxu0 0.0
    %469 = vmatprep.subr.mxu0 0.0
    %470 = vmatpush1.msra.mxu0 0.0
    %471 = vmatprep.subr.mxu0 0.0
    %472 = vmatpush1.msra.mxu0 0.0
    %473 = vmatprep.subr.mxu0 0.0
    %474 = vmatpush1.msra.mxu0 0.0
    %475 = vmatprep.subr.mxu0 0.0
    %476 = vmatpush1.msra.mxu0 0.0
    %477 = vmatprep.subr.mxu0 0.0
    %478 = vmatpush1.msra.mxu0 0.0
    %479 = vmatprep.subr.mxu0 0.0
    %480 = vmatpush1.msra.mxu0 0.0
    %481 = vmatprep.subr.mxu0 0.0
    %482 = vmatpush1.msra.mxu0 0.0
    %483 = vmatprep.subr.mxu0 0.0
    %484 = vmatpush1.msra.mxu0 0.0
    %485 = vmatprep.subr.mxu0 0.0
    %486 = vmatpush1.msra.mxu0 0.0
    %487 = vmatprep.subr.mxu0 0.0
    %488 = vmatpush1.msra.mxu0 0.0
    %489 = vmatprep.subr.mxu0 0.0
    %490 = vmatpush1.msra.mxu0 0.0
    %491 = vmatprep.subr.mxu0 0.0
    %492 = vmatpush1.msra.mxu0 0.0
    %493 = vmatprep.subr.mxu0 0.0
    %494 = vmatpush1.msra.mxu0 0.0
    %495 = vmatprep.subr.mxu0 0.0
    %496 = vmatpush1.msra.mxu0 0.0
    %497 = vmatprep.subr.mxu0 0.0
    %498 = vmatpush1.msra.mxu0 0.0
    %499 = vmatprep.subr.mxu0 0.0
    %500 = vmatpush1.msra.mxu0 0.0
    %501 = vmatprep.subr.mxu0 0.0
    %502 = vmatpush1.msra.mxu0 0.0
    %503 = vmatprep.subr.mxu0 0.0
    %504 = vmatpush1.msra.mxu0 0.0
    %505 = vmatprep.subr.mxu0 0.0
    %506 = vmatpush1.msra.mxu0 0.0
    %507 = vmatprep.subr.mxu0 0.0
    %508 = vmatpush1.msra.mxu0 0.0
    %509 = vmatprep.subr.mxu0 0.0
    %510 = vmatpush1.msra.mxu0 0.0
    %511 = vmatprep.subr.mxu0 0.0
    %512 = vmatpush1.msra.mxu0 0.0
    %513 = vmatprep.subr.mxu0 0.0
    %514 = vmatpush1.msra.mxu0 0.0
    %515 = vmatprep.subr.mxu0 0.0
    %516 = vmatpush1.msra.mxu0 0.0
    %517 = vmatprep.mubr.f32.mxu0 0.0
    %518 = vmatmul.mubr.f32.gmra.mrb[0].mxu0 %v451
    %v519 = vpop.f32.mrb[0].mxu0
    %v520 = vadd.f32 0.0, %v519
    %v521 = vpop.f32.mrb[0].mxu0
    %522 = vdwg.mxu0
    %v524 = vsel %vm427, %v449, 0
    %526 = vmatprep.subr.mxu0 0.0
    %527 = vmatpush1.msra.mxu0 %v256
    %528 = vmatprep.subr.mxu0 0.0
    %529 = vmatpush1.msra.mxu0 0.0
    %530 = vmatprep.subr.mxu0 0.0
    %531 = vmatpush1.msra.mxu0 0.0
    %532 = vmatprep.subr.mxu0 0.0
    %533 = vmatpush1.msra.mxu0 0.0
    %534 = vmatprep.subr.mxu0 0.0
    %535 = vmatpush1.msra.mxu0 0.0
    %536 = vmatprep.subr.mxu0 0.0
    %537 = vmatpush1.msra.mxu0 0.0
    %538 = vmatprep.subr.mxu0 0.0
    %539 = vmatpush1.msra.mxu0 0.0
    %540 = vmatprep.subr.mxu0 0.0
    %541 = vmatpush1.msra.mxu0 0.0
    %542 = vmatprep.subr.mxu0 0.0
    %543 = vmatpush1.msra.mxu0 0.0
    %544 = vmatprep.subr.mxu0 0.0
    %545 = vmatpush1.msra.mxu0 0.0
    %546 = vmatprep.subr.mxu0 0.0
    %547 = vmatpush1.msra.mxu0 0.0
    %548 = vmatprep.subr.mxu0 0.0
    %549 = vmatpush1.msra.mxu0 0.0
    %550 = vmatprep.subr.mxu0 0.0
    %551 = vmatpush1.msra.mxu0 0.0
    %552 = vmatprep.subr.mxu0 0.0
    %553 = vmatpush1.msra.mxu0 0.0
    %554 = vmatprep.subr.mxu0 0.0
    %555 = vmatpush1.msra.mxu0 0.0
    %556 = vmatprep.subr.mxu0 0.0
    %557 = vmatpush1.msra.mxu0 0.0
    %558 = vmatprep.subr.mxu0 0.0
    %559 = vmatpush1.msra.mxu0 0.0
    %560 = vmatprep.subr.mxu0 0.0
    %561 = vmatpush1.msra.mxu0 0.0
    %562 = vmatprep.subr.mxu0 0.0
    %563 = vmatpush1.msra.mxu0 0.0
    %564 = vmatprep.subr.mxu0 0.0
    %565 = vmatpush1.msra.mxu0 0.0
    %566 = vmatprep.subr.mxu0 0.0
    %567 = vmatpush1.msra.mxu0 0.0
    %568 = vmatprep.subr.mxu0 0.0
    %569 = vmatpush1.msra.mxu0 0.0
    %570 = vmatprep.subr.mxu0 0.0
    %571 = vmatpush1.msra.mxu0 0.0
    %572 = vmatprep.subr.mxu0 0.0
    %573 = vmatpush1.msra.mxu0 0.0
    %574 = vmatprep.subr.mxu0 0.0
    %575 = vmatpush1.msra.mxu0 0.0
    %576 = vmatprep.subr.mxu0 0.0
    %577 = vmatpush1.msra.mxu0 0.0
    %578 = vmatprep.subr.mxu0 0.0
    %579 = vmatpush1.msra.mxu0 0.0
    %580 = vmatprep.subr.mxu0 0.0
    %581 = vmatpush1.msra.mxu0 0.0
    %582 = vmatprep.subr.mxu0 0.0
    %583 = vmatpush1.msra.mxu0 0.0
    %584 = vmatprep.subr.mxu0 0.0
    %585 = vmatpush1.msra.mxu0 0.0
    %586 = vmatprep.subr.mxu0 0.0
    %587 = vmatpush1.msra.mxu0 0.0
    %588 = vmatprep.subr.mxu0 0.0
    %589 = vmatpush1.msra.mxu0 0.0
    %590 = vmatprep.mubr.f32.mxu0 0.0
    %591 = vmatmul.mubr.f32.gmra.mrb[0].mxu0 %v524
    %v592 = vpop.f32.mrb[0].mxu0
    %v593 = vadd.f32 0.0, %v592
    %v594 = vpop.f32.mrb[0].mxu0
    %595 = vdwg.mxu0
    %596 = vrot.lane.b32.xlu0 %v258, 112
    %v597 = vpop.permute.xlu0 %596
    %598 = vrot.lane.b32.xlu0 %v248, 48
    %v599 = vpop.permute.xlu0 %598
    %v600 = vsel %vm273, %v597, 0
    %v602 = vsel %vm273, %v599, 0
    %604 = vmatprep.subr.mxu0 0.0
    %605 = vmatpush1.xpose.msra.mxu0 %v602
    %606 = vmatprep.subr.mxu0 0.0
    %607 = vmatpush1.xpose.msra.mxu0 0.0
    %608 = vmatprep.subr.mxu0 0.0
    %609 = vmatpush1.xpose.msra.mxu0 0.0
    %610 = vmatprep.subr.mxu0 0.0
    %611 = vmatpush1.xpose.msra.mxu0 0.0
    %612 = vmatprep.subr.mxu0 0.0
    %613 = vmatpush1.xpose.msra.mxu0 0.0
    %614 = vmatprep.subr.mxu0 0.0
    %615 = vmatpush1.xpose.msra.mxu0 0.0
    %616 = vmatprep.subr.mxu0 0.0
    %617 = vmatpush1.xpose.msra.mxu0 0.0
    %618 = vmatprep.subr.mxu0 0.0
    %619 = vmatpush1.xpose.msra.mxu0 0.0
    %620 = vmatprep.subr.mxu0 0.0
    %621 = vmatpush1.xpose.msra.mxu0 0.0
    %622 = vmatprep.subr.mxu0 0.0
    %623 = vmatpush1.xpose.msra.mxu0 0.0
    %624 = vmatprep.subr.mxu0 0.0
    %625 = vmatpush1.xpose.msra.mxu0 0.0
    %626 = vmatprep.subr.mxu0 0.0
    %627 = vmatpush1.xpose.msra.mxu0 0.0
    %628 = vmatprep.subr.mxu0 0.0
    %629 = vmatpush1.xpose.msra.mxu0 0.0
    %630 = vmatprep.subr.mxu0 0.0
    %631 = vmatpush1.xpose.msra.mxu0 0.0
    %632 = vmatprep.subr.mxu0 0.0
    %633 = vmatpush1.xpose.msra.mxu0 0.0
    %634 = vmatprep.subr.mxu0 0.0
    %635 = vmatpush1.xpose.msra.mxu0 0.0
    %636 = vmatprep.subr.mxu0 0.0
    %637 = vmatpush1.xpose.msra.mxu0 0.0
    %638 = vmatprep.subr.mxu0 0.0
    %639 = vmatpush1.xpose.msra.mxu0 0.0
    %640 = vmatprep.subr.mxu0 0.0
    %641 = vmatpush1.xpose.msra.mxu0 0.0
    %642 = vmatprep.subr.mxu0 0.0
    %643 = vmatpush1.xpose.msra.mxu0 0.0
    %644 = vmatprep.subr.mxu0 0.0
    %645 = vmatpush1.xpose.msra.mxu0 0.0
    %646 = vmatprep.subr.mxu0 0.0
    %647 = vmatpush1.xpose.msra.mxu0 0.0
    %648 = vmatprep.subr.mxu0 0.0
    %649 = vmatpush1.xpose.msra.mxu0 0.0
    %650 = vmatprep.subr.mxu0 0.0
    %651 = vmatpush1.xpose.msra.mxu0 0.0
    %652 = vmatprep.subr.mxu0 0.0
    %653 = vmatpush1.xpose.msra.mxu0 0.0
    %654 = vmatprep.subr.mxu0 0.0
    %655 = vmatpush1.xpose.msra.mxu0 0.0
    %656 = vmatprep.subr.mxu0 0.0
    %657 = vmatpush1.xpose.msra.mxu0 0.0
    %658 = vmatprep.subr.mxu0 0.0
    %659 = vmatpush1.xpose.msra.mxu0 0.0
    %660 = vmatprep.subr.mxu0 0.0
    %661 = vmatpush1.xpose.msra.mxu0 0.0
    %662 = vmatprep.subr.mxu0 0.0
    %663 = vmatpush1.xpose.msra.mxu0 0.0
    %664 = vmatprep.subr.mxu0 0.0
    %665 = vmatpush1.xpose.msra.mxu0 0.0
    %666 = vmatprep.subr.mxu0 0.0
    %667 = vmatpush1.xpose.msra.mxu0 0.0
    %668 = vmatprep.mubr.f32.mxu0 0.0
    %669 = vmatmul.mubr.f32.gmra.mrb[0].mxu0 %v600
    %v670 = vpop.f32.mrb[0].mxu0
    %v671 = vadd.f32 %v263, %v670
    %v672 = vpop.f32.mrb[0].mxu0
    %673 = vdwg.mxu0
    %674 = vrot.lane.b32.xlu0 %v259, 112
    %v675 = vpop.permute.xlu0 %674
    %676 = vrot.lane.b32.xlu0 %v254, 48
    %v677 = vpop.permute.xlu0 %676
    %v678 = vsel %vm273, %v675, 0
    %v680 = vsel %vm273, %v677, 0
    %682 = vmatprep.subr.mxu0 0.0
    %683 = vmatpush1.xpose.msra.mxu0 %v680
    %684 = vmatprep.subr.mxu0 0.0
    %685 = vmatpush1.xpose.msra.mxu0 0.0
    %686 = vmatprep.subr.mxu0 0.0
    %687 = vmatpush1.xpose.msra.mxu0 0.0
    %688 = vmatprep.subr.mxu0 0.0
    %689 = vmatpush1.xpose.msra.mxu0 0.0
    %690 = vmatprep.subr.mxu0 0.0
    %691 = vmatpush1.xpose.msra.mxu0 0.0
    %692 = vmatprep.subr.mxu0 0.0
    %693 = vmatpush1.xpose.msra.mxu0 0.0
    %694 = vmatprep.subr.mxu0 0.0
    %695 = vmatpush1.xpose.msra.mxu0 0.0
    %696 = vmatprep.subr.mxu0 0.0
    %697 = vmatpush1.xpose.msra.mxu0 0.0
    %698 = vmatprep.subr.mxu0 0.0
    %699 = vmatpush1.xpose.msra.mxu0 0.0
    %700 = vmatprep.subr.mxu0 0.0
    %701 = vmatpush1.xpose.msra.mxu0 0.0
    %702 = vmatprep.subr.mxu0 0.0
    %703 = vmatpush1.xpose.msra.mxu0 0.0
    %704 = vmatprep.subr.mxu0 0.0
    %705 = vmatpush1.xpose.msra.mxu0 0.0
    %706 = vmatprep.subr.mxu0 0.0
    %707 = vmatpush1.xpose.msra.mxu0 0.0
    %708 = vmatprep.subr.mxu0 0.0
    %709 = vmatpush1.xpose.msra.mxu0 0.0
    %710 = vmatprep.subr.mxu0 0.0
    %711 = vmatpush1.xpose.msra.mxu0 0.0
    %712 = vmatprep.subr.mxu0 0.0
    %713 = vmatpush1.xpose.msra.mxu0 0.0
    %714 = vmatprep.subr.mxu0 0.0
    %715 = vmatpush1.xpose.msra.mxu0 0.0
    %716 = vmatprep.subr.mxu0 0.0
    %717 = vmatpush1.xpose.msra.mxu0 0.0
    %718 = vmatprep.subr.mxu0 0.0
    %719 = vmatpush1.xpose.msra.mxu0 0.0
    %720 = vmatprep.subr.mxu0 0.0
    %721 = vmatpush1.xpose.msra.mxu0 0.0
    %722 = vmatprep.subr.mxu0 0.0
    %723 = vmatpush1.xpose.msra.mxu0 0.0
    %724 = vmatprep.subr.mxu0 0.0
    %725 = vmatpush1.xpose.msra.mxu0 0.0
    %726 = vmatprep.subr.mxu0 0.0
    %727 = vmatpush1.xpose.msra.mxu0 0.0
    %728 = vmatprep.subr.mxu0 0.0
    %729 = vmatpush1.xpose.msra.mxu0 0.0
    %730 = vmatprep.subr.mxu0 0.0
    %731 = vmatpush1.xpose.msra.mxu0 0.0
    %732 = vmatprep.subr.mxu0 0.0
    %733 = vmatpush1.xpose.msra.mxu0 0.0
    %734 = vmatprep.subr.mxu0 0.0
    %735 = vmatpush1.xpose.msra.mxu0 0.0
    %736 = vmatprep.subr.mxu0 0.0
    %737 = vmatpush1.xpose.msra.mxu0 0.0
    %738 = vmatprep.subr.mxu0 0.0
    %739 = vmatpush1.xpose.msra.mxu0 0.0
    %740 = vmatprep.subr.mxu0 0.0
    %741 = vmatpush1.xpose.msra.mxu0 0.0
    %742 = vmatprep.subr.mxu0 0.0
    %743 = vmatpush1.xpose.msra.mxu0 0.0
    %744 = vmatprep.subr.mxu0 0.0
    %745 = vmatpush1.xpose.msra.mxu0 0.0
    %746 = vmatprep.mubr.f32.mxu0 0.0
    %747 = vmatmul.mubr.f32.gmra.mrb[0].mxu0 %v678
    %v748 = vpop.f32.mrb[0].mxu0
    %v749 = vadd.f32 %v267, %v748
    %v750 = vpop.f32.mrb[0].mxu0
    %751 = vdwg.mxu0
    %v752 = vsel %vm427, %v671, -inf
    %753 = vmax.xlane.f32.xlu0 %v752
    %v754 = vpop.xlane.xlu0 %753
    %v755 = vsel %vm427, %v749, -inf
    %756 = vmax.xlane.f32.xlu0 %v755
    %v757 = vpop.xlane.xlu0 %756
    %v758 = vsub.f32 %v671, %v754
    %v759 = vsub.f32 %v749, %v757
    %v760 = vmul.f32 %v758, 1.442695
    %v761 = vpow.pop %v760
    %v762 = vmul.f32 %v759, 1.442695
    %v763 = vpow.pop %v762
    %v764 = vsel %vm427, %v761, 0.0
    %765 = vadd.xlane.f32.xlu0 %v764
    %v766 = vpop.xlane.xlu0 %765
    %v767 = vsel %vm427, %v763, 0.0
    %768 = vadd.xlane.f32.xlu0 %v767
    %v769 = vpop.xlane.xlu0 %768
    %v770 = vrcp.pop %v766
    %v771 = vrcp.pop %v769
    %v772 = vmul.f32 %v761, %v770
    %v773 = vmul.f32 %v763, %v771
    %775 = vrot.lane.b32.xlu0 %v250, 112
    %v776 = vpop.permute.xlu0 %775
    %v779 = vsel %vm427, %v772, 0
    %781 = vmatprep.subr.mxu0 0.0
    %782 = vmatpush1.msra.mxu0 %v776
    %783 = vmatprep.subr.mxu0 0.0
    %784 = vmatpush1.msra.mxu0 0.0
    %785 = vmatprep.subr.mxu0 0.0
    %786 = vmatpush1.msra.mxu0 0.0
    %787 = vmatprep.subr.mxu0 0.0
    %788 = vmatpush1.msra.mxu0 0.0
    %789 = vmatprep.subr.mxu0 0.0
    %790 = vmatpush1.msra.mxu0 0.0
    %791 = vmatprep.subr.mxu0 0.0
    %792 = vmatpush1.msra.mxu0 0.0
    %793 = vmatprep.subr.mxu0 0.0
    %794 = vmatpush1.msra.mxu0 0.0
    %795 = vmatprep.subr.mxu0 0.0
    %796 = vmatpush1.msra.mxu0 0.0
    %797 = vmatprep.subr.mxu0 0.0
    %798 = vmatpush1.msra.mxu0 0.0
    %799 = vmatprep.subr.mxu0 0.0
    %800 = vmatpush1.msra.mxu0 0.0
    %801 = vmatprep.subr.mxu0 0.0
    %802 = vmatpush1.msra.mxu0 0.0
    %803 = vmatprep.subr.mxu0 0.0
    %804 = vmatpush1.msra.mxu0 0.0
    %805 = vmatprep.subr.mxu0 0.0
    %806 = vmatpush1.msra.mxu0 0.0
    %807 = vmatprep.subr.mxu0 0.0
    %808 = vmatpush1.msra.mxu0 0.0
    %809 = vmatprep.subr.mxu0 0.0
    %810 = vmatpush1.msra.mxu0 0.0
    %811 = vmatprep.subr.mxu0 0.0
    %812 = vmatpush1.msra.mxu0 0.0
    %813 = vmatprep.subr.mxu0 0.0
    %814 = vmatpush1.msra.mxu0 0.0
    %815 = vmatprep.subr.mxu0 0.0
    %816 = vmatpush1.msra.mxu0 0.0
    %817 = vmatprep.subr.mxu0 0.0
    %818 = vmatpush1.msra.mxu0 0.0
    %819 = vmatprep.subr.mxu0 0.0
    %820 = vmatpush1.msra.mxu0 0.0
    %821 = vmatprep.subr.mxu0 0.0
    %822 = vmatpush1.msra.mxu0 0.0
    %823 = vmatprep.subr.mxu0 0.0
    %824 = vmatpush1.msra.mxu0 0.0
    %825 = vmatprep.subr.mxu0 0.0
    %826 = vmatpush1.msra.mxu0 0.0
    %827 = vmatprep.subr.mxu0 0.0
    %828 = vmatpush1.msra.mxu0 0.0
    %829 = vmatprep.subr.mxu0 0.0
    %830 = vmatpush1.msra.mxu0 0.0
    %831 = vmatprep.subr.mxu0 0.0
    %832 = vmatpush1.msra.mxu0 0.0
    %833 = vmatprep.subr.mxu0 0.0
    %834 = vmatpush1.msra.mxu0 0.0
    %835 = vmatprep.subr.mxu0 0.0
    %836 = vmatpush1.msra.mxu0 0.0
    %837 = vmatprep.subr.mxu0 0.0
    %838 = vmatpush1.msra.mxu0 0.0
    %839 = vmatprep.subr.mxu0 0.0
    %840 = vmatpush1.msra.mxu0 0.0
    %841 = vmatprep.subr.mxu0 0.0
    %842 = vmatpush1.msra.mxu0 0.0
    %843 = vmatprep.subr.mxu0 0.0
    %844 = vmatpush1.msra.mxu0 0.0
    %845 = vmatprep.mubr.f32.mxu0 0.0
    %846 = vmatmul.mubr.f32.gmra.mrb[0].mxu0 %v779
    %v847 = vpop.f32.mrb[0].mxu0
    %v848 = vadd.f32 0.0, %v847
    %v849 = vpop.f32.mrb[0].mxu0
    %850 = vdwg.mxu0
    %852 = vrot.lane.b32.xlu0 %v256, 112
    %v853 = vpop.permute.xlu0 %852
    %v856 = vsel %vm427, %v773, 0
    %858 = vmatprep.subr.mxu0 0.0
    %859 = vmatpush1.msra.mxu0 %v853
    %860 = vmatprep.subr.mxu0 0.0
    %861 = vmatpush1.msra.mxu0 0.0
    %862 = vmatprep.subr.mxu0 0.0
    %863 = vmatpush1.msra.mxu0 0.0
    %864 = vmatprep.subr.mxu0 0.0
    %865 = vmatpush1.msra.mxu0 0.0
    %866 = vmatprep.subr.mxu0 0.0
    %867 = vmatpush1.msra.mxu0 0.0
    %868 = vmatprep.subr.mxu0 0.0
    %869 = vmatpush1.msra.mxu0 0.0
    %870 = vmatprep.subr.mxu0 0.0
    %871 = vmatpush1.msra.mxu0 0.0
    %872 = vmatprep.subr.mxu0 0.0
    %873 = vmatpush1.msra.mxu0 0.0
    %874 = vmatprep.subr.mxu0 0.0
    %875 = vmatpush1.msra.mxu0 0.0
    %876 = vmatprep.subr.mxu0 0.0
    %877 = vmatpush1.msra.mxu0 0.0
    %878 = vmatprep.subr.mxu0 0.0
    %879 = vmatpush1.msra.mxu0 0.0
    %880 = vmatprep.subr.mxu0 0.0
    %881 = vmatpush1.msra.mxu0 0.0
    %882 = vmatprep.subr.mxu0 0.0
    %883 = vmatpush1.msra.mxu0 0.0
    %884 = vmatprep.subr.mxu0 0.0
    %885 = vmatpush1.msra.mxu0 0.0
    %886 = vmatprep.subr.mxu0 0.0
    %887 = vmatpush1.msra.mxu0 0.0
    %888 = vmatprep.subr.mxu0 0.0
    %889 = vmatpush1.msra.mxu0 0.0
    %890 = vmatprep.subr.mxu0 0.0
    %891 = vmatpush1.msra.mxu0 0.0
    %892 = vmatprep.subr.mxu0 0.0
    %893 = vmatpush1.msra.mxu0 0.0
    %894 = vmatprep.subr.mxu0 0.0
    %895 = vmatpush1.msra.mxu0 0.0
    %896 = vmatprep.subr.mxu0 0.0
    %897 = vmatpush1.msra.mxu0 0.0
    %898 = vmatprep.subr.mxu0 0.0
    %899 = vmatpush1.msra.mxu0 0.0
    %900 = vmatprep.subr.mxu0 0.0
    %901 = vmatpush1.msra.mxu0 0.0
    %902 = vmatprep.subr.mxu0 0.0
    %903 = vmatpush1.msra.mxu0 0.0
    %904 = vmatprep.subr.mxu0 0.0
    %905 = vmatpush1.msra.mxu0 0.0
    %906 = vmatprep.subr.mxu0 0.0
    %907 = vmatpush1.msra.mxu0 0.0
    %908 = vmatprep.subr.mxu0 0.0
    %909 = vmatpush1.msra.mxu0 0.0
    %910 = vmatprep.subr.mxu0 0.0
    %911 = vmatpush1.msra.mxu0 0.0
    %912 = vmatprep.subr.mxu0 0.0
    %913 = vmatpush1.msra.mxu0 0.0
    %914 = vmatprep.subr.mxu0 0.0
    %915 = vmatpush1.msra.mxu0 0.0
    %916 = vmatprep.subr.mxu0 0.0
    %917 = vmatpush1.msra.mxu0 0.0
    %918 = vmatprep.subr.mxu0 0.0
    %919 = vmatpush1.msra.mxu0 0.0
    %920 = vmatprep.subr.mxu0 0.0
    %921 = vmatpush1.msra.mxu0 0.0
    %922 = vmatprep.mubr.f32.mxu0 0.0
    %923 = vmatmul.mubr.f32.gmra.mrb[0].mxu0 %v856
    %v924 = vpop.f32.mrb[0].mxu0
    %v925 = vadd.f32 0.0, %v924
    %v926 = vpop.f32.mrb[0].mxu0
    %927 = vdwg.mxu0
    %928 = vrot.lane.b32.xlu0 %v258, 96
    %v929 = vpop.permute.xlu0 %928
    %930 = vrot.lane.b32.xlu0 %v248, 32
    %v931 = vpop.permute.xlu0 %930
    %v932 = vsel %vm273, %v929, 0
    %v934 = vsel %vm273, %v931, 0
    %936 = vmatprep.subr.mxu0 0.0
    %937 = vmatpush1.xpose.msra.mxu0 %v934
    %938 = vmatprep.subr.mxu0 0.0
    %939 = vmatpush1.xpose.msra.mxu0 0.0
    %940 = vmatprep.subr.mxu0 0.0
    %941 = vmatpush1.xpose.msra.mxu0 0.0
    %942 = vmatprep.subr.mxu0 0.0
    %943 = vmatpush1.xpose.msra.mxu0 0.0
    %944 = vmatprep.subr.mxu0 0.0
    %945 = vmatpush1.xpose.msra.mxu0 0.0
    %946 = vmatprep.subr.mxu0 0.0
    %947 = vmatpush1.xpose.msra.mxu0 0.0
    %948 = vmatprep.subr.mxu0 0.0
    %949 = vmatpush1.xpose.msra.mxu0 0.0
    %950 = vmatprep.subr.mxu0 0.0
    %951 = vmatpush1.xpose.msra.mxu0 0.0
    %952 = vmatprep.subr.mxu0 0.0
    %953 = vmatpush1.xpose.msra.mxu0 0.0
    %954 = vmatprep.subr.mxu0 0.0
    %955 = vmatpush1.xpose.msra.mxu0 0.0
    %956 = vmatprep.subr.mxu0 0.0
    %957 = vmatpush1.xpose.msra.mxu0 0.0
    %958 = vmatprep.subr.mxu0 0.0
    %959 = vmatpush1.xpose.msra.mxu0 0.0
    %960 = vmatprep.subr.mxu0 0.0
    %961 = vmatpush1.xpose.msra.mxu0 0.0
    %962 = vmatprep.subr.mxu0 0.0
    %963 = vmatpush1.xpose.msra.mxu0 0.0
    %964 = vmatprep.subr.mxu0 0.0
    %965 = vmatpush1.xpose.msra.mxu0 0.0
    %966 = vmatprep.subr.mxu0 0.0
    %967 = vmatpush1.xpose.msra.mxu0 0.0
    %968 = vmatprep.subr.mxu0 0.0
    %969 = vmatpush1.xpose.msra.mxu0 0.0
    %970 = vmatprep.subr.mxu0 0.0
    %971 = vmatpush1.xpose.msra.mxu0 0.0
    %972 = vmatprep.subr.mxu0 0.0
    %973 = vmatpush1.xpose.msra.mxu0 0.0
    %974 = vmatprep.subr.mxu0 0.0
    %975 = vmatpush1.xpose.msra.mxu0 0.0
    %976 = vmatprep.subr.mxu0 0.0
    %977 = vmatpush1.xpose.msra.mxu0 0.0
    %978 = vmatprep.subr.mxu0 0.0
    %979 = vmatpush1.xpose.msra.mxu0 0.0
    %980 = vmatprep.subr.mxu0 0.0
    %981 = vmatpush1.xpose.msra.mxu0 0.0
    %982 = vmatprep.subr.mxu0 0.0
    %983 = vmatpush1.xpose.msra.mxu0 0.0
    %984 = vmatprep.subr.mxu0 0.0
    %985 = vmatpush1.xpose.msra.mxu0 0.0
    %986 = vmatprep.subr.mxu0 0.0
    %987 = vmatpush1.xpose.msra.mxu0 0.0
    %988 = vmatprep.subr.mxu0 0.0
    %989 = vmatpush1.xpose.msra.mxu0 0.0
    %990 = vmatprep.subr.mxu0 0.0
    %991 = vmatpush1.xpose.msra.mxu0 0.0
    %992 = vmatprep.subr.mxu0 0.0
    %993 = vmatpush1.xpose.msra.mxu0 0.0
    %994 = vmatprep.subr.mxu0 0.0
    %995 = vmatpush1.xpose.msra.mxu0 0.0
    %996 = vmatprep.subr.mxu0 0.0
    %997 = vmatpush1.xpose.msra.mxu0 0.0
    %998 = vmatprep.subr.mxu0 0.0
    %999 = vmatpush1.xpose.msra.mxu0 0.0
    %1000 = vmatprep.mubr.f32.mxu0 0.0
    %1001 = vmatmul.mubr.f32.gmra.mrb[0].mxu0 %v932
    %v1002 = vpop.f32.mrb[0].mxu0
    %v1003 = vadd.f32 %v263, %v1002
    %v1004 = vpop.f32.mrb[0].mxu0
    %1005 = vdwg.mxu0
    %1006 = vrot.lane.b32.xlu0 %v259, 96
    %v1007 = vpop.permute.xlu0 %1006
    %1008 = vrot.lane.b32.xlu0 %v254, 32
    %v1009 = vpop.permute.xlu0 %1008
    %v1010 = vsel %vm273, %v1007, 0
    %v1012 = vsel %vm273, %v1009, 0
    %1014 = vmatprep.subr.mxu0 0.0
    %1015 = vmatpush1.xpose.msra.mxu0 %v1012
    %1016 = vmatprep.subr.mxu0 0.0
    %1017 = vmatpush1.xpose.msra.mxu0 0.0
    %1018 = vmatprep.subr.mxu0 0.0
    %1019 = vmatpush1.xpose.msra.mxu0 0.0
    %1020 = vmatprep.subr.mxu0 0.0
    %1021 = vmatpush1.xpose.msra.mxu0 0.0
    %1022 = vmatprep.subr.mxu0 0.0
    %1023 = vmatpush1.xpose.msra.mxu0 0.0
    %1024 = vmatprep.subr.mxu0 0.0
    %1025 = vmatpush1.xpose.msra.mxu0 0.0
    %1026 = vmatprep.subr.mxu0 0.0
    %1027 = vmatpush1.xpose.msra.mxu0 0.0
    %1028 = vmatprep.subr.mxu0 0.0
    %1029 = vmatpush1.xpose.msra.mxu0 0.0
    %1030 = vmatprep.subr.mxu0 0.0
    %1031 = vmatpush1.xpose.msra.mxu0 0.0
    %1032 = vmatprep.subr.mxu0 0.0
    %1033 = vmatpush1.xpose.msra.mxu0 0.0
    %1034 = vmatprep.subr.mxu0 0.0
    %1035 = vmatpush1.xpose.msra.mxu0 0.0
    %1036 = vmatprep.subr.mxu0 0.0
    %1037 = vmatpush1.xpose.msra.mxu0 0.0
    %1038 = vmatprep.subr.mxu0 0.0
    %1039 = vmatpush1.xpose.msra.mxu0 0.0
    %1040 = vmatprep.subr.mxu0 0.0
    %1041 = vmatpush1.xpose.msra.mxu0 0.0
    %1042 = vmatprep.subr.mxu0 0.0
    %1043 = vmatpush1.xpose.msra.mxu0 0.0
    %1044 = vmatprep.subr.mxu0 0.0
    %1045 = vmatpush1.xpose.msra.mxu0 0.0
    %1046 = vmatprep.subr.mxu0 0.0
    %1047 = vmatpush1.xpose.msra.mxu0 0.0
    %1048 = vmatprep.subr.mxu0 0.0
    %1049 = vmatpush1.xpose.msra.mxu0 0.0
    %1050 = vmatprep.subr.mxu0 0.0
    %1051 = vmatpush1.xpose.msra.mxu0 0.0
    %1052 = vmatprep.subr.mxu0 0.0
    %1053 = vmatpush1.xpose.msra.mxu0 0.0
    %1054 = vmatprep.subr.mxu0 0.0
    %1055 = vmatpush1.xpose.msra.mxu0 0.0
    %1056 = vmatprep.subr.mxu0 0.0
    %1057 = vmatpush1.xpose.msra.mxu0 0.0
    %1058 = vmatprep.subr.mxu0 0.0
    %1059 = vmatpush1.xpose.msra.mxu0 0.0
    %1060 = vmatprep.subr.mxu0 0.0
    %1061 = vmatpush1.xpose.msra.mxu0 0.0
    %1062 = vmatprep.subr.mxu0 0.0
    %1063 = vmatpush1.xpose.msra.mxu0 0.0
    %1064 = vmatprep.subr.mxu0 0.0
    %1065 = vmatpush1.xpose.msra.mxu0 0.0
    %1066 = vmatprep.subr.mxu0 0.0
    %1067 = vmatpush1.xpose.msra.mxu0 0.0
    %1068 = vmatprep.subr.mxu0 0.0
    %1069 = vmatpush1.xpose.msra.mxu0 0.0
    %1070 = vmatprep.subr.mxu0 0.0
    %1071 = vmatpush1.xpose.msra.mxu0 0.0
    %1072 = vmatprep.subr.mxu0 0.0
    %1073 = vmatpush1.xpose.msra.mxu0 0.0
    %1074 = vmatprep.subr.mxu0 0.0
    %1075 = vmatpush1.xpose.msra.mxu0 0.0
    %1076 = vmatprep.subr.mxu0 0.0
    %1077 = vmatpush1.xpose.msra.mxu0 0.0
    %1078 = vmatprep.mubr.f32.mxu0 0.0
    %1079 = vmatmul.mubr.f32.gmra.mrb[0].mxu0 %v1010
    %v1080 = vpop.f32.mrb[0].mxu0
    %v1081 = vadd.f32 %v267, %v1080
    %v1082 = vpop.f32.mrb[0].mxu0
    %1083 = vdwg.mxu0
    %v1084 = vsel %vm427, %v1003, -inf
    %1085 = vmax.xlane.f32.xlu0 %v1084
    %v1086 = vpop.xlane.xlu0 %1085
    %v1087 = vsel %vm427, %v1081, -inf
    %1088 = vmax.xlane.f32.xlu0 %v1087
    %v1089 = vpop.xlane.xlu0 %1088
    %v1090 = vsub.f32 %v1003, %v1086
    %v1091 = vsub.f32 %v1081, %v1089
    %v1092 = vmul.f32 %v1090, 1.442695
    %v1093 = vpow.pop %v1092
    %v1094 = vmul.f32 %v1091, 1.442695
    %v1095 = vpow.pop %v1094
    %v1096 = vsel %vm427, %v1093, 0.0
    %1097 = vadd.xlane.f32.xlu0 %v1096
    %v1098 = vpop.xlane.xlu0 %1097
    %v1099 = vsel %vm427, %v1095, 0.0
    %1100 = vadd.xlane.f32.xlu0 %v1099
    %v1101 = vpop.xlane.xlu0 %1100
    %v1102 = vrcp.pop %v1098
    %v1103 = vrcp.pop %v1101
    %v1104 = vmul.f32 %v1093, %v1102
    %v1105 = vmul.f32 %v1095, %v1103
    %1106 = vrot.lane.b32.xlu0 %v250, 96
    %v1107 = vpop.permute.xlu0 %1106
    %v1110 = vsel %vm427, %v1104, 0
    %1112 = vmatprep.subr.mxu0 0.0
    %1113 = vmatpush1.msra.mxu0 %v1107
    %1114 = vmatprep.subr.mxu0 0.0
    %1115 = vmatpush1.msra.mxu0 0.0
    %1116 = vmatprep.subr.mxu0 0.0
    %1117 = vmatpush1.msra.mxu0 0.0
    %1118 = vmatprep.subr.mxu0 0.0
    %1119 = vmatpush1.msra.mxu0 0.0
    %1120 = vmatprep.subr.mxu0 0.0
    %1121 = vmatpush1.msra.mxu0 0.0
    %1122 = vmatprep.subr.mxu0 0.0
    %1123 = vmatpush1.msra.mxu0 0.0
    %1124 = vmatprep.subr.mxu0 0.0
    %1125 = vmatpush1.msra.mxu0 0.0
    %1126 = vmatprep.subr.mxu0 0.0
    %1127 = vmatpush1.msra.mxu0 0.0
    %1128 = vmatprep.subr.mxu0 0.0
    %1129 = vmatpush1.msra.mxu0 0.0
    %1130 = vmatprep.subr.mxu0 0.0
    %1131 = vmatpush1.msra.mxu0 0.0
    %1132 = vmatprep.subr.mxu0 0.0
    %1133 = vmatpush1.msra.mxu0 0.0
    %1134 = vmatprep.subr.mxu0 0.0
    %1135 = vmatpush1.msra.mxu0 0.0
    %1136 = vmatprep.subr.mxu0 0.0
    %1137 = vmatpush1.msra.mxu0 0.0
    %1138 = vmatprep.subr.mxu0 0.0
    %1139 = vmatpush1.msra.mxu0 0.0
    %1140 = vmatprep.subr.mxu0 0.0
    %1141 = vmatpush1.msra.mxu0 0.0
    %1142 = vmatprep.subr.mxu0 0.0
    %1143 = vmatpush1.msra.mxu0 0.0
    %1144 = vmatprep.subr.mxu0 0.0
    %1145 = vmatpush1.msra.mxu0 0.0
    %1146 = vmatprep.subr.mxu0 0.0
    %1147 = vmatpush1.msra.mxu0 0.0
    %1148 = vmatprep.subr.mxu0 0.0
    %1149 = vmatpush1.msra.mxu0 0.0
    %1150 = vmatprep.subr.mxu0 0.0
    %1151 = vmatpush1.msra.mxu0 0.0
    %1152 = vmatprep.subr.mxu0 0.0
    %1153 = vmatpush1.msra.mxu0 0.0
    %1154 = vmatprep.subr.mxu0 0.0
    %1155 = vmatpush1.msra.mxu0 0.0
    %1156 = vmatprep.subr.mxu0 0.0
    %1157 = vmatpush1.msra.mxu0 0.0
    %1158 = vmatprep.subr.mxu0 0.0
    %1159 = vmatpush1.msra.mxu0 0.0
    %1160 = vmatprep.subr.mxu0 0.0
    %1161 = vmatpush1.msra.mxu0 0.0
    %1162 = vmatprep.subr.mxu0 0.0
    %1163 = vmatpush1.msra.mxu0 0.0
    %1164 = vmatprep.subr.mxu0 0.0
    %1165 = vmatpush1.msra.mxu0 0.0
    %1166 = vmatprep.subr.mxu0 0.0
    %1167 = vmatpush1.msra.mxu0 0.0
    %1168 = vmatprep.subr.mxu0 0.0
    %1169 = vmatpush1.msra.mxu0 0.0
    %1170 = vmatprep.subr.mxu0 0.0
    %1171 = vmatpush1.msra.mxu0 0.0
    %1172 = vmatprep.subr.mxu0 0.0
    %1173 = vmatpush1.msra.mxu0 0.0
    %1174 = vmatprep.subr.mxu0 0.0
    %1175 = vmatpush1.msra.mxu0 0.0
    %1176 = vmatprep.mubr.f32.mxu0 0.0
    %1177 = vmatmul.mubr.f32.gmra.mrb[0].mxu0 %v1110
    %v1178 = vpop.f32.mrb[0].mxu0
    %v1179 = vadd.f32 0.0, %v1178
    %v1180 = vpop.f32.mrb[0].mxu0
    %1181 = vdwg.mxu0
    %1182 = vrot.lane.b32.xlu0 %v256, 96
    %v1183 = vpop.permute.xlu0 %1182
    %v1186 = vsel %vm427, %v1105, 0
    %1188 = vmatprep.subr.mxu0 0.0
    %1189 = vmatpush1.msra.mxu0 %v1183
    %1190 = vmatprep.subr.mxu0 0.0
    %1191 = vmatpush1.msra.mxu0 0.0
    %1192 = vmatprep.subr.mxu0 0.0
    %1193 = vmatpush1.msra.mxu0 0.0
    %1194 = vmatprep.subr.mxu0 0.0
    %1195 = vmatpush1.msra.mxu0 0.0
    %1196 = vmatprep.subr.mxu0 0.0
    %1197 = vmatpush1.msra.mxu0 0.0
    %1198 = vmatprep.subr.mxu0 0.0
    %1199 = vmatpush1.msra.mxu0 0.0
    %1200 = vmatprep.subr.mxu0 0.0
    %1201 = vmatpush1.msra.mxu0 0.0
    %1202 = vmatprep.subr.mxu0 0.0
    %1203 = vmatpush1.msra.mxu0 0.0
    %1204 = vmatprep.subr.mxu0 0.0
    %1205 = vmatpush1.msra.mxu0 0.0
    %1206 = vmatprep.subr.mxu0 0.0
    %1207 = vmatpush1.msra.mxu0 0.0
    %1208 = vmatprep.subr.mxu0 0.0
    %1209 = vmatpush1.msra.mxu0 0.0
    %1210 = vmatprep.subr.mxu0 0.0
    %1211 = vmatpush1.msra.mxu0 0.0
    %1212 = vmatprep.subr.mxu0 0.0
    %1213 = vmatpush1.msra.mxu0 0.0
    %1214 = vmatprep.subr.mxu0 0.0
    %1215 = vmatpush1.msra.mxu0 0.0
    %1216 = vmatprep.subr.mxu0 0.0
    %1217 = vmatpush1.msra.mxu0 0.0
    %1218 = vmatprep.subr.mxu0 0.0
    %1219 = vmatpush1.msra.mxu0 0.0
    %1220 = vmatprep.subr.mxu0 0.0
    %1221 = vmatpush1.msra.mxu0 0.0
    %1222 = vmatprep.subr.mxu0 0.0
    %1223 = vmatpush1.msra.mxu0 0.0
    %1224 = vmatprep.subr.mxu0 0.0
    %1225 = vmatpush1.msra.mxu0 0.0
    %1226 = vmatprep.subr.mxu0 0.0
    %1227 = vmatpush1.msra.mxu0 0.0
    %1228 = vmatprep.subr.mxu0 0.0
    %1229 = vmatpush1.msra.mxu0 0.0
    %1230 = vmatprep.subr.mxu0 0.0
    %1231 = vmatpush1.msra.mxu0 0.0
    %1232 = vmatprep.subr.mxu0 0.0
    %1233 = vmatpush1.msra.mxu0 0.0
    %1234 = vmatprep.subr.mxu0 0.0
    %1235 = vmatpush1.msra.mxu0 0.0
    %1236 = vmatprep.subr.mxu0 0.0
    %1237 = vmatpush1.msra.mxu0 0.0
    %1238 = vmatprep.subr.mxu0 0.0
    %1239 = vmatpush1.msra.mxu0 0.0
    %1240 = vmatprep.subr.mxu0 0.0
    %1241 = vmatpush1.msra.mxu0 0.0
    %1242 = vmatprep.subr.mxu0 0.0
    %1243 = vmatpush1.msra.mxu0 0.0
    %1244 = vmatprep.subr.mxu0 0.0
    %1245 = vmatpush1.msra.mxu0 0.0
    %1246 = vmatprep.subr.mxu0 0.0
    %1247 = vmatpush1.msra.mxu0 0.0
    %1248 = vmatprep.subr.mxu0 0.0
    %1249 = vmatpush1.msra.mxu0 0.0
    %1250 = vmatprep.subr.mxu0 0.0
    %1251 = vmatpush1.msra.mxu0 0.0
    %1252 = vmatprep.mubr.f32.mxu0 0.0
    %1253 = vmatmul.mubr.f32.gmra.mrb[0].mxu0 %v1186
    %v1254 = vpop.f32.mrb[0].mxu0
    %v1255 = vadd.f32 0.0, %v1254
    %v1256 = vpop.f32.mrb[0].mxu0
    %1257 = vdwg.mxu0
    %1258 = vrot.lane.b32.xlu0 %v258, 80
    %v1259 = vpop.permute.xlu0 %1258
    %1260 = vrot.lane.b32.xlu0 %v248, 16
    %v1261 = vpop.permute.xlu0 %1260
    %v1262 = vsel %vm273, %v1259, 0
    %v1264 = vsel %vm273, %v1261, 0
    %1266 = vmatprep.subr.mxu0 0.0
    %1267 = vmatpush1.xpose.msra.mxu0 %v1264
    %1268 = vmatprep.subr.mxu0 0.0
    %1269 = vmatpush1.xpose.msra.mxu0 0.0
    %1270 = vmatprep.subr.mxu0 0.0
    %1271 = vmatpush1.xpose.msra.mxu0 0.0
    %1272 = vmatprep.subr.mxu0 0.0
    %1273 = vmatpush1.xpose.msra.mxu0 0.0
    %1274 = vmatprep.subr.mxu0 0.0
    %1275 = vmatpush1.xpose.msra.mxu0 0.0
    %1276 = vmatprep.subr.mxu0 0.0
    %1277 = vmatpush1.xpose.msra.mxu0 0.0
    %1278 = vmatprep.subr.mxu0 0.0
    %1279 = vmatpush1.xpose.msra.mxu0 0.0
    %1280 = vmatprep.subr.mxu0 0.0
    %1281 = vmatpush1.xpose.msra.mxu0 0.0
    %1282 = vmatprep.subr.mxu0 0.0
    %1283 = vmatpush1.xpose.msra.mxu0 0.0
    %1284 = vmatprep.subr.mxu0 0.0
    %1285 = vmatpush1.xpose.msra.mxu0 0.0
    %1286 = vmatprep.subr.mxu0 0.0
    %1287 = vmatpush1.xpose.msra.mxu0 0.0
    %1288 = vmatprep.subr.mxu0 0.0
    %1289 = vmatpush1.xpose.msra.mxu0 0.0
    %1290 = vmatprep.subr.mxu0 0.0
    %1291 = vmatpush1.xpose.msra.mxu0 0.0
    %1292 = vmatprep.subr.mxu0 0.0
    %1293 = vmatpush1.xpose.msra.mxu0 0.0
    %1294 = vmatprep.subr.mxu0 0.0
    %1295 = vmatpush1.xpose.msra.mxu0 0.0
    %1296 = vmatprep.subr.mxu0 0.0
    %1297 = vmatpush1.xpose.msra.mxu0 0.0
    %1298 = vmatprep.subr.mxu0 0.0
    %1299 = vmatpush1.xpose.msra.mxu0 0.0
    %1300 = vmatprep.subr.mxu0 0.0
    %1301 = vmatpush1.xpose.msra.mxu0 0.0
    %1302 = vmatprep.subr.mxu0 0.0
    %1303 = vmatpush1.xpose.msra.mxu0 0.0
    %1304 = vmatprep.subr.mxu0 0.0
    %1305 = vmatpush1.xpose.msra.mxu0 0.0
    %1306 = vmatprep.subr.mxu0 0.0
    %1307 = vmatpush1.xpose.msra.mxu0 0.0
    %1308 = vmatprep.subr.mxu0 0.0
    %1309 = vmatpush1.xpose.msra.mxu0 0.0
    %1310 = vmatprep.subr.mxu0 0.0
    %1311 = vmatpush1.xpose.msra.mxu0 0.0
    %1312 = vmatprep.subr.mxu0 0.0
    %1313 = vmatpush1.xpose.msra.mxu0 0.0
    %1314 = vmatprep.subr.mxu0 0.0
    %1315 = vmatpush1.xpose.msra.mxu0 0.0
    %1316 = vmatprep.subr.mxu0 0.0
    %1317 = vmatpush1.xpose.msra.mxu0 0.0
    %1318 = vmatprep.subr.mxu0 0.0
    %1319 = vmatpush1.xpose.msra.mxu0 0.0
    %1320 = vmatprep.subr.mxu0 0.0
    %1321 = vmatpush1.xpose.msra.mxu0 0.0
    %1322 = vmatprep.subr.mxu0 0.0
    %1323 = vmatpush1.xpose.msra.mxu0 0.0
    %1324 = vmatprep.subr.mxu0 0.0
    %1325 = vmatpush1.xpose.msra.mxu0 0.0
    %1326 = vmatprep.subr.mxu0 0.0
    %1327 = vmatpush1.xpose.msra.mxu0 0.0
    %1328 = vmatprep.subr.mxu0 0.0
    %1329 = vmatpush1.xpose.msra.mxu0 0.0
    %1330 = vmatprep.mubr.f32.mxu0 0.0
    %1331 = vmatmul.mubr.f32.gmra.mrb[0].mxu0 %v1262
    %v1332 = vpop.f32.mrb[0].mxu0
    %v1333 = vadd.f32 %v263, %v1332
    %v1334 = vpop.f32.mrb[0].mxu0
    %1335 = vdwg.mxu0
    %1336 = vrot.lane.b32.xlu0 %v259, 80
    %v1337 = vpop.permute.xlu0 %1336
    %1338 = vrot.lane.b32.xlu0 %v254, 16
    %v1339 = vpop.permute.xlu0 %1338
    %v1340 = vsel %vm273, %v1337, 0
    %v1342 = vsel %vm273, %v1339, 0
    %1344 = vmatprep.subr.mxu0 0.0
    %1345 = vmatpush1.xpose.msra.mxu0 %v1342
    %1346 = vmatprep.subr.mxu0 0.0
    %1347 = vmatpush1.xpose.msra.mxu0 0.0
    %1348 = vmatprep.subr.mxu0 0.0
    %1349 = vmatpush1.xpose.msra.mxu0 0.0
    %1350 = vmatprep.subr.mxu0 0.0
    %1351 = vmatpush1.xpose.msra.mxu0 0.0
    %1352 = vmatprep.subr.mxu0 0.0
    %1353 = vmatpush1.xpose.msra.mxu0 0.0
    %1354 = vmatprep.subr.mxu0 0.0
    %1355 = vmatpush1.xpose.msra.mxu0 0.0
    %1356 = vmatprep.subr.mxu0 0.0
    %1357 = vmatpush1.xpose.msra.mxu0 0.0
    %1358 = vmatprep.subr.mxu0 0.0
    %1359 = vmatpush1.xpose.msra.mxu0 0.0
    %1360 = vmatprep.subr.mxu0 0.0
    %1361 = vmatpush1.xpose.msra.mxu0 0.0
    %1362 = vmatprep.subr.mxu0 0.0
    %1363 = vmatpush1.xpose.msra.mxu0 0.0
    %1364 = vmatprep.subr.mxu0 0.0
    %1365 = vmatpush1.xpose.msra.mxu0 0.0
    %1366 = vmatprep.subr.mxu0 0.0
    %1367 = vmatpush1.xpose.msra.mxu0 0.0
    %1368 = vmatprep.subr.mxu0 0.0
    %1369 = vmatpush1.xpose.msra.mxu0 0.0
    %1370 = vmatprep.subr.mxu0 0.0
    %1371 = vmatpush1.xpose.msra.mxu0 0.0
    %1372 = vmatprep.subr.mxu0 0.0
    %1373 = vmatpush1.xpose.msra.mxu0 0.0
    %1374 = vmatprep.subr.mxu0 0.0
    %1375 = vmatpush1.xpose.msra.mxu0 0.0
    %1376 = vmatprep.subr.mxu0 0.0
    %1377 = vmatpush1.xpose.msra.mxu0 0.0
    %1378 = vmatprep.subr.mxu0 0.0
    %1379 = vmatpush1.xpose.msra.mxu0 0.0
    %1380 = vmatprep.subr.mxu0 0.0
    %1381 = vmatpush1.xpose.msra.mxu0 0.0
    %1382 = vmatprep.subr.mxu0 0.0
    %1383 = vmatpush1.xpose.msra.mxu0 0.0
    %1384 = vmatprep.subr.mxu0 0.0
    %1385 = vmatpush1.xpose.msra.mxu0 0.0
    %1386 = vmatprep.subr.mxu0 0.0
    %1387 = vmatpush1.xpose.msra.mxu0 0.0
    %1388 = vmatprep.subr.mxu0 0.0
    %1389 = vmatpush1.xpose.msra.mxu0 0.0
    %1390 = vmatprep.subr.mxu0 0.0
    %1391 = vmatpush1.xpose.msra.mxu0 0.0
    %1392 = vmatprep.subr.mxu0 0.0
    %1393 = vmatpush1.xpose.msra.mxu0 0.0
    %1394 = vmatprep.subr.mxu0 0.0
    %1395 = vmatpush1.xpose.msra.mxu0 0.0
    %1396 = vmatprep.subr.mxu0 0.0
    %1397 = vmatpush1.xpose.msra.mxu0 0.0
    %1398 = vmatprep.subr.mxu0 0.0
    %1399 = vmatpush1.xpose.msra.mxu0 0.0
    %1400 = vmatprep.subr.mxu0 0.0
    %1401 = vmatpush1.xpose.msra.mxu0 0.0
    %1402 = vmatprep.subr.mxu0 0.0
    %1403 = vmatpush1.xpose.msra.mxu0 0.0
    %1404 = vmatprep.subr.mxu0 0.0
    %1405 = vmatpush1.xpose.msra.mxu0 0.0
    %1406 = vmatprep.subr.mxu0 0.0
    %1407 = vmatpush1.xpose.msra.mxu0 0.0
    %1408 = vmatprep.mubr.f32.mxu0 0.0
    %1409 = vmatmul.mubr.f32.gmra.mrb[0].mxu0 %v1340
    %v1410 = vpop.f32.mrb[0].mxu0
    %v1411 = vadd.f32 %v267, %v1410
    %v1412 = vpop.f32.mrb[0].mxu0
    %1413 = vdwg.mxu0
    %v1414 = vsel %vm427, %v1333, -inf
    %1415 = vmax.xlane.f32.xlu0 %v1414
    %v1416 = vpop.xlane.xlu0 %1415
    %v1417 = vsel %vm427, %v1411, -inf
    %1418 = vmax.xlane.f32.xlu0 %v1417
    %v1419 = vpop.xlane.xlu0 %1418
    %v1420 = vsub.f32 %v1333, %v1416
    %v1421 = vsub.f32 %v1411, %v1419
    %v1422 = vmul.f32 %v1420, 1.442695
    %v1423 = vpow.pop %v1422
    %v1424 = vmul.f32 %v1421, 1.442695
    %v1425 = vpow.pop %v1424
    %v1426 = vsel %vm427, %v1423, 0.0
    %1427 = vadd.xlane.f32.xlu0 %v1426
    %v1428 = vpop.xlane.xlu0 %1427
    %v1429 = vsel %vm427, %v1425, 0.0
    %1430 = vadd.xlane.f32.xlu0 %v1429
    %v1431 = vpop.xlane.xlu0 %1430
    %v1432 = vrcp.pop %v1428
    %v1433 = vrcp.pop %v1431
    %v1434 = vmul.f32 %v1423, %v1432
    %v1435 = vmul.f32 %v1425, %v1433
    %1436 = vrot.lane.b32.xlu0 %v250, 80
    %v1437 = vpop.permute.xlu0 %1436
    %v1440 = vsel %vm427, %v1434, 0
    %1442 = vmatprep.subr.mxu0 0.0
    %1443 = vmatpush1.msra.mxu0 %v1437
    %1444 = vmatprep.subr.mxu0 0.0
    %1445 = vmatpush1.msra.mxu0 0.0
    %1446 = vmatprep.subr.mxu0 0.0
    %1447 = vmatpush1.msra.mxu0 0.0
    %1448 = vmatprep.subr.mxu0 0.0
    %1449 = vmatpush1.msra.mxu0 0.0
    %1450 = vmatprep.subr.mxu0 0.0
    %1451 = vmatpush1.msra.mxu0 0.0
    %1452 = vmatprep.subr.mxu0 0.0
    %1453 = vmatpush1.msra.mxu0 0.0
    %1454 = vmatprep.subr.mxu0 0.0
    %1455 = vmatpush1.msra.mxu0 0.0
    %1456 = vmatprep.subr.mxu0 0.0
    %1457 = vmatpush1.msra.mxu0 0.0
    %1458 = vmatprep.subr.mxu0 0.0
    %1459 = vmatpush1.msra.mxu0 0.0
    %1460 = vmatprep.subr.mxu0 0.0
    %1461 = vmatpush1.msra.mxu0 0.0
    %1462 = vmatprep.subr.mxu0 0.0
    %1463 = vmatpush1.msra.mxu0 0.0
    %1464 = vmatprep.subr.mxu0 0.0
    %1465 = vmatpush1.msra.mxu0 0.0
    %1466 = vmatprep.subr.mxu0 0.0
    %1467 = vmatpush1.msra.mxu0 0.0
    %1468 = vmatprep.subr.mxu0 0.0
    %1469 = vmatpush1.msra.mxu0 0.0
    %1470 = vmatprep.subr.mxu0 0.0
    %1471 = vmatpush1.msra.mxu0 0.0
    %1472 = vmatprep.subr.mxu0 0.0
    %1473 = vmatpush1.msra.mxu0 0.0
    %1474 = vmatprep.subr.mxu0 0.0
    %1475 = vmatpush1.msra.mxu0 0.0
    %1476 = vmatprep.subr.mxu0 0.0
    %1477 = vmatpush1.msra.mxu0 0.0
    %1478 = vmatprep.subr.mxu0 0.0
    %1479 = vmatpush1.msra.mxu0 0.0
    %1480 = vmatprep.subr.mxu0 0.0
    %1481 = vmatpush1.msra.mxu0 0.0
    %1482 = vmatprep.subr.mxu0 0.0
    %1483 = vmatpush1.msra.mxu0 0.0
    %1484 = vmatprep.subr.mxu0 0.0
    %1485 = vmatpush1.msra.mxu0 0.0
    %1486 = vmatprep.subr.mxu0 0.0
    %1487 = vmatpush1.msra.mxu0 0.0
    %1488 = vmatprep.subr.mxu0 0.0
    %1489 = vmatpush1.msra.mxu0 0.0
    %1490 = vmatprep.subr.mxu0 0.0
    %1491 = vmatpush1.msra.mxu0 0.0
    %1492 = vmatprep.subr.mxu0 0.0
    %1493 = vmatpush1.msra.mxu0 0.0
    %1494 = vmatprep.subr.mxu0 0.0
    %1495 = vmatpush1.msra.mxu0 0.0
    %1496 = vmatprep.subr.mxu0 0.0
    %1497 = vmatpush1.msra.mxu0 0.0
    %1498 = vmatprep.subr.mxu0 0.0
    %1499 = vmatpush1.msra.mxu0 0.0
    %1500 = vmatprep.subr.mxu0 0.0
    %1501 = vmatpush1.msra.mxu0 0.0
    %1502 = vmatprep.subr.mxu0 0.0
    %1503 = vmatpush1.msra.mxu0 0.0
    %1504 = vmatprep.subr.mxu0 0.0
    %1505 = vmatpush1.msra.mxu0 0.0
    %1506 = vmatprep.mubr.f32.mxu0 0.0
    %1507 = vmatmul.mubr.f32.gmra.mrb[0].mxu0 %v1440
    %v1508 = vpop.f32.mrb[0].mxu0
    %v1509 = vadd.f32 0.0, %v1508
    %v1510 = vpop.f32.mrb[0].mxu0
    %1511 = vdwg.mxu0
    %1512 = vrot.lane.b32.xlu0 %v256, 80
    %v1513 = vpop.permute.xlu0 %1512
    %v1516 = vsel %vm427, %v1435, 0
    %1518 = vmatprep.subr.mxu0 0.0
    %1519 = vmatpush1.msra.mxu0 %v1513
    %1520 = vmatprep.subr.mxu0 0.0
    %1521 = vmatpush1.msra.mxu0 0.0
    %1522 = vmatprep.subr.mxu0 0.0
    %1523 = vmatpush1.msra.mxu0 0.0
    %1524 = vmatprep.subr.mxu0 0.0
    %1525 = vmatpush1.msra.mxu0 0.0
    %1526 = vmatprep.subr.mxu0 0.0
    %1527 = vmatpush1.msra.mxu0 0.0
    %1528 = vmatprep.subr.mxu0 0.0
    %1529 = vmatpush1.msra.mxu0 0.0
    %1530 = vmatprep.subr.mxu0 0.0
    %1531 = vmatpush1.msra.mxu0 0.0
    %1532 = vmatprep.subr.mxu0 0.0
    %1533 = vmatpush1.msra.mxu0 0.0
    %1534 = vmatprep.subr.mxu0 0.0
    %1535 = vmatpush1.msra.mxu0 0.0
    %1536 = vmatprep.subr.mxu0 0.0
    %1537 = vmatpush1.msra.mxu0 0.0
    %1538 = vmatprep.subr.mxu0 0.0
    %1539 = vmatpush1.msra.mxu0 0.0
    %1540 = vmatprep.subr.mxu0 0.0
    %1541 = vmatpush1.msra.mxu0 0.0
    %1542 = vmatprep.subr.mxu0 0.0
    %1543 = vmatpush1.msra.mxu0 0.0
    %1544 = vmatprep.subr.mxu0 0.0
    %1545 = vmatpush1.msra.mxu0 0.0
    %1546 = vmatprep.subr.mxu0 0.0
    %1547 = vmatpush1.msra.mxu0 0.0
    %1548 = vmatprep.subr.mxu0 0.0
    %1549 = vmatpush1.msra.mxu0 0.0
    %1550 = vmatprep.subr.mxu0 0.0
    %1551 = vmatpush1.msra.mxu0 0.0
    %1552 = vmatprep.subr.mxu0 0.0
    %1553 = vmatpush1.msra.mxu0 0.0
    %1554 = vmatprep.subr.mxu0 0.0
    %1555 = vmatpush1.msra.mxu0 0.0
    %1556 = vmatprep.subr.mxu0 0.0
    %1557 = vmatpush1.msra.mxu0 0.0
    %1558 = vmatprep.subr.mxu0 0.0
    %1559 = vmatpush1.msra.mxu0 0.0
    %1560 = vmatprep.subr.mxu0 0.0
    %1561 = vmatpush1.msra.mxu0 0.0
    %1562 = vmatprep.subr.mxu0 0.0
    %1563 = vmatpush1.msra.mxu0 0.0
    %1564 = vmatprep.subr.mxu0 0.0
    %1565 = vmatpush1.msra.mxu0 0.0
    %1566 = vmatprep.subr.mxu0 0.0
    %1567 = vmatpush1.msra.mxu0 0.0
    %1568 = vmatprep.subr.mxu0 0.0
    %1569 = vmatpush1.msra.mxu0 0.0
    %1570 = vmatprep.subr.mxu0 0.0
    %1571 = vmatpush1.msra.mxu0 0.0
    %1572 = vmatprep.subr.mxu0 0.0
    %1573 = vmatpush1.msra.mxu0 0.0
    %1574 = vmatprep.subr.mxu0 0.0
    %1575 = vmatpush1.msra.mxu0 0.0
    %1576 = vmatprep.subr.mxu0 0.0
    %1577 = vmatpush1.msra.mxu0 0.0
    %1578 = vmatprep.subr.mxu0 0.0
    %1579 = vmatpush1.msra.mxu0 0.0
    %1580 = vmatprep.subr.mxu0 0.0
    %1581 = vmatpush1.msra.mxu0 0.0
    %1582 = vmatprep.mubr.f32.mxu0 0.0
    %1583 = vmatmul.mubr.f32.gmra.mrb[0].mxu0 %v1516
    %v1584 = vpop.f32.mrb[0].mxu0
    %v1585 = vadd.f32 0.0, %v1584
    %v1586 = vpop.f32.mrb[0].mxu0
    %1587 = vdwg.mxu0
    %1590 = vrot.lane.b32.xlu0 %v848, 16
    %v1591 = vpop.permute.xlu0 %1590
    %1592 = vrot.lane.b32.xlu0 %v925, 16
    %v1593 = vpop.permute.xlu0 %1592
    %1598 = vrot.lane.b32.xlu0 %v1179, 32
    %v1599 = vpop.permute.xlu0 %1598
    %1600 = vrot.lane.b32.xlu0 %v1255, 32
    %v1601 = vpop.permute.xlu0 %1600
    %1606 = vrot.lane.b32.xlu0 %v1509, 48
    %v1607 = vpop.permute.xlu0 %1606
    %1608 = vrot.lane.b32.xlu0 %v1585, 48
    %v1609 = vpop.permute.xlu0 %1608
    %v1612 = vsel %vm273, %v520, %v1591
    %v1613 = vsel %vm273, %v593, %v1593
    %vm1614 = vcmask 261120
    %v1615 = vsel %vm1614, %v1612, %v1599
    %v1616 = vsel %vm1614, %v1613, %v1601
    %vm1617 = vcmask 392192
    %v1618 = vsel %vm1617, %v1615, %v1607
    %v1619 = vsel %vm1617, %v1616, %v1609
    %v1620 = vld [vmem:[%s6] sm:$0xff]
    %v1621 = vld [vmem:[%s6 + $0x8] sm:$0xff]
    %v1622 = vld [vmem:[%s6 + $0x10] sm:$0xff]
    %v1623 = vld [vmem:[%s6 + $0x18] sm:$0xff]
    %v1624 = vld [vmem:[%s6 + $0x20] sm:$0xff]
    %v1625 = vld [vmem:[%s6 + $0x28] sm:$0xff]
    %v1626 = vld [vmem:[%s6 + $0x30] sm:$0xff]
    %v1627 = vld [vmem:[%s6 + $0x38] sm:$0xff]
    %v1628 = vld [vmem:[%s7] sm:$0x1]
    %v1630 = vlaneseq
    %v1631 = vshrl.u32 %v1630, 7
    %v1632 = vsub.s32 0, %v1631
    %v1633 = vrot.slane %v1628, %v1632
    %v1636 = vsel %vm77, %v1618, 0
    %v1639 = vsel %vm77, %v1619, 0
    %1641 = vmatprep.subr.mxu0 0.0
    %1642 = vmatpush1.msra.mxu0 %v1620
    %1643 = vmatprep.subr.mxu0 0.0
    %1644 = vmatpush1.msra.mxu0 %v1621
    %1645 = vmatprep.subr.mxu0 0.0
    %1646 = vmatpush1.msra.mxu0 %v1622
    %1647 = vmatprep.subr.mxu0 0.0
    %1648 = vmatpush1.msra.mxu0 %v1623
    %1649 = vmatprep.subr.mxu0 0.0
    %1650 = vmatpush1.msra.mxu0 %v1624
    %1651 = vmatprep.subr.mxu0 0.0
    %1652 = vmatpush1.msra.mxu0 %v1625
    %1653 = vmatprep.subr.mxu0 0.0
    %1654 = vmatpush1.msra.mxu0 %v1626
    %1655 = vmatprep.subr.mxu0 0.0
    %1656 = vmatpush1.msra.mxu0 %v1627
    %1657 = vmatprep.subr.mxu0 0.0
    %1658 = vmatpush1.msra.mxu0 0.0
    %1659 = vmatprep.subr.mxu0 0.0
    %1660 = vmatpush1.msra.mxu0 0.0
    %1661 = vmatprep.subr.mxu0 0.0
    %1662 = vmatpush1.msra.mxu0 0.0
    %1663 = vmatprep.subr.mxu0 0.0
    %1664 = vmatpush1.msra.mxu0 0.0
    %1665 = vmatprep.subr.mxu0 0.0
    %1666 = vmatpush1.msra.mxu0 0.0
    %1667 = vmatprep.subr.mxu0 0.0
    %1668 = vmatpush1.msra.mxu0 0.0
    %1669 = vmatprep.subr.mxu0 0.0
    %1670 = vmatpush1.msra.mxu0 0.0
    %1671 = vmatprep.subr.mxu0 0.0
    %1672 = vmatpush1.msra.mxu0 0.0
    %1673 = vmatprep.subr.mxu0 0.0
    %1674 = vmatpush1.msra.mxu0 0.0
    %1675 = vmatprep.subr.mxu0 0.0
    %1676 = vmatpush1.msra.mxu0 0.0
    %1677 = vmatprep.subr.mxu0 0.0
    %1678 = vmatpush1.msra.mxu0 0.0
    %1679 = vmatprep.subr.mxu0 0.0
    %1680 = vmatpush1.msra.mxu0 0.0
    %1681 = vmatprep.subr.mxu0 0.0
    %1682 = vmatpush1.msra.mxu0 0.0
    %1683 = vmatprep.subr.mxu0 0.0
    %1684 = vmatpush1.msra.mxu0 0.0
    %1685 = vmatprep.subr.mxu0 0.0
    %1686 = vmatpush1.msra.mxu0 0.0
    %1687 = vmatprep.subr.mxu0 0.0
    %1688 = vmatpush1.msra.mxu0 0.0
    %1689 = vmatprep.subr.mxu0 0.0
    %1690 = vmatpush1.msra.mxu0 0.0
    %1691 = vmatprep.subr.mxu0 0.0
    %1692 = vmatpush1.msra.mxu0 0.0
    %1693 = vmatprep.subr.mxu0 0.0
    %1694 = vmatpush1.msra.mxu0 0.0
    %1695 = vmatprep.subr.mxu0 0.0
    %1696 = vmatpush1.msra.mxu0 0.0
    %1697 = vmatprep.subr.mxu0 0.0
    %1698 = vmatpush1.msra.mxu0 0.0
    %1699 = vmatprep.subr.mxu0 0.0
    %1700 = vmatpush1.msra.mxu0 0.0
    %1701 = vmatprep.subr.mxu0 0.0
    %1702 = vmatpush1.msra.mxu0 0.0
    %1703 = vmatprep.subr.mxu0 0.0
    %1704 = vmatpush1.msra.mxu0 0.0
    %1705 = vmatprep.mubr.f32.mxu0 0.0
    %1706 = vmatmul.mubr.f32.gmra.mrb[0].mxu0 %v1636
    %v1707 = vpop.f32.mrb[0].mxu0
    %v1708 = vadd.f32 %v1633, %v1707
    %v1709 = vpop.f32.mrb[0].mxu0
    %1710 = vmatprep.mubr.f32.mxu0 0.0
    %1711 = vmatmul.mubr.f32.gmra.mrb[0].mxu0 %v1639
    %v1712 = vpop.f32.mrb[0].mxu0
    %v1713 = vadd.f32 %v1633, %v1712
    %v1714 = vpop.f32.mrb[0].mxu0
    %1715 = vdwg.mxu0
    %v1716 = vadd.f32 %v1708, %v119
    %v1717 = vadd.f32 %v1713, %v120
    %v1718 = vld [vmem:[%s8] sm:$0x1]
    %v1719 = vld [vmem:[%s9] sm:$0x1]
    %v1720 = vsel %vm77, %v1716, 0.0
    %1721 = vadd.xlane.f32.xlu0 %v1720
    %v1722 = vpop.xlane.xlu0 %1721
    %v1723 = vsel %vm77, %v1717, 0.0
    %1724 = vadd.xlane.f32.xlu0 %v1723
    %v1725 = vpop.xlane.xlu0 %1724
    %v1726 = vmul.f32 %v1722, %v84
    %v1727 = vmul.f32 %v1725, %v84
    %v1728 = vsub.f32 %v1716, %v1726
    %v1729 = vsub.f32 %v1717, %v1727
    %v1730 = vmul.f32 %v1728, %v1728
    %v1731 = vmul.f32 %v1729, %v1729
    %v1732 = vsel %vm77, %v1730, 0.0
    %1733 = vadd.xlane.f32.xlu0 %v1732
    %v1734 = vpop.xlane.xlu0 %1733
    %v1735 = vsel %vm77, %v1731, 0.0
    %1736 = vadd.xlane.f32.xlu0 %v1735
    %v1737 = vpop.xlane.xlu0 %1736
    %v1738 = vmul.f32 %v1734, %v84
    %v1739 = vmul.f32 %v1737, %v84
    %v1740 = vadd.f32 %v1738, 1e-07
    %v1741 = vadd.f32 %v1739, 1e-07
    %v1742 = vrsqrt.pop %v1740
    %v1743 = vrsqrt.pop %v1741
    %v1744 = vmul.f32 %v1728, %v1742
    %v1745 = vmul.f32 %v1729, %v1743
    %v1747 = vlaneseq
    %v1748 = vshrl.u32 %v1747, 7
    %v1749 = vsub.s32 0, %v1748
    %v1750 = vrot.slane %v1718, %v1749
    %v1752 = vmul.f32 %v1744, %v1750
    %v1753 = vmul.f32 %v1745, %v1750
    %v1755 = vlaneseq
    %v1756 = vshrl.u32 %v1755, 7
    %v1757 = vsub.s32 0, %v1756
    %v1758 = vrot.slane %v1719, %v1757
    %v1760 = vadd.f32 %v1752, %v1758
    %v1761 = vadd.f32 %v1753, %v1758
    %v1762 = vld [vmem:[#allocation2] sm:$0xff]
    %v1763 = vld [vmem:[#allocation2 + $0x8] sm:$0xff]
    %v1764 = vld [vmem:[#allocation2 + $0x10] sm:$0xff]
    %v1765 = vld [vmem:[#allocation2 + $0x18] sm:$0xff]
    %v1766 = vld [vmem:[#allocation2 + $0x20] sm:$0xff]
    %v1767 = vld [vmem:[#allocation2 + $0x28] sm:$0xff]
    %v1768 = vld [vmem:[#allocation2 + $0x30] sm:$0xff]
    %v1769 = vld [vmem:[#allocation2 + $0x38] sm:$0xff]
    %v1770 = vld [vmem:[%s11] sm:$0x1]
    %v1772 = vlaneseq
    %v1773 = vshrl.u32 %v1772, 7
    %v1774 = vsub.s32 0, %v1773
    %v1775 = vrot.slane %v1770, %v1774
    %v1778 = vsel %vm77, %v1760, 0
    %v1781 = vsel %vm77, %v1761, 0
    %1783 = vmatprep.subr.mxu0 0.0
    %1784 = vmatpush1.msra.mxu0 %v1762
    %1785 = vmatprep.subr.mxu0 0.0
    %1786 = vmatpush1.msra.mxu0 %v1763
    %1787 = vmatprep.subr.mxu0 0.0
    %1788 = vmatpush1.msra.mxu0 %v1764
    %1789 = vmatprep.subr.mxu0 0.0
    %1790 = vmatpush1.msra.mxu0 %v1765
    %1791 = vmatprep.subr.mxu0 0.0
    %1792 = vmatpush1.msra.mxu0 %v1766
    %1793 = vmatprep.subr.mxu0 0.0
    %1794 = vmatpush1.msra.mxu0 %v1767
    %1795 = vmatprep.subr.mxu0 0.0
    %1796 = vmatpush1.msra.mxu0 %v1768
    %1797 = vmatprep.subr.mxu0 0.0
    %1798 = vmatpush1.msra.mxu0 %v1769
    %1799 = vmatprep.subr.mxu0 0.0
    %1800 = vmatpush1.msra.mxu0 0.0
    %1801 = vmatprep.subr.mxu0 0.0
    %1802 = vmatpush1.msra.mxu0 0.0
    %1803 = vmatprep.subr.mxu0 0.0
    %1804 = vmatpush1.msra.mxu0 0.0
    %1805 = vmatprep.subr.mxu0 0.0
    %1806 = vmatpush1.msra.mxu0 0.0
    %1807 = vmatprep.subr.mxu0 0.0
    %1808 = vmatpush1.msra.mxu0 0.0
    %1809 = vmatprep.subr.mxu0 0.0
    %1810 = vmatpush1.msra.mxu0 0.0
    %1811 = vmatprep.subr.mxu0 0.0
    %1812 = vmatpush1.msra.mxu0 0.0
    %1813 = vmatprep.subr.mxu0 0.0
    %1814 = vmatpush1.msra.mxu0 0.0
    %1815 = vmatprep.subr.mxu0 0.0
    %1816 = vmatpush1.msra.mxu0 0.0
    %1817 = vmatprep.subr.mxu0 0.0
    %1818 = vmatpush1.msra.mxu0 0.0
    %1819 = vmatprep.subr.mxu0 0.0
    %1820 = vmatpush1.msra.mxu0 0.0
    %1821 = vmatprep.subr.mxu0 0.0
    %1822 = vmatpush1.msra.mxu0 0.0
    %1823 = vmatprep.subr.mxu0 0.0
    %1824 = vmatpush1.msra.mxu0 0.0
    %1825 = vmatprep.subr.mxu0 0.0
    %1826 = vmatpush1.msra.mxu0 0.0
    %1827 = vmatprep.subr.mxu0 0.0
    %1828 = vmatpush1.msra.mxu0 0.0
    %1829 = vmatprep.subr.mxu0 0.0
    %1830 = vmatpush1.msra.mxu0 0.0
    %1831 = vmatprep.subr.mxu0 0.0
    %1832 = vmatpush1.msra.mxu0 0.0
    %1833 = vmatprep.subr.mxu0 0.0
    %1834 = vmatpush1.msra.mxu0 0.0
    %1835 = vmatprep.subr.mxu0 0.0
    %1836 = vmatpush1.msra.mxu0 0.0
    %1837 = vmatprep.subr.mxu0 0.0
    %1838 = vmatpush1.msra.mxu0 0.0
    %1839 = vmatprep.subr.mxu0 0.0
    %1840 = vmatpush1.msra.mxu0 0.0
    %1841 = vmatprep.subr.mxu0 0.0
    %1842 = vmatpush1.msra.mxu0 0.0
    %1843 = vmatprep.subr.mxu0 0.0
    %1844 = vmatpush1.msra.mxu0 0.0
    %1845 = vmatprep.subr.mxu0 0.0
    %1846 = vmatpush1.msra.mxu0 0.0
    %1847 = vmatprep.mubr.f32.mxu0 0.0
    %1848 = vmatmul.mubr.f32.gmra.mrb[0].mxu0 %v1778
    %v1849 = vpop.f32.mrb[0].mxu0
    %v1850 = vadd.f32 %v1775, %v1849
    %v1851 = vpop.f32.mrb[0].mxu0
    %1852 = vmatprep.mubr.f32.mxu0 0.0
    %1853 = vmatmul.mubr.f32.gmra.mrb[0].mxu0 %v1781
    %v1854 = vpop.f32.mrb[0].mxu0
    %v1855 = vadd.f32 %v1775, %v1854
    %v1856 = vpop.f32.mrb[0].mxu0
    %1857 = vdwg.mxu0
    %v1858 = vmul.f32 %v1850, %v1850
    %v1859 = vmul.f32 %v1855, %v1855
    %v1860 = vmul.f32 %v1850, %v1858
    %v1861 = vmul.f32 %v1855, %v1859
    %v1862 = vmul.f32 %v1860, 0.044715
    %v1863 = vmul.f32 %v1861, 0.044715
    %v1864 = vadd.f32 %v1850, %v1862
    %v1865 = vadd.f32 %v1855, %v1863
    %v1866 = vmul.f32 %v1864, 0.7978846
    %v1867 = vmul.f32 %v1865, 0.7978846
    %v1868 = vtanh.pop %v1866
    %v1869 = vtanh.pop %v1867
    %v1870 = vadd.f32 %v1868, 1.0
    %v1871 = vadd.f32 %v1869, 1.0
    %v1872 = vmul.f32 %v1870, 0.5
    %v1873 = vmul.f32 %v1871, 0.5
    %v1874 = vmul.f32 %v1850, %v1872
    %v1875 = vmul.f32 %v1855, %v1873
    %v1876 = vld [vmem:[%s12] sm:$0xff]
    %v1877 = vld [vmem:[%s12 + $0x8] sm:$0xff]
    %v1878 = vld [vmem:[%s12 + $0x10] sm:$0xff]
    %v1879 = vld [vmem:[%s12 + $0x18] sm:$0xff]
    %v1880 = vld [vmem:[%s12 + $0x20] sm:$0xff]
    %v1881 = vld [vmem:[%s12 + $0x28] sm:$0xff]
    %v1882 = vld [vmem:[%s12 + $0x30] sm:$0xff]
    %v1883 = vld [vmem:[%s12 + $0x38] sm:$0xff]
    %v1884 = vld [vmem:[%s12 + $0x40] sm:$0xff]
    %v1885 = vld [vmem:[%s12 + $0x48] sm:$0xff]
    %v1886 = vld [vmem:[%s12 + $0x50] sm:$0xff]
    %v1887 = vld [vmem:[%s12 + $0x58] sm:$0xff]
    %v1888 = vld [vmem:[%s12 + $0x60] sm:$0xff]
    %v1889 = vld [vmem:[%s12 + $0x68] sm:$0xff]
    %v1890 = vld [vmem:[%s12 + $0x70] sm:$0xff]
    %v1891 = vld [vmem:[%s12 + $0x78] sm:$0xff]
    %v1892 = vld [vmem:[%s13] sm:$0x1]
    %v1894 = vlaneseq
    %v1895 = vshrl.u32 %v1894, 7
    %v1896 = vsub.s32 0, %v1895
    %v1897 = vrot.slane %v1892, %v1896
    %1899 = vmatprep.subr.mxu0 0.0
    %1900 = vmatpush1.msra.mxu0 %v1876
    %1901 = vmatprep.subr.mxu0 0.0
    %1902 = vmatpush1.msra.mxu0 %v1877
    %1903 = vmatprep.subr.mxu0 0.0
    %1904 = vmatpush1.msra.mxu0 %v1878
    %1905 = vmatprep.subr.mxu0 0.0
    %1906 = vmatpush1.msra.mxu0 %v1879
    %1907 = vmatprep.subr.mxu0 0.0
    %1908 = vmatpush1.msra.mxu0 %v1880
    %1909 = vmatprep.subr.mxu0 0.0
    %1910 = vmatpush1.msra.mxu0 %v1881
    %1911 = vmatprep.subr.mxu0 0.0
    %1912 = vmatpush1.msra.mxu0 %v1882
    %1913 = vmatprep.subr.mxu0 0.0
    %1914 = vmatpush1.msra.mxu0 %v1883
    %1915 = vmatprep.subr.mxu0 0.0
    %1916 = vmatpush1.msra.mxu0 %v1884
    %1917 = vmatprep.subr.mxu0 0.0
    %1918 = vmatpush1.msra.mxu0 %v1885
    %1919 = vmatprep.subr.mxu0 0.0
    %1920 = vmatpush1.msra.mxu0 %v1886
    %1921 = vmatprep.subr.mxu0 0.0
    %1922 = vmatpush1.msra.mxu0 %v1887
    %1923 = vmatprep.subr.mxu0 0.0
    %1924 = vmatpush1.msra.mxu0 %v1888
    %1925 = vmatprep.subr.mxu0 0.0
    %1926 = vmatpush1.msra.mxu0 %v1889
    %1927 = vmatprep.subr.mxu0 0.0
    %1928 = vmatpush1.msra.mxu0 %v1890
    %1929 = vmatprep.subr.mxu0 0.0
    %1930 = vmatpush1.msra.mxu0 %v1891
    %1931 = vmatprep.subr.mxu0 0.0
    %1932 = vmatpush1.msra.mxu0 0.0
    %1933 = vmatprep.subr.mxu0 0.0
    %1934 = vmatpush1.msra.mxu0 0.0
    %1935 = vmatprep.subr.mxu0 0.0
    %1936 = vmatpush1.msra.mxu0 0.0
    %1937 = vmatprep.subr.mxu0 0.0
    %1938 = vmatpush1.msra.mxu0 0.0
    %1939 = vmatprep.subr.mxu0 0.0
    %1940 = vmatpush1.msra.mxu0 0.0
    %1941 = vmatprep.subr.mxu0 0.0
    %1942 = vmatpush1.msra.mxu0 0.0
    %1943 = vmatprep.subr.mxu0 0.0
    %1944 = vmatpush1.msra.mxu0 0.0
    %1945 = vmatprep.subr.mxu0 0.0
    %1946 = vmatpush1.msra.mxu0 0.0
    %1947 = vmatprep.subr.mxu0 0.0
    %1948 = vmatpush1.msra.mxu0 0.0
    %1949 = vmatprep.subr.mxu0 0.0
    %1950 = vmatpush1.msra.mxu0 0.0
    %1951 = vmatprep.subr.mxu0 0.0
    %1952 = vmatpush1.msra.mxu0 0.0
    %1953 = vmatprep.subr.mxu0 0.0
    %1954 = vmatpush1.msra.mxu0 0.0
    %1955 = vmatprep.subr.mxu0 0.0
    %1956 = vmatpush1.msra.mxu0 0.0
    %1957 = vmatprep.subr.mxu0 0.0
    %1958 = vmatpush1.msra.mxu0 0.0
    %1959 = vmatprep.subr.mxu0 0.0
    %1960 = vmatpush1.msra.mxu0 0.0
    %1961 = vmatprep.subr.mxu0 0.0
    %1962 = vmatpush1.msra.mxu0 0.0
    %1963 = vmatprep.mubr.f32.mxu0 0.0
    %1964 = vmatmul.mubr.f32.gmra.mrb[0].mxu0 %v1874
    %v1965 = vpop.f32.mrb[0].mxu0
    %v1966 = vadd.f32 %v1897, %v1965
    %v1967 = vpop.f32.mrb[0].mxu0
    %1968 = vmatprep.mubr.f32.mxu0 0.0
    %1969 = vmatmul.mubr.f32.gmra.mrb[0].mxu0 %v1875
    %v1970 = vpop.f32.mrb[0].mxu0
    %v1971 = vadd.f32 %v1897, %v1970
    %v1972 = vpop.f32.mrb[0].mxu0
    %1973 = vdwg.mxu0
    %v1974 = vadd.f32 %v1966, %v1760
    %v1975 = vadd.f32 %v1971, %v1761
    %v1976 = vld [vmem:[%s14] sm:$0x1]
    %v1977 = vld [vmem:[%s15] sm:$0x1]
    %v1978 = vsel %vm77, %v1974, 0.0
    %1979 = vadd.xlane.f32.xlu0 %v1978
    %v1980 = vpop.xlane.xlu0 %1979
    %v1981 = vsel %vm77, %v1975, 0.0
    %1982 = vadd.xlane.f32.xlu0 %v1981
    %v1983 = vpop.xlane.xlu0 %1982
    %v1984 = vmul.f32 %v1980, %v84
    %v1985 = vmul.f32 %v1983, %v84
    %v1986 = vsub.f32 %v1974, %v1984
    %v1987 = vsub.f32 %v1975, %v1985
    %v1988 = vmul.f32 %v1986, %v1986
    %v1989 = vmul.f32 %v1987, %v1987
    %v1990 = vsel %vm77, %v1988, 0.0
    %1991 = vadd.xlane.f32.xlu0 %v1990
    %v1992 = vpop.xlane.xlu0 %1991
    %v1993 = vsel %vm77, %v1989, 0.0
    %1994 = vadd.xlane.f32.xlu0 %v1993
    %v1995 = vpop.xlane.xlu0 %1994
    %v1996 = vmul.f32 %v1992, %v84
    %v1997 = vmul.f32 %v1995, %v84
    %v1998 = vadd.f32 %v1996, 1e-07
    %v1999 = vadd.f32 %v1997, 1e-07
    %v2000 = vrsqrt.pop %v1998
    %v2001 = vrsqrt.pop %v1999
    %v2002 = vmul.f32 %v1986, %v2000
    %v2003 = vmul.f32 %v1987, %v2001
    %v2005 = vlaneseq
    %v2006 = vshrl.u32 %v2005, 7
    %v2007 = vsub.s32 0, %v2006
    %v2008 = vrot.slane %v1976, %v2007
    %v2010 = vmul.f32 %v2002, %v2008
    %v2011 = vmul.f32 %v2003, %v2008
    %v2013 = vlaneseq
    %v2014 = vshrl.u32 %v2013, 7
    %v2015 = vsub.s32 0, %v2014
    %v2016 = vrot.slane %v1977, %v2015
    %v2018 = vadd.f32 %v2010, %v2016
    %v2019 = vadd.f32 %v2011, %v2016
    %s2020 = scalar_lea.vmem %s4, 128
    %v2021 = vld [vmem:[%s2020] sm:$0xff]
    %v2022 = vld [vmem:[%s2020 + $0x8] sm:$0xff]
    %v2023 = vld [vmem:[%s2020 + $0x10] sm:$0xff]
    %v2024 = vld [vmem:[%s2020 + $0x18] sm:$0xff]
    %v2025 = vld [vmem:[%s2020 + $0x20] sm:$0xff]
    %v2026 = vld [vmem:[%s2020 + $0x28] sm:$0xff]
    %v2027 = vld [vmem:[%s2020 + $0x30] sm:$0xff]
    %v2028 = vld [vmem:[%s2020 + $0x38] sm:$0xff]
    %v2029 = vld [vmem:[%s2020 + $0x40] sm:$0xff]
    %v2030 = vld [vmem:[%s2020 + $0x48] sm:$0xff]
    %v2031 = vld [vmem:[%s2020 + $0x50] sm:$0xff]
    %v2032 = vld [vmem:[%s2020 + $0x58] sm:$0xff]
    %v2033 = vld [vmem:[%s2020 + $0x60] sm:$0xff]
    %v2034 = vld [vmem:[%s2020 + $0x68] sm:$0xff]
    %v2035 = vld [vmem:[%s2020 + $0x70] sm:$0xff]
    %v2036 = vld [vmem:[%s2020 + $0x78] sm:$0xff]
    %s2037 = scalar_lea.vmem %s5, 2
    %v2038 = vld [vmem:[%s2037] sm:$0x3]
    %v2040 = vlaneseq
    %v2041 = vshrl.u32 %v2040, 7
    %v2042 = vsub.s32 0, %v2041
    %v2043 = vrot.slane %v2038, %v2042
    %v2044 = vlaneseq
    %v2045 = vshrl.u32 %v2044, 7
    %v2046 = vsub.s32 1, %v2045
    %v2047 = vrot.slane %v2038, %v2046
    %v2051 = vsel %vm77, %v2018, 0
    %v2054 = vsel %vm77, %v2019, 0
    %2056 = vmatprep.subr.mxu0 %v2022
    %2057 = vmatpush1.msra.mxu0 %v2021
    %2058 = vmatprep.subr.mxu0 %v2024
    %2059 = vmatpush1.msra.mxu0 %v2023
    %2060 = vmatprep.subr.mxu0 %v2026
    %2061 = vmatpush1.msra.mxu0 %v2025
    %2062 = vmatprep.subr.mxu0 %v2028
    %2063 = vmatpush1.msra.mxu0 %v2027
    %2064 = vmatprep.subr.mxu0 %v2030
    %2065 = vmatpush1.msra.mxu0 %v2029
    %2066 = vmatprep.subr.mxu0 %v2032
    %2067 = vmatpush1.msra.mxu0 %v2031
    %2068 = vmatprep.subr.mxu0 %v2034
    %2069 = vmatpush1.msra.mxu0 %v2033
    %2070 = vmatprep.subr.mxu0 %v2036
    %2071 = vmatpush1.msra.mxu0 %v2035
    %2072 = vmatprep.subr.mxu0 0.0
    %2073 = vmatpush1.msra.mxu0 0.0
    %2074 = vmatprep.subr.mxu0 0.0
    %2075 = vmatpush1.msra.mxu0 0.0
    %2076 = vmatprep.subr.mxu0 0.0
    %2077 = vmatpush1.msra.mxu0 0.0
    %2078 = vmatprep.subr.mxu0 0.0
    %2079 = vmatpush1.msra.mxu0 0.0
    %2080 = vmatprep.subr.mxu0 0.0
    %2081 = vmatpush1.msra.mxu0 0.0
    %2082 = vmatprep.subr.mxu0 0.0
    %2083 = vmatpush1.msra.mxu0 0.0
    %2084 = vmatprep.subr.mxu0 0.0
    %2085 = vmatpush1.msra.mxu0 0.0
    %2086 = vmatprep.subr.mxu0 0.0
    %2087 = vmatpush1.msra.mxu0 0.0
    %2088 = vmatprep.subr.mxu0 0.0
    %2089 = vmatpush1.msra.mxu0 0.0
    %2090 = vmatprep.subr.mxu0 0.0
    %2091 = vmatpush1.msra.mxu0 0.0
    %2092 = vmatprep.subr.mxu0 0.0
    %2093 = vmatpush1.msra.mxu0 0.0
    %2094 = vmatprep.subr.mxu0 0.0
    %2095 = vmatpush1.msra.mxu0 0.0
    %2096 = vmatprep.subr.mxu0 0.0
    %2097 = vmatpush1.msra.mxu0 0.0
    %2098 = vmatprep.subr.mxu0 0.0
    %2099 = vmatpush1.msra.mxu0 0.0
    %2100 = vmatprep.subr.mxu0 0.0
    %2101 = vmatpush1.msra.mxu0 0.0
    %2102 = vmatprep.subr.mxu0 0.0
    %2103 = vmatpush1.msra.mxu0 0.0
    %2104 = vmatprep.subr.mxu0 0.0
    %2105 = vmatpush1.msra.mxu0 0.0
    %2106 = vmatprep.subr.mxu0 0.0
    %2107 = vmatpush1.msra.mxu0 0.0
    %2108 = vmatprep.subr.mxu0 0.0
    %2109 = vmatpush1.msra.mxu0 0.0
    %2110 = vmatprep.subr.mxu0 0.0
    %2111 = vmatpush1.msra.mxu0 0.0
    %2112 = vmatprep.subr.mxu0 0.0
    %2113 = vmatpush1.msra.mxu0 0.0
    %2114 = vmatprep.subr.mxu0 0.0
    %2115 = vmatpush1.msra.mxu0 0.0
    %2116 = vmatprep.subr.mxu0 0.0
    %2117 = vmatpush1.msra.mxu0 0.0
    %2118 = vmatprep.subr.mxu0 0.0
    %2119 = vmatpush1.msra.mxu0 0.0
    %2120 = vmatprep.mubr.f32.mxu0 0.0
    %2121 = vmatmul.mubr.f32.gmra.mrb[0].mxu0 %v2051
    %v2122 = vpop.f32.mrb[0].mxu0
    %v2123 = vadd.f32 %v2043, %v2122
    %v2124 = vpop.f32.mrb[0].mxu0
    %v2125 = vadd.f32 %v2047, %v2124
    %2126 = vmatprep.mubr.f32.mxu0 0.0
    %2127 = vmatmul.mubr.f32.gmra.mrb[0].mxu0 %v2054
    %v2128 = vpop.f32.mrb[0].mxu0
    %v2129 = vadd.f32 %v2043, %v2128
    %v2130 = vpop.f32.mrb[0].mxu0
    %v2131 = vadd.f32 %v2047, %v2130
    %2132 = vdwg.mxu0
    %v2133 = vmul.f32 %v2123, 0.25
    %v2134 = vmul.f32 %v2129, 0.25
    %2136 = vrot.lane.b32.xlu0 %v2123, 64
    %v2137 = vpop.permute.xlu0 %2136
    %v2139 = vsel %vm273, %v2133, 0
    %v2141 = vsel %vm273, %v2137, 0
    %2143 = vmatprep.subr.mxu0 0.0
    %2144 = vmatpush1.xpose.msra.mxu0 %v2141
    %2145 = vmatprep.subr.mxu0 0.0
    %2146 = vmatpush1.xpose.msra.mxu0 0.0
    %2147 = vmatprep.subr.mxu0 0.0
    %2148 = vmatpush1.xpose.msra.mxu0 0.0
    %2149 = vmatprep.subr.mxu0 0.0
    %2150 = vmatpush1.xpose.msra.mxu0 0.0
    %2151 = vmatprep.subr.mxu0 0.0
    %2152 = vmatpush1.xpose.msra.mxu0 0.0
    %2153 = vmatprep.subr.mxu0 0.0
    %2154 = vmatpush1.xpose.msra.mxu0 0.0
    %2155 = vmatprep.subr.mxu0 0.0
    %2156 = vmatpush1.xpose.msra.mxu0 0.0
    %2157 = vmatprep.subr.mxu0 0.0
    %2158 = vmatpush1.xpose.msra.mxu0 0.0
    %2159 = vmatprep.subr.mxu0 0.0
    %2160 = vmatpush1.xpose.msra.mxu0 0.0
    %2161 = vmatprep.subr.mxu0 0.0
    %2162 = vmatpush1.xpose.msra.mxu0 0.0
    %2163 = vmatprep.subr.mxu0 0.0
    %2164 = vmatpush1.xpose.msra.mxu0 0.0
    %2165 = vmatprep.subr.mxu0 0.0
    %2166 = vmatpush1.xpose.msra.mxu0 0.0
    %2167 = vmatprep.subr.mxu0 0.0
    %2168 = vmatpush1.xpose.msra.mxu0 0.0
    %2169 = vmatprep.subr.mxu0 0.0
    %2170 = vmatpush1.xpose.msra.mxu0 0.0
    %2171 = vmatprep.subr.mxu0 0.0
    %2172 = vmatpush1.xpose.msra.mxu0 0.0
    %2173 = vmatprep.subr.mxu0 0.0
    %2174 = vmatpush1.xpose.msra.mxu0 0.0
    %2175 = vmatprep.subr.mxu0 0.0
    %2176 = vmatpush1.xpose.msra.mxu0 0.0
    %2177 = vmatprep.subr.mxu0 0.0
    %2178 = vmatpush1.xpose.msra.mxu0 0.0
    %2179 = vmatprep.subr.mxu0 0.0
    %2180 = vmatpush1.xpose.msra.mxu0 0.0
    %2181 = vmatprep.subr.mxu0 0.0
    %2182 = vmatpush1.xpose.msra.mxu0 0.0
    %2183 = vmatprep.subr.mxu0 0.0
    %2184 = vmatpush1.xpose.msra.mxu0 0.0
    %2185 = vmatprep.subr.mxu0 0.0
    %2186 = vmatpush1.xpose.msra.mxu0 0.0
    %2187 = vmatprep.subr.mxu0 0.0
    %2188 = vmatpush1.xpose.msra.mxu0 0.0
    %2189 = vmatprep.subr.mxu0 0.0
    %2190 = vmatpush1.xpose.msra.mxu0 0.0
    %2191 = vmatprep.subr.mxu0 0.0
    %2192 = vmatpush1.xpose.msra.mxu0 0.0
    %2193 = vmatprep.subr.mxu0 0.0
    %2194 = vmatpush1.xpose.msra.mxu0 0.0
    %2195 = vmatprep.subr.mxu0 0.0
    %2196 = vmatpush1.xpose.msra.mxu0 0.0
    %2197 = vmatprep.subr.mxu0 0.0
    %2198 = vmatpush1.xpose.msra.mxu0 0.0
    %2199 = vmatprep.subr.mxu0 0.0
    %2200 = vmatpush1.xpose.msra.mxu0 0.0
    %2201 = vmatprep.subr.mxu0 0.0
    %2202 = vmatpush1.xpose.msra.mxu0 0.0
    %2203 = vmatprep.subr.mxu0 0.0
    %2204 = vmatpush1.xpose.msra.mxu0 0.0
    %2205 = vmatprep.subr.mxu0 0.0
    %2206 = vmatpush1.xpose.msra.mxu0 0.0
    %2207 = vmatprep.mubr.f32.mxu0 0.0
    %2208 = vmatmul.mubr.f32.gmra.mrb[0].mxu0 %v2139
    %v2209 = vpop.f32.mrb[0].mxu0
    %v2210 = vadd.f32 %v263, %v2209
    %v2211 = vpop.f32.mrb[0].mxu0
    %2212 = vdwg.mxu0
    %2214 = vrot.lane.b32.xlu0 %v2129, 64
    %v2215 = vpop.permute.xlu0 %2214
    %v2217 = vsel %vm273, %v2134, 0
    %v2219 = vsel %vm273, %v2215, 0
    %2221 = vmatprep.subr.mxu0 0.0
    %2222 = vmatpush1.xpose.msra.mxu0 %v2219
    %2223 = vmatprep.subr.mxu0 0.0
    %2224 = vmatpush1.xpose.msra.mxu0 0.0
    %2225 = vmatprep.subr.mxu0 0.0
    %2226 = vmatpush1.xpose.msra.mxu0 0.0
    %2227 = vmatprep.subr.mxu0 0.0
    %2228 = vmatpush1.xpose.msra.mxu0 0.0
    %2229 = vmatprep.subr.mxu0 0.0
    %2230 = vmatpush1.xpose.msra.mxu0 0.0
    %2231 = vmatprep.subr.mxu0 0.0
    %2232 = vmatpush1.xpose.msra.mxu0 0.0
    %2233 = vmatprep.subr.mxu0 0.0
    %2234 = vmatpush1.xpose.msra.mxu0 0.0
    %2235 = vmatprep.subr.mxu0 0.0
    %2236 = vmatpush1.xpose.msra.mxu0 0.0
    %2237 = vmatprep.subr.mxu0 0.0
    %2238 = vmatpush1.xpose.msra.mxu0 0.0
    %2239 = vmatprep.subr.mxu0 0.0
    %2240 = vmatpush1.xpose.msra.mxu0 0.0
    %2241 = vmatprep.subr.mxu0 0.0
    %2242 = vmatpush1.xpose.msra.mxu0 0.0
    %2243 = vmatprep.subr.mxu0 0.0
    %2244 = vmatpush1.xpose.msra.mxu0 0.0
    %2245 = vmatprep.subr.mxu0 0.0
    %2246 = vmatpush1.xpose.msra.mxu0 0.0
    %2247 = vmatprep.subr.mxu0 0.0
    %2248 = vmatpush1.xpose.msra.mxu0 0.0
    %2249 = vmatprep.subr.mxu0 0.0
    %2250 = vmatpush1.xpose.msra.mxu0 0.0
    %2251 = vmatprep.subr.mxu0 0.0
    %2252 = vmatpush1.xpose.msra.mxu0 0.0
    %2253 = vmatprep.subr.mxu0 0.0
    %2254 = vmatpush1.xpose.msra.mxu0 0.0
    %2255 = vmatprep.subr.mxu0 0.0
    %2256 = vmatpush1.xpose.msra.mxu0 0.0
    %2257 = vmatprep.subr.mxu0 0.0
    %2258 = vmatpush1.xpose.msra.mxu0 0.0
    %2259 = vmatprep.subr.mxu0 0.0
    %2260 = vmatpush1.xpose.msra.mxu0 0.0
    %2261 = vmatprep.subr.mxu0 0.0
    %2262 = vmatpush1.xpose.msra.mxu0 0.0
    %2263 = vmatprep.subr.mxu0 0.0
    %2264 = vmatpush1.xpose.msra.mxu0 0.0
    %2265 = vmatprep.subr.mxu0 0.0
    %2266 = vmatpush1.xpose.msra.mxu0 0.0
    %2267 = vmatprep.subr.mxu0 0.0
    %2268 = vmatpush1.xpose.msra.mxu0 0.0
    %2269 = vmatprep.subr.mxu0 0.0
    %2270 = vmatpush1.xpose.msra.mxu0 0.0
    %2271 = vmatprep.subr.mxu0 0.0
    %2272 = vmatpush1.xpose.msra.mxu0 0.0
    %2273 = vmatprep.subr.mxu0 0.0
    %2274 = vmatpush1.xpose.msra.mxu0 0.0
    %2275 = vmatprep.subr.mxu0 0.0
    %2276 = vmatpush1.xpose.msra.mxu0 0.0
    %2277 = vmatprep.subr.mxu0 0.0
    %2278 = vmatpush1.xpose.msra.mxu0 0.0
    %2279 = vmatprep.subr.mxu0 0.0
    %2280 = vmatpush1.xpose.msra.mxu0 0.0
    %2281 = vmatprep.subr.mxu0 0.0
    %2282 = vmatpush1.xpose.msra.mxu0 0.0
    %2283 = vmatprep.subr.mxu0 0.0
    %2284 = vmatpush1.xpose.msra.mxu0 0.0
    %2285 = vmatprep.mubr.f32.mxu0 0.0
    %2286 = vmatmul.mubr.f32.gmra.mrb[0].mxu0 %v2217
    %v2287 = vpop.f32.mrb[0].mxu0
    %v2288 = vadd.f32 %v267, %v2287
    %v2289 = vpop.f32.mrb[0].mxu0
    %2290 = vdwg.mxu0
    %v2291 = vsel %vm427, %v2210, -inf
    %2292 = vmax.xlane.f32.xlu0 %v2291
    %v2293 = vpop.xlane.xlu0 %2292
    %v2294 = vsel %vm427, %v2288, -inf
    %2295 = vmax.xlane.f32.xlu0 %v2294
    %v2296 = vpop.xlane.xlu0 %2295
    %v2297 = vsub.f32 %v2210, %v2293
    %v2298 = vsub.f32 %v2288, %v2296
    %v2299 = vmul.f32 %v2297, 1.442695
    %v2300 = vpow.pop %v2299
    %v2301 = vmul.f32 %v2298, 1.442695
    %v2302 = vpow.pop %v2301
    %v2303 = vsel %vm427, %v2300, 0.0
    %2304 = vadd.xlane.f32.xlu0 %v2303
    %v2305 = vpop.xlane.xlu0 %2304
    %v2306 = vsel %vm427, %v2302, 0.0
    %2307 = vadd.xlane.f32.xlu0 %v2306
    %v2308 = vpop.xlane.xlu0 %2307
    %v2309 = vrcp.pop %v2305
    %v2310 = vrcp.pop %v2308
    %v2311 = vmul.f32 %v2300, %v2309
    %v2312 = vmul.f32 %v2302, %v2310
    %v2314 = vsel %vm427, %v2311, 0
    %2316 = vmatprep.subr.mxu0 0.0
    %2317 = vmatpush1.msra.mxu0 %v2125
    %2318 = vmatprep.subr.mxu0 0.0
    %2319 = vmatpush1.msra.mxu0 0.0
    %2320 = vmatprep.subr.mxu0 0.0
    %2321 = vmatpush1.msra.mxu0 0.0
    %2322 = vmatprep.subr.mxu0 0.0
    %2323 = vmatpush1.msra.mxu0 0.0
    %2324 = vmatprep.subr.mxu0 0.0
    %2325 = vmatpush1.msra.mxu0 0.0
    %2326 = vmatprep.subr.mxu0 0.0
    %2327 = vmatpush1.msra.mxu0 0.0
    %2328 = vmatprep.subr.mxu0 0.0
    %2329 = vmatpush1.msra.mxu0 0.0
    %2330 = vmatprep.subr.mxu0 0.0
    %2331 = vmatpush1.msra.mxu0 0.0
    %2332 = vmatprep.subr.mxu0 0.0
    %2333 = vmatpush1.msra.mxu0 0.0
    %2334 = vmatprep.subr.mxu0 0.0
    %2335 = vmatpush1.msra.mxu0 0.0
    %2336 = vmatprep.subr.mxu0 0.0
    %2337 = vmatpush1.msra.mxu0 0.0
    %2338 = vmatprep.subr.mxu0 0.0
    %2339 = vmatpush1.msra.mxu0 0.0
    %2340 = vmatprep.subr.mxu0 0.0
    %2341 = vmatpush1.msra.mxu0 0.0
    %2342 = vmatprep.subr.mxu0 0.0
    %2343 = vmatpush1.msra.mxu0 0.0
    %2344 = vmatprep.subr.mxu0 0.0
    %2345 = vmatpush1.msra.mxu0 0.0
    %2346 = vmatprep.subr.mxu0 0.0
    %2347 = vmatpush1.msra.mxu0 0.0
    %2348 = vmatprep.subr.mxu0 0.0
    %2349 = vmatpush1.msra.mxu0 0.0
    %2350 = vmatprep.subr.mxu0 0.0
    %2351 = vmatpush1.msra.mxu0 0.0
    %2352 = vmatprep.subr.mxu0 0.0
    %2353 = vmatpush1.msra.mxu0 0.0
    %2354 = vmatprep.subr.mxu0 0.0
    %2355 = vmatpush1.msra.mxu0 0.0
    %2356 = vmatprep.subr.mxu0 0.0
    %2357 = vmatpush1.msra.mxu0 0.0
    %2358 = vmatprep.subr.mxu0 0.0
    %2359 = vmatpush1.msra.mxu0 0.0
    %2360 = vmatprep.subr.mxu0 0.0
    %2361 = vmatpush1.msra.mxu0 0.0
    %2362 = vmatprep.subr.mxu0 0.0
    %2363 = vmatpush1.msra.mxu0 0.0
    %2364 = vmatprep.subr.mxu0 0.0
    %2365 = vmatpush1.msra.mxu0 0.0
    %2366 = vmatprep.subr.mxu0 0.0
    %2367 = vmatpush1.msra.mxu0 0.0
    %2368 = vmatprep.subr.mxu0 0.0
    %2369 = vmatpush1.msra.mxu0 0.0
    %2370 = vmatprep.subr.mxu0 0.0
    %2371 = vmatpush1.msra.mxu0 0.0
    %2372 = vmatprep.subr.mxu0 0.0
    %2373 = vmatpush1.msra.mxu0 0.0
    %2374 = vmatprep.subr.mxu0 0.0
    %2375 = vmatpush1.msra.mxu0 0.0
    %2376 = vmatprep.subr.mxu0 0.0
    %2377 = vmatpush1.msra.mxu0 0.0
    %2378 = vmatprep.subr.mxu0 0.0
    %2379 = vmatpush1.msra.mxu0 0.0
    %2380 = vmatprep.mubr.f32.mxu0 0.0
    %2381 = vmatmul.mubr.f32.gmra.mrb[0].mxu0 %v2314
    %v2382 = vpop.f32.mrb[0].mxu0
    %v2383 = vadd.f32 0.0, %v2382
    %v2384 = vpop.f32.mrb[0].mxu0
    %2385 = vdwg.mxu0
    %v2387 = vsel %vm427, %v2312, 0
    %2389 = vmatprep.subr.mxu0 0.0
    %2390 = vmatpush1.msra.mxu0 %v2131
    %2391 = vmatprep.subr.mxu0 0.0
    %2392 = vmatpush1.msra.mxu0 0.0
    %2393 = vmatprep.subr.mxu0 0.0
    %2394 = vmatpush1.msra.mxu0 0.0
    %2395 = vmatprep.subr.mxu0 0.0
    %2396 = vmatpush1.msra.mxu0 0.0
    %2397 = vmatprep.subr.mxu0 0.0
    %2398 = vmatpush1.msra.mxu0 0.0
    %2399 = vmatprep.subr.mxu0 0.0
    %2400 = vmatpush1.msra.mxu0 0.0
    %2401 = vmatprep.subr.mxu0 0.0
    %2402 = vmatpush1.msra.mxu0 0.0
    %2403 = vmatprep.subr.mxu0 0.0
    %2404 = vmatpush1.msra.mxu0 0.0
    %2405 = vmatprep.subr.mxu0 0.0
    %2406 = vmatpush1.msra.mxu0 0.0
    %2407 = vmatprep.subr.mxu0 0.0
    %2408 = vmatpush1.msra.mxu0 0.0
    %2409 = vmatprep.subr.mxu0 0.0
    %2410 = vmatpush1.msra.mxu0 0.0
    %2411 = vmatprep.subr.mxu0 0.0
    %2412 = vmatpush1.msra.mxu0 0.0
    %2413 = vmatprep.subr.mxu0 0.0
    %2414 = vmatpush1.msra.mxu0 0.0
    %2415 = vmatprep.subr.mxu0 0.0
    %2416 = vmatpush1.msra.mxu0 0.0
    %2417 = vmatprep.subr.mxu0 0.0
    %2418 = vmatpush1.msra.mxu0 0.0
    %2419 = vmatprep.subr.mxu0 0.0
    %2420 = vmatpush1.msra.mxu0 0.0
    %2421 = vmatprep.subr.mxu0 0.0
    %2422 = vmatpush1.msra.mxu0 0.0
    %2423 = vmatprep.subr.mxu0 0.0
    %2424 = vmatpush1.msra.mxu0 0.0
    %2425 = vmatprep.subr.mxu0 0.0
    %2426 = vmatpush1.msra.mxu0 0.0
    %2427 = vmatprep.subr.mxu0 0.0
    %2428 = vmatpush1.msra.mxu0 0.0
    %2429 = vmatprep.subr.mxu0 0.0
    %2430 = vmatpush1.msra.mxu0 0.0
    %2431 = vmatprep.subr.mxu0 0.0
    %2432 = vmatpush1.msra.mxu0 0.0
    %2433 = vmatprep.subr.mxu0 0.0
    %2434 = vmatpush1.msra.mxu0 0.0
    %2435 = vmatprep.subr.mxu0 0.0
    %2436 = vmatpush1.msra.mxu0 0.0
    %2437 = vmatprep.subr.mxu0 0.0
    %2438 = vmatpush1.msra.mxu0 0.0
    %2439 = vmatprep.subr.mxu0 0.0
    %2440 = vmatpush1.msra.mxu0 0.0
    %2441 = vmatprep.subr.mxu0 0.0
    %2442 = vmatpush1.msra.mxu0 0.0
    %2443 = vmatprep.subr.mxu0 0.0
    %2444 = vmatpush1.msra.mxu0 0.0
    %2445 = vmatprep.subr.mxu0 0.0
    %2446 = vmatpush1.msra.mxu0 0.0
    %2447 = vmatprep.subr.mxu0 0.0
    %2448 = vmatpush1.msra.mxu0 0.0
    %2449 = vmatprep.subr.mxu0 0.0
    %2450 = vmatpush1.msra.mxu0 0.0
    %2451 = vmatprep.subr.mxu0 0.0
    %2452 = vmatpush1.msra.mxu0 0.0
    %2453 = vmatprep.mubr.f32.mxu0 0.0
    %2454 = vmatmul.mubr.f32.gmra.mrb[0].mxu0 %v2387
    %v2455 = vpop.f32.mrb[0].mxu0
    %v2456 = vadd.f32 0.0, %v2455
    %v2457 = vpop.f32.mrb[0].mxu0
    %2458 = vdwg.mxu0
    %2459 = vrot.lane.b32.xlu0 %v2133, 112
    %v2460 = vpop.permute.xlu0 %2459
    %2461 = vrot.lane.b32.xlu0 %v2123, 48
    %v2462 = vpop.permute.xlu0 %2461
    %v2463 = vsel %vm273, %v2460, 0
    %v2465 = vsel %vm273, %v2462, 0
    %2467 = vmatprep.subr.mxu0 0.0
    %2468 = vmatpush1.xpose.msra.mxu0 %v2465
    %2469 = vmatprep.subr.mxu0 0.0
    %2470 = vmatpush1.xpose.msra.mxu0 0.0
    %2471 = vmatprep.subr.mxu0 0.0
    %2472 = vmatpush1.xpose.msra.mxu0 0.0
    %2473 = vmatprep.subr.mxu0 0.0
    %2474 = vmatpush1.xpose.msra.mxu0 0.0
    %2475 = vmatprep.subr.mxu0 0.0
    %2476 = vmatpush1.xpose.msra.mxu0 0.0
    %2477 = vmatprep.subr.mxu0 0.0
    %2478 = vmatpush1.xpose.msra.mxu0 0.0
    %2479 = vmatprep.subr.mxu0 0.0
    %2480 = vmatpush1.xpose.msra.mxu0 0.0
    %2481 = vmatprep.subr.mxu0 0.0
    %2482 = vmatpush1.xpose.msra.mxu0 0.0
    %2483 = vmatprep.subr.mxu0 0.0
    %2484 = vmatpush1.xpose.msra.mxu0 0.0
    %2485 = vmatprep.subr.mxu0 0.0
    %2486 = vmatpush1.xpose.msra.mxu0 0.0
    %2487 = vmatprep.subr.mxu0 0.0
    %2488 = vmatpush1.xpose.msra.mxu0 0.0
    %2489 = vmatprep.subr.mxu0 0.0
    %2490 = vmatpush1.xpose.msra.mxu0 0.0
    %2491 = vmatprep.subr.mxu0 0.0
    %2492 = vmatpush1.xpose.msra.mxu0 0.0
    %2493 = vmatprep.subr.mxu0 0.0
    %2494 = vmatpush1.xpose.msra.mxu0 0.0
    %2495 = vmatprep.subr.mxu0 0.0
    %2496 = vmatpush1.xpose.msra.mxu0 0.0
    %2497 = vmatprep.subr.mxu0 0.0
    %2498 = vmatpush1.xpose.msra.mxu0 0.0
    %2499 = vmatprep.subr.mxu0 0.0
    %2500 = vmatpush1.xpose.msra.mxu0 0.0
    %2501 = vmatprep.subr.mxu0 0.0
    %2502 = vmatpush1.xpose.msra.mxu0 0.0
    %2503 = vmatprep.subr.mxu0 0.0
    %2504 = vmatpush1.xpose.msra.mxu0 0.0
    %2505 = vmatprep.subr.mxu0 0.0
    %2506 = vmatpush1.xpose.msra.mxu0 0.0
    %2507 = vmatprep.subr.mxu0 0.0
    %2508 = vmatpush1.xpose.msra.mxu0 0.0
    %2509 = vmatprep.subr.mxu0 0.0
    %2510 = vmatpush1.xpose.msra.mxu0 0.0
    %2511 = vmatprep.subr.mxu0 0.0
    %2512 = vmatpush1.xpose.msra.mxu0 0.0
    %2513 = vmatprep.subr.mxu0 0.0
    %2514 = vmatpush1.xpose.msra.mxu0 0.0
    %2515 = vmatprep.subr.mxu0 0.0
    %2516 = vmatpush1.xpose.msra.mxu0 0.0
    %2517 = vmatprep.subr.mxu0 0.0
    %2518 = vmatpush1.xpose.msra.mxu0 0.0
    %2519 = vmatprep.subr.mxu0 0.0
    %2520 = vmatpush1.xpose.msra.mxu0 0.0
    %2521 = vmatprep.subr.mxu0 0.0
    %2522 = vmatpush1.xpose.msra.mxu0 0.0
    %2523 = vmatprep.subr.mxu0 0.0
    %2524 = vmatpush1.xpose.msra.mxu0 0.0
    %2525 = vmatprep.subr.mxu0 0.0
    %2526 = vmatpush1.xpose.msra.mxu0 0.0
    %2527 = vmatprep.subr.mxu0 0.0
    %2528 = vmatpush1.xpose.msra.mxu0 0.0
    %2529 = vmatprep.subr.mxu0 0.0
    %2530 = vmatpush1.xpose.msra.mxu0 0.0
    %2531 = vmatprep.mubr.f32.mxu0 0.0
    %2532 = vmatmul.mubr.f32.gmra.mrb[0].mxu0 %v2463
    %v2533 = vpop.f32.mrb[0].mxu0
    %v2534 = vadd.f32 %v263, %v2533
    %v2535 = vpop.f32.mrb[0].mxu0
    %2536 = vdwg.mxu0
    %2537 = vrot.lane.b32.xlu0 %v2134, 112
    %v2538 = vpop.permute.xlu0 %2537
    %2539 = vrot.lane.b32.xlu0 %v2129, 48
    %v2540 = vpop.permute.xlu0 %2539
    %v2541 = vsel %vm273, %v2538, 0
    %v2543 = vsel %vm273, %v2540, 0
    %2545 = vmatprep.subr.mxu0 0.0
    %2546 = vmatpush1.xpose.msra.mxu0 %v2543
    %2547 = vmatprep.subr.mxu0 0.0
    %2548 = vmatpush1.xpose.msra.mxu0 0.0
    %2549 = vmatprep.subr.mxu0 0.0
    %2550 = vmatpush1.xpose.msra.mxu0 0.0
    %2551 = vmatprep.subr.mxu0 0.0
    %2552 = vmatpush1.xpose.msra.mxu0 0.0
    %2553 = vmatprep.subr.mxu0 0.0
    %2554 = vmatpush1.xpose.msra.mxu0 0.0
    %2555 = vmatprep.subr.mxu0 0.0
    %2556 = vmatpush1.xpose.msra.mxu0 0.0
    %2557 = vmatprep.subr.mxu0 0.0
    %2558 = vmatpush1.xpose.msra.mxu0 0.0
    %2559 = vmatprep.subr.mxu0 0.0
    %2560 = vmatpush1.xpose.msra.mxu0 0.0
    %2561 = vmatprep.subr.mxu0 0.0
    %2562 = vmatpush1.xpose.msra.mxu0 0.0
    %2563 = vmatprep.subr.mxu0 0.0
    %2564 = vmatpush1.xpose.msra.mxu0 0.0
    %2565 = vmatprep.subr.mxu0 0.0
    %2566 = vmatpush1.xpose.msra.mxu0 0.0
    %2567 = vmatprep.subr.mxu0 0.0
    %2568 = vmatpush1.xpose.msra.mxu0 0.0
    %2569 = vmatprep.subr.mxu0 0.0
    %2570 = vmatpush1.xpose.msra.mxu0 0.0
    %2571 = vmatprep.subr.mxu0 0.0
    %2572 = vmatpush1.xpose.msra.mxu0 0.0
    %2573 = vmatprep.subr.mxu0 0.0
    %2574 = vmatpush1.xpose.msra.mxu0 0.0
    %2575 = vmatprep.subr.mxu0 0.0
    %2576 = vmatpush1.xpose.msra.mxu0 0.0
    %2577 = vmatprep.subr.mxu0 0.0
    %2578 = vmatpush1.xpose.msra.mxu0 0.0
    %2579 = vmatprep.subr.mxu0 0.0
    %2580 = vmatpush1.xpose.msra.mxu0 0.0
    %2581 = vmatprep.subr.mxu0 0.0
    %2582 = vmatpush1.xpose.msra.mxu0 0.0
    %2583 = vmatprep.subr.mxu0 0.0
    %2584 = vmatpush1.xpose.msra.mxu0 0.0
    %2585 = vmatprep.subr.mxu0 0.0
    %2586 = vmatpush1.xpose.msra.mxu0 0.0
    %2587 = vmatprep.subr.mxu0 0.0
    %2588 = vmatpush1.xpose.msra.mxu0 0.0
    %2589 = vmatprep.subr.mxu0 0.0
    %2590 = vmatpush1.xpose.msra.mxu0 0.0
    %2591 = vmatprep.subr.mxu0 0.0
    %2592 = vmatpush1.xpose.msra.mxu0 0.0
    %2593 = vmatprep.subr.mxu0 0.0
    %2594 = vmatpush1.xpose.msra.mxu0 0.0
    %2595 = vmatprep.subr.mxu0 0.0
    %2596 = vmatpush1.xpose.msra.mxu0 0.0
    %2597 = vmatprep.subr.mxu0 0.0
    %2598 = vmatpush1.xpose.msra.mxu0 0.0
    %2599 = vmatprep.subr.mxu0 0.0
    %2600 = vmatpush1.xpose.msra.mxu0 0.0
    %2601 = vmatprep.subr.mxu0 0.0
    %2602 = vmatpush1.xpose.msra.mxu0 0.0
    %2603 = vmatprep.subr.mxu0 0.0
    %2604 = vmatpush1.xpose.msra.mxu0 0.0
    %2605 = vmatprep.subr.mxu0 0.0
    %2606 = vmatpush1.xpose.msra.mxu0 0.0
    %2607 = vmatprep.subr.mxu0 0.0
    %2608 = vmatpush1.xpose.msra.mxu0 0.0
    %2609 = vmatprep.mubr.f32.mxu0 0.0
    %2610 = vmatmul.mubr.f32.gmra.mrb[0].mxu0 %v2541
    %v2611 = vpop.f32.mrb[0].mxu0
    %v2612 = vadd.f32 %v267, %v2611
    %v2613 = vpop.f32.mrb[0].mxu0
    %2614 = vdwg.mxu0
    %v2615 = vsel %vm427, %v2534, -inf
    %2616 = vmax.xlane.f32.xlu0 %v2615
    %v2617 = vpop.xlane.xlu0 %2616
    %v2618 = vsel %vm427, %v2612, -inf
    %2619 = vmax.xlane.f32.xlu0 %v2618
    %v2620 = vpop.xlane.xlu0 %2619
    %v2621 = vsub.f32 %v2534, %v2617
    %v2622 = vsub.f32 %v2612, %v2620
    %v2623 = vmul.f32 %v2621, 1.442695
    %v2624 = vpow.pop %v2623
    %v2625 = vmul.f32 %v2622, 1.442695
    %v2626 = vpow.pop %v2625
    %v2627 = vsel %vm427, %v2624, 0.0
    %2628 = vadd.xlane.f32.xlu0 %v2627
    %v2629 = vpop.xlane.xlu0 %2628
    %v2630 = vsel %vm427, %v2626, 0.0
    %2631 = vadd.xlane.f32.xlu0 %v2630
    %v2632 = vpop.xlane.xlu0 %2631
    %v2633 = vrcp.pop %v2629
    %v2634 = vrcp.pop %v2632
    %v2635 = vmul.f32 %v2624, %v2633
    %v2636 = vmul.f32 %v2626, %v2634
    %2638 = vrot.lane.b32.xlu0 %v2125, 112
    %v2639 = vpop.permute.xlu0 %2638
    %v2642 = vsel %vm427, %v2635, 0
    %2644 = vmatprep.subr.mxu0 0.0
    %2645 = vmatpush1.msra.mxu0 %v2639
    %2646 = vmatprep.subr.mxu0 0.0
    %2647 = vmatpush1.msra.mxu0 0.0
    %2648 = vmatprep.subr.mxu0 0.0
    %2649 = vmatpush1.msra.mxu0 0.0
    %2650 = vmatprep.subr.mxu0 0.0
    %2651 = vmatpush1.msra.mxu0 0.0
    %2652 = vmatprep.subr.mxu0 0.0
    %2653 = vmatpush1.msra.mxu0 0.0
    %2654 = vmatprep.subr.mxu0 0.0
    %2655 = vmatpush1.msra.mxu0 0.0
    %2656 = vmatprep.subr.mxu0 0.0
    %2657 = vmatpush1.msra.mxu0 0.0
    %2658 = vmatprep.subr.mxu0 0.0
    %2659 = vmatpush1.msra.mxu0 0.0
    %2660 = vmatprep.subr.mxu0 0.0
    %2661 = vmatpush1.msra.mxu0 0.0
    %2662 = vmatprep.subr.mxu0 0.0
    %2663 = vmatpush1.msra.mxu0 0.0
    %2664 = vmatprep.subr.mxu0 0.0
    %2665 = vmatpush1.msra.mxu0 0.0
    %2666 = vmatprep.subr.mxu0 0.0
    %2667 = vmatpush1.msra.mxu0 0.0
    %2668 = vmatprep.subr.mxu0 0.0
    %2669 = vmatpush1.msra.mxu0 0.0
    %2670 = vmatprep.subr.mxu0 0.0
    %2671 = vmatpush1.msra.mxu0 0.0
    %2672 = vmatprep.subr.mxu0 0.0
    %2673 = vmatpush1.msra.mxu0 0.0
    %2674 = vmatprep.subr.mxu0 0.0
    %2675 = vmatpush1.msra.mxu0 0.0
    %2676 = vmatprep.subr.mxu0 0.0
    %2677 = vmatpush1.msra.mxu0 0.0
    %2678 = vmatprep.subr.mxu0 0.0
    %2679 = vmatpush1.msra.mxu0 0.0
    %2680 = vmatprep.subr.mxu0 0.0
    %2681 = vmatpush1.msra.mxu0 0.0
    %2682 = vmatprep.subr.mxu0 0.0
    %2683 = vmatpush1.msra.mxu0 0.0
    %2684 = vmatprep.subr.mxu0 0.0
    %2685 = vmatpush1.msra.mxu0 0.0
    %2686 = vmatprep.subr.mxu0 0.0
    %2687 = vmatpush1.msra.mxu0 0.0
    %2688 = vmatprep.subr.mxu0 0.0
    %2689 = vmatpush1.msra.mxu0 0.0
    %2690 = vmatprep.subr.mxu0 0.0
    %2691 = vmatpush1.msra.mxu0 0.0
    %2692 = vmatprep.subr.mxu0 0.0
    %2693 = vmatpush1.msra.mxu0 0.0
    %2694 = vmatprep.subr.mxu0 0.0
    %2695 = vmatpush1.msra.mxu0 0.0
    %2696 = vmatprep.subr.mxu0 0.0
    %2697 = vmatpush1.msra.mxu0 0.0
    %2698 = vmatprep.subr.mxu0 0.0
    %2699 = vmatpush1.msra.mxu0 0.0
    %2700 = vmatprep.subr.mxu0 0.0
    %2701 = vmatpush1.msra.mxu0 0.0
    %2702 = vmatprep.subr.mxu0 0.0
    %2703 = vmatpush1.msra.mxu0 0.0
    %2704 = vmatprep.subr.mxu0 0.0
    %2705 = vmatpush1.msra.mxu0 0.0
    %2706 = vmatprep.subr.mxu0 0.0
    %2707 = vmatpush1.msra.mxu0 0.0
    %2708 = vmatprep.mubr.f32.mxu0 0.0
    %2709 = vmatmul.mubr.f32.gmra.mrb[0].mxu0 %v2642
    %v2710 = vpop.f32.mrb[0].mxu0
    %v2711 = vadd.f32 0.0, %v2710
    %v2712 = vpop.f32.mrb[0].mxu0
    %2713 = vdwg.mxu0
    %2715 = vrot.lane.b32.xlu0 %v2131, 112
    %v2716 = vpop.permute.xlu0 %2715
    %v2719 = vsel %vm427, %v2636, 0
    %2721 = vmatprep.subr.mxu0 0.0
    %2722 = vmatpush1.msra.mxu0 %v2716
    %2723 = vmatprep.subr.mxu0 0.0
    %2724 = vmatpush1.msra.mxu0 0.0
    %2725 = vmatprep.subr.mxu0 0.0
    %2726 = vmatpush1.msra.mxu0 0.0
    %2727 = vmatprep.subr.mxu0 0.0
    %2728 = vmatpush1.msra.mxu0 0.0
    %2729 = vmatprep.subr.mxu0 0.0
    %2730 = vmatpush1.msra.mxu0 0.0
    %2731 = vmatprep.subr.mxu0 0.0
    %2732 = vmatpush1.msra.mxu0 0.0
    %2733 = vmatprep.subr.mxu0 0.0
    %2734 = vmatpush1.msra.mxu0 0.0
    %2735 = vmatprep.subr.mxu0 0.0
    %2736 = vmatpush1.msra.mxu0 0.0
    %2737 = vmatprep.subr.mxu0 0.0
    %2738 = vmatpush1.msra.mxu0 0.0
    %2739 = vmatprep.subr.mxu0 0.0
    %2740 = vmatpush1.msra.mxu0 0.0
    %2741 = vmatprep.subr.mxu0 0.0
    %2742 = vmatpush1.msra.mxu0 0.0
    %2743 = vmatprep.subr.mxu0 0.0
    %2744 = vmatpush1.msra.mxu0 0.0
    %2745 = vmatprep.subr.mxu0 0.0
    %2746 = vmatpush1.msra.mxu0 0.0
    %2747 = vmatprep.subr.mxu0 0.0
    %2748 = vmatpush1.msra.mxu0 0.0
    %2749 = vmatprep.subr.mxu0 0.0
    %2750 = vmatpush1.msra.mxu0 0.0
    %2751 = vmatprep.subr.mxu0 0.0
    %2752 = vmatpush1.msra.mxu0 0.0
    %2753 = vmatprep.subr.mxu0 0.0
    %2754 = vmatpush1.msra.mxu0 0.0
    %2755 = vmatprep.subr.mxu0 0.0
    %2756 = vmatpush1.msra.mxu0 0.0
    %2757 = vmatprep.subr.mxu0 0.0
    %2758 = vmatpush1.msra.mxu0 0.0
    %2759 = vmatprep.subr.mxu0 0.0
    %2760 = vmatpush1.msra.mxu0 0.0
    %2761 = vmatprep.subr.mxu0 0.0
    %2762 = vmatpush1.msra.mxu0 0.0
    %2763 = vmatprep.subr.mxu0 0.0
    %2764 = vmatpush1.msra.mxu0 0.0
    %2765 = vmatprep.subr.mxu0 0.0
    %2766 = vmatpush1.msra.mxu0 0.0
    %2767 = vmatprep.subr.mxu0 0.0
    %2768 = vmatpush1.msra.mxu0 0.0
    %2769 = vmatprep.subr.mxu0 0.0
    %2770 = vmatpush1.msra.mxu0 0.0
    %2771 = vmatprep.subr.mxu0 0.0
    %2772 = vmatpush1.msra.mxu0 0.0
    %2773 = vmatprep.subr.mxu0 0.0
    %2774 = vmatpush1.msra.mxu0 0.0
    %2775 = vmatprep.subr.mxu0 0.0
    %2776 = vmatpush1.msra.mxu0 0.0
    %2777 = vmatprep.subr.mxu0 0.0
    %2778 = vmatpush1.msra.mxu0 0.0
    %2779 = vmatprep.subr.mxu0 0.0
    %2780 = vmatpush1.msra.mxu0 0.0
    %2781 = vmatprep.subr.mxu0 0.0
    %2782 = vmatpush1.msra.mxu0 0.0
    %2783 = vmatprep.subr.mxu0 0.0
    %2784 = vmatpush1.msra.mxu0 0.0
    %2785 = vmatprep.mubr.f32.mxu0 0.0
    %2786 = vmatmul.mubr.f32.gmra.mrb[0].mxu0 %v2719
    %v2787 = vpop.f32.mrb[0].mxu0
    %v2788 = vadd.f32 0.0, %v2787
    %v2789 = vpop.f32.mrb[0].mxu0
    %2790 = vdwg.mxu0
    %2791 = vrot.lane.b32.xlu0 %v2133, 96
    %v2792 = vpop.permute.xlu0 %2791
    %2793 = vrot.lane.b32.xlu0 %v2123, 32
    %v2794 = vpop.permute.xlu0 %2793
    %v2795 = vsel %vm273, %v2792, 0
    %v2797 = vsel %vm273, %v2794, 0
    %2799 = vmatprep.subr.mxu0 0.0
    %2800 = vmatpush1.xpose.msra.mxu0 %v2797
    %2801 = vmatprep.subr.mxu0 0.0
    %2802 = vmatpush1.xpose.msra.mxu0 0.0
    %2803 = vmatprep.subr.mxu0 0.0
    %2804 = vmatpush1.xpose.msra.mxu0 0.0
    %2805 = vmatprep.subr.mxu0 0.0
    %2806 = vmatpush1.xpose.msra.mxu0 0.0
    %2807 = vmatprep.subr.mxu0 0.0
    %2808 = vmatpush1.xpose.msra.mxu0 0.0
    %2809 = vmatprep.subr.mxu0 0.0
    %2810 = vmatpush1.xpose.msra.mxu0 0.0
    %2811 = vmatprep.subr.mxu0 0.0
    %2812 = vmatpush1.xpose.msra.mxu0 0.0
    %2813 = vmatprep.subr.mxu0 0.0
    %2814 = vmatpush1.xpose.msra.mxu0 0.0
    %2815 = vmatprep.subr.mxu0 0.0
    %2816 = vmatpush1.xpose.msra.mxu0 0.0
    %2817 = vmatprep.subr.mxu0 0.0
    %2818 = vmatpush1.xpose.msra.mxu0 0.0
    %2819 = vmatprep.subr.mxu0 0.0
    %2820 = vmatpush1.xpose.msra.mxu0 0.0
    %2821 = vmatprep.subr.mxu0 0.0
    %2822 = vmatpush1.xpose.msra.mxu0 0.0
    %2823 = vmatprep.subr.mxu0 0.0
    %2824 = vmatpush1.xpose.msra.mxu0 0.0
    %2825 = vmatprep.subr.mxu0 0.0
    %2826 = vmatpush1.xpose.msra.mxu0 0.0
    %2827 = vmatprep.subr.mxu0 0.0
    %2828 = vmatpush1.xpose.msra.mxu0 0.0
    %2829 = vmatprep.subr.mxu0 0.0
    %2830 = vmatpush1.xpose.msra.mxu0 0.0
    %2831 = vmatprep.subr.mxu0 0.0
    %2832 = vmatpush1.xpose.msra.mxu0 0.0
    %2833 = vmatprep.subr.mxu0 0.0
    %2834 = vmatpush1.xpose.msra.mxu0 0.0
    %2835 = vmatprep.subr.mxu0 0.0
    %2836 = vmatpush1.xpose.msra.mxu0 0.0
    %2837 = vmatprep.subr.mxu0 0.0
    %2838 = vmatpush1.xpose.msra.mxu0 0.0
    %2839 = vmatprep.subr.mxu0 0.0
    %2840 = vmatpush1.xpose.msra.mxu0 0.0
    %2841 = vmatprep.subr.mxu0 0.0
    %2842 = vmatpush1.xpose.msra.mxu0 0.0
    %2843 = vmatprep.subr.mxu0 0.0
    %2844 = vmatpush1.xpose.msra.mxu0 0.0
    %2845 = vmatprep.subr.mxu0 0.0
    %2846 = vmatpush1.xpose.msra.mxu0 0.0
    %2847 = vmatprep.subr.mxu0 0.0
    %2848 = vmatpush1.xpose.msra.mxu0 0.0
    %2849 = vmatprep.subr.mxu0 0.0
    %2850 = vmatpush1.xpose.msra.mxu0 0.0
    %2851 = vmatprep.subr.mxu0 0.0
    %2852 = vmatpush1.xpose.msra.mxu0 0.0
    %2853 = vmatprep.subr.mxu0 0.0
    %2854 = vmatpush1.xpose.msra.mxu0 0.0
    %2855 = vmatprep.subr.mxu0 0.0
    %2856 = vmatpush1.xpose.msra.mxu0 0.0
    %2857 = vmatprep.subr.mxu0 0.0
    %2858 = vmatpush1.xpose.msra.mxu0 0.0
    %2859 = vmatprep.subr.mxu0 0.0
    %2860 = vmatpush1.xpose.msra.mxu0 0.0
    %2861 = vmatprep.subr.mxu0 0.0
    %2862 = vmatpush1.xpose.msra.mxu0 0.0
    %2863 = vmatprep.mubr.f32.mxu0 0.0
    %2864 = vmatmul.mubr.f32.gmra.mrb[0].mxu0 %v2795
    %v2865 = vpop.f32.mrb[0].mxu0
    %v2866 = vadd.f32 %v263, %v2865
    %v2867 = vpop.f32.mrb[0].mxu0
    %2868 = vdwg.mxu0
    %2869 = vrot.lane.b32.xlu0 %v2134, 96
    %v2870 = vpop.permute.xlu0 %2869
    %2871 = vrot.lane.b32.xlu0 %v2129, 32
    %v2872 = vpop.permute.xlu0 %2871
    %v2873 = vsel %vm273, %v2870, 0
    %v2875 = vsel %vm273, %v2872, 0
    %2877 = vmatprep.subr.mxu0 0.0
    %2878 = vmatpush1.xpose.msra.mxu0 %v2875
    %2879 = vmatprep.subr.mxu0 0.0
    %2880 = vmatpush1.xpose.msra.mxu0 0.0
    %2881 = vmatprep.subr.mxu0 0.0
    %2882 = vmatpush1.xpose.msra.mxu0 0.0
    %2883 = vmatprep.subr.mxu0 0.0
    %2884 = vmatpush1.xpose.msra.mxu0 0.0
    %2885 = vmatprep.subr.mxu0 0.0
    %2886 = vmatpush1.xpose.msra.mxu0 0.0
    %2887 = vmatprep.subr.mxu0 0.0
    %2888 = vmatpush1.xpose.msra.mxu0 0.0
    %2889 = vmatprep.subr.mxu0 0.0
    %2890 = vmatpush1.xpose.msra.mxu0 0.0
    %2891 = vmatprep.subr.mxu0 0.0
    %2892 = vmatpush1.xpose.msra.mxu0 0.0
    %2893 = vmatprep.subr.mxu0 0.0
    %2894 = vmatpush1.xpose.msra.mxu0 0.0
    %2895 = vmatprep.subr.mxu0 0.0
    %2896 = vmatpush1.xpose.msra.mxu0 0.0
    %2897 = vmatprep.subr.mxu0 0.0
    %2898 = vmatpush1.xpose.msra.mxu0 0.0
    %2899 = vmatprep.subr.mxu0 0.0
    %2900 = vmatpush1.xpose.msra.mxu0 0.0
    %2901 = vmatprep.subr.mxu0 0.0
    %2902 = vmatpush1.xpose.msra.mxu0 0.0
    %2903 = vmatprep.subr.mxu0 0.0
    %2904 = vmatpush1.xpose.msra.mxu0 0.0
    %2905 = vmatprep.subr.mxu0 0.0
    %2906 = vmatpush1.xpose.msra.mxu0 0.0
    %2907 = vmatprep.subr.mxu0 0.0
    %2908 = vmatpush1.xpose.msra.mxu0 0.0
    %2909 = vmatprep.subr.mxu0 0.0
    %2910 = vmatpush1.xpose.msra.mxu0 0.0
    %2911 = vmatprep.subr.mxu0 0.0
    %2912 = vmatpush1.xpose.msra.mxu0 0.0
    %2913 = vmatprep.subr.mxu0 0.0
    %2914 = vmatpush1.xpose.msra.mxu0 0.0
    %2915 = vmatprep.subr.mxu0 0.0
    %2916 = vmatpush1.xpose.msra.mxu0 0.0
    %2917 = vmatprep.subr.mxu0 0.0
    %2918 = vmatpush1.xpose.msra.mxu0 0.0
    %2919 = vmatprep.subr.mxu0 0.0
    %2920 = vmatpush1.xpose.msra.mxu0 0.0
    %2921 = vmatprep.subr.mxu0 0.0
    %2922 = vmatpush1.xpose.msra.mxu0 0.0
    %2923 = vmatprep.subr.mxu0 0.0
    %2924 = vmatpush1.xpose.msra.mxu0 0.0
    %2925 = vmatprep.subr.mxu0 0.0
    %2926 = vmatpush1.xpose.msra.mxu0 0.0
    %2927 = vmatprep.subr.mxu0 0.0
    %2928 = vmatpush1.xpose.msra.mxu0 0.0
    %2929 = vmatprep.subr.mxu0 0.0
    %2930 = vmatpush1.xpose.msra.mxu0 0.0
    %2931 = vmatprep.subr.mxu0 0.0
    %2932 = vmatpush1.xpose.msra.mxu0 0.0
    %2933 = vmatprep.subr.mxu0 0.0
    %2934 = vmatpush1.xpose.msra.mxu0 0.0
    %2935 = vmatprep.subr.mxu0 0.0
    %2936 = vmatpush1.xpose.msra.mxu0 0.0
    %2937 = vmatprep.subr.mxu0 0.0
    %2938 = vmatpush1.xpose.msra.mxu0 0.0
    %2939 = vmatprep.subr.mxu0 0.0
    %2940 = vmatpush1.xpose.msra.mxu0 0.0
    %2941 = vmatprep.mubr.f32.mxu0 0.0
    %2942 = vmatmul.mubr.f32.gmra.mrb[0].mxu0 %v2873
    %v2943 = vpop.f32.mrb[0].mxu0
    %v2944 = vadd.f32 %v267, %v2943
    %v2945 = vpop.f32.mrb[0].mxu0
    %2946 = vdwg.mxu0
    %v2947 = vsel %vm427, %v2866, -inf
    %2948 = vmax.xlane.f32.xlu0 %v2947
    %v2949 = vpop.xlane.xlu0 %2948
    %v2950 = vsel %vm427, %v2944, -inf
    %2951 = vmax.xlane.f32.xlu0 %v2950
    %v2952 = vpop.xlane.xlu0 %2951
    %v2953 = vsub.f32 %v2866, %v2949
    %v2954 = vsub.f32 %v2944, %v2952
    %v2955 = vmul.f32 %v2953, 1.442695
    %v2956 = vpow.pop %v2955
    %v2957 = vmul.f32 %v2954, 1.442695
    %v2958 = vpow.pop %v2957
    %v2959 = vsel %vm427, %v2956, 0.0
    %2960 = vadd.xlane.f32.xlu0 %v2959
    %v2961 = vpop.xlane.xlu0 %2960
    %v2962 = vsel %vm427, %v2958, 0.0
    %2963 = vadd.xlane.f32.xlu0 %v2962
    %v2964 = vpop.xlane.xlu0 %2963
    %v2965 = vrcp.pop %v2961
    %v2966 = vrcp.pop %v2964
    %v2967 = vmul.f32 %v2956, %v2965
    %v2968 = vmul.f32 %v2958, %v2966
    %2969 = vrot.lane.b32.xlu0 %v2125, 96
    %v2970 = vpop.permute.xlu0 %2969
    %v2973 = vsel %vm427, %v2967, 0
    %2975 = vmatprep.subr.mxu0 0.0
    %2976 = vmatpush1.msra.mxu0 %v2970
    %2977 = vmatprep.subr.mxu0 0.0
    %2978 = vmatpush1.msra.mxu0 0.0
    %2979 = vmatprep.subr.mxu0 0.0
    %2980 = vmatpush1.msra.mxu0 0.0
    %2981 = vmatprep.subr.mxu0 0.0
    %2982 = vmatpush1.msra.mxu0 0.0
    %2983 = vmatprep.subr.mxu0 0.0
    %2984 = vmatpush1.msra.mxu0 0.0
    %2985 = vmatprep.subr.mxu0 0.0
    %2986 = vmatpush1.msra.mxu0 0.0
    %2987 = vmatprep.subr.mxu0 0.0
    %2988 = vmatpush1.msra.mxu0 0.0
    %2989 = vmatprep.subr.mxu0 0.0
    %2990 = vmatpush1.msra.mxu0 0.0
    %2991 = vmatprep.subr.mxu0 0.0
    %2992 = vmatpush1.msra.mxu0 0.0
    %2993 = vmatprep.subr.mxu0 0.0
    %2994 = vmatpush1.msra.mxu0 0.0
    %2995 = vmatprep.subr.mxu0 0.0
    %2996 = vmatpush1.msra.mxu0 0.0
    %2997 = vmatprep.subr.mxu0 0.0
    %2998 = vmatpush1.msra.mxu0 0.0
    %2999 = vmatprep.subr.mxu0 0.0
    %3000 = vmatpush1.msra.mxu0 0.0
    %3001 = vmatprep.subr.mxu0 0.0
    %3002 = vmatpush1.msra.mxu0 0.0
    %3003 = vmatprep.subr.mxu0 0.0
    %3004 = vmatpush1.msra.mxu0 0.0
    %3005 = vmatprep.subr.mxu0 0.0
    %3006 = vmatpush1.msra.mxu0 0.0
    %3007 = vmatprep.subr.mxu0 0.0
    %3008 = vmatpush1.msra.mxu0 0.0
    %3009 = vmatprep.subr.mxu0 0.0
    %3010 = vmatpush1.msra.mxu0 0.0
    %3011 = vmatprep.subr.mxu0 0.0
    %3012 = vmatpush1.msra.mxu0 0.0
    %3013 = vmatprep.subr.mxu0 0.0
    %3014 = vmatpush1.msra.mxu0 0.0
    %3015 = vmatprep.subr.mxu0 0.0
    %3016 = vmatpush1.msra.mxu0 0.0
    %3017 = vmatprep.subr.mxu0 0.0
    %3018 = vmatpush1.msra.mxu0 0.0
    %3019 = vmatprep.subr.mxu0 0.0
    %3020 = vmatpush1.msra.mxu0 0.0
    %3021 = vmatprep.subr.mxu0 0.0
    %3022 = vmatpush1.msra.mxu0 0.0
    %3023 = vmatprep.subr.mxu0 0.0
    %3024 = vmatpush1.msra.mxu0 0.0
    %3025 = vmatprep.subr.mxu0 0.0
    %3026 = vmatpush1.msra.mxu0 0.0
    %3027 = vmatprep.subr.mxu0 0.0
    %3028 = vmatpush1.msra.mxu0 0.0
    %3029 = vmatprep.subr.mxu0 0.0
    %3030 = vmatpush1.msra.mxu0 0.0
    %3031 = vmatprep.subr.mxu0 0.0
    %3032 = vmatpush1.msra.mxu0 0.0
    %3033 = vmatprep.subr.mxu0 0.0
    %3034 = vmatpush1.msra.mxu0 0.0
    %3035 = vmatprep.subr.mxu0 0.0
    %3036 = vmatpush1.msra.mxu0 0.0
    %3037 = vmatprep.subr.mxu0 0.0
    %3038 = vmatpush1.msra.mxu0 0.0
    %3039 = vmatprep.mubr.f32.mxu0 0.0
    %3040 = vmatmul.mubr.f32.gmra.mrb[0].mxu0 %v2973
    %v3041 = vpop.f32.mrb[0].mxu0
    %v3042 = vadd.f32 0.0, %v3041
    %v3043 = vpop.f32.mrb[0].mxu0
    %3044 = vdwg.mxu0
    %3045 = vrot.lane.b32.xlu0 %v2131, 96
    %v3046 = vpop.permute.xlu0 %3045
    %v3049 = vsel %vm427, %v2968, 0
    %3051 = vmatprep.subr.mxu0 0.0
    %3052 = vmatpush1.msra.mxu0 %v3046
    %3053 = vmatprep.subr.mxu0 0.0
    %3054 = vmatpush1.msra.mxu0 0.0
    %3055 = vmatprep.subr.mxu0 0.0
    %3056 = vmatpush1.msra.mxu0 0.0
    %3057 = vmatprep.subr.mxu0 0.0
    %3058 = vmatpush1.msra.mxu0 0.0
    %3059 = vmatprep.subr.mxu0 0.0
    %3060 = vmatpush1.msra.mxu0 0.0
    %3061 = vmatprep.subr.mxu0 0.0
    %3062 = vmatpush1.msra.mxu0 0.0
    %3063 = vmatprep.subr.mxu0 0.0
    %3064 = vmatpush1.msra.mxu0 0.0
    %3065 = vmatprep.subr.mxu0 0.0
    %3066 = vmatpush1.msra.mxu0 0.0
    %3067 = vmatprep.subr.mxu0 0.0
    %3068 = vmatpush1.msra.mxu0 0.0
    %3069 = vmatprep.subr.mxu0 0.0
    %3070 = vmatpush1.msra.mxu0 0.0
    %3071 = vmatprep.subr.mxu0 0.0
    %3072 = vmatpush1.msra.mxu0 0.0
    %3073 = vmatprep.subr.mxu0 0.0
    %3074 = vmatpush1.msra.mxu0 0.0
    %3075 = vmatprep.subr.mxu0 0.0
    %3076 = vmatpush1.msra.mxu0 0.0
    %3077 = vmatprep.subr.mxu0 0.0
    %3078 = vmatpush1.msra.mxu0 0.0
    %3079 = vmatprep.subr.mxu0 0.0
    %3080 = vmatpush1.msra.mxu0 0.0
    %3081 = vmatprep.subr.mxu0 0.0
    %3082 = vmatpush1.msra.mxu0 0.0
    %3083 = vmatprep.subr.mxu0 0.0
    %3084 = vmatpush1.msra.mxu0 0.0
    %3085 = vmatprep.subr.mxu0 0.0
    %3086 = vmatpush1.msra.mxu0 0.0
    %3087 = vmatprep.subr.mxu0 0.0
    %3088 = vmatpush1.msra.mxu0 0.0
    %3089 = vmatprep.subr.mxu0 0.0
    %3090 = vmatpush1.msra.mxu0 0.0
    %3091 = vmatprep.subr.mxu0 0.0
    %3092 = vmatpush1.msra.mxu0 0.0
    %3093 = vmatprep.subr.mxu0 0.0
    %3094 = vmatpush1.msra.mxu0 0.0
    %3095 = vmatprep.subr.mxu0 0.0
    %3096 = vmatpush1.msra.mxu0 0.0
    %3097 = vmatprep.subr.mxu0 0.0
    %3098 = vmatpush1.msra.mxu0 0.0
    %3099 = vmatprep.subr.mxu0 0.0
    %3100 = vmatpush1.msra.mxu0 0.0
    %3101 = vmatprep.subr.mxu0 0.0
    %3102 = vmatpush1.msra.mxu0 0.0
    %3103 = vmatprep.subr.mxu0 0.0
    %3104 = vmatpush1.msra.mxu0 0.0
    %3105 = vmatprep.subr.mxu0 0.0
    %3106 = vmatpush1.msra.mxu0 0.0
    %3107 = vmatprep.subr.mxu0 0.0
    %3108 = vmatpush1.msra.mxu0 0.0
    %3109 = vmatprep.subr.mxu0 0.0
    %3110 = vmatpush1.msra.mxu0 0.0
    %3111 = vmatprep.subr.mxu0 0.0
    %3112 = vmatpush1.msra.mxu0 0.0
    %3113 = vmatprep.subr.mxu0 0.0
    %3114 = vmatpush1.msra.mxu0 0.0
    %3115 = vmatprep.mubr.f32.mxu0 0.0
    %3116 = vmatmul.mubr.f32.gmra.mrb[0].mxu0 %v3049
    %v3117 = vpop.f32.mrb[0].mxu0
    %v3118 = vadd.f32 0.0, %v3117
    %v3119 = vpop.f32.mrb[0].mxu0
    %3120 = vdwg.mxu0
    %3121 = vrot.lane.b32.xlu0 %v2133, 80
    %v3122 = vpop.permute.xlu0 %3121
    %3123 = vrot.lane.b32.xlu0 %v2123, 16
    %v3124 = vpop.permute.xlu0 %3123
    %v3125 = vsel %vm273, %v3122, 0
    %v3127 = vsel %vm273, %v3124, 0
    %3129 = vmatprep.subr.mxu0 0.0
    %3130 = vmatpush1.xpose.msra.mxu0 %v3127
    %3131 = vmatprep.subr.mxu0 0.0
    %3132 = vmatpush1.xpose.msra.mxu0 0.0
    %3133 = vmatprep.subr.mxu0 0.0
    %3134 = vmatpush1.xpose.msra.mxu0 0.0
    %3135 = vmatprep.subr.mxu0 0.0
    %3136 = vmatpush1.xpose.msra.mxu0 0.0
    %3137 = vmatprep.subr.mxu0 0.0
    %3138 = vmatpush1.xpose.msra.mxu0 0.0
    %3139 = vmatprep.subr.mxu0 0.0
    %3140 = vmatpush1.xpose.msra.mxu0 0.0
    %3141 = vmatprep.subr.mxu0 0.0
    %3142 = vmatpush1.xpose.msra.mxu0 0.0
    %3143 = vmatprep.subr.mxu0 0.0
    %3144 = vmatpush1.xpose.msra.mxu0 0.0
    %3145 = vmatprep.subr.mxu0 0.0
    %3146 = vmatpush1.xpose.msra.mxu0 0.0
    %3147 = vmatprep.subr.mxu0 0.0
    %3148 = vmatpush1.xpose.msra.mxu0 0.0
    %3149 = vmatprep.subr.mxu0 0.0
    %3150 = vmatpush1.xpose.msra.mxu0 0.0
    %3151 = vmatprep.subr.mxu0 0.0
    %3152 = vmatpush1.xpose.msra.mxu0 0.0
    %3153 = vmatprep.subr.mxu0 0.0
    %3154 = vmatpush1.xpose.msra.mxu0 0.0
    %3155 = vmatprep.subr.mxu0 0.0
    %3156 = vmatpush1.xpose.msra.mxu0 0.0
    %3157 = vmatprep.subr.mxu0 0.0
    %3158 = vmatpush1.xpose.msra.mxu0 0.0
    %3159 = vmatprep.subr.mxu0 0.0
    %3160 = vmatpush1.xpose.msra.mxu0 0.0
    %3161 = vmatprep.subr.mxu0 0.0
    %3162 = vmatpush1.xpose.msra.mxu0 0.0
    %3163 = vmatprep.subr.mxu0 0.0
    %3164 = vmatpush1.xpose.msra.mxu0 0.0
    %3165 = vmatprep.subr.mxu0 0.0
    %3166 = vmatpush1.xpose.msra.mxu0 0.0
    %3167 = vmatprep.subr.mxu0 0.0
    %3168 = vmatpush1.xpose.msra.mxu0 0.0
    %3169 = vmatprep.subr.mxu0 0.0
    %3170 = vmatpush1.xpose.msra.mxu0 0.0
    %3171 = vmatprep.subr.mxu0 0.0
    %3172 = vmatpush1.xpose.msra.mxu0 0.0
    %3173 = vmatprep.subr.mxu0 0.0
    %3174 = vmatpush1.xpose.msra.mxu0 0.0
    %3175 = vmatprep.subr.mxu0 0.0
    %3176 = vmatpush1.xpose.msra.mxu0 0.0
    %3177 = vmatprep.subr.mxu0 0.0
    %3178 = vmatpush1.xpose.msra.mxu0 0.0
    %3179 = vmatprep.subr.mxu0 0.0
    %3180 = vmatpush1.xpose.msra.mxu0 0.0
    %3181 = vmatprep.subr.mxu0 0.0
    %3182 = vmatpush1.xpose.msra.mxu0 0.0
    %3183 = vmatprep.subr.mxu0 0.0
    %3184 = vmatpush1.xpose.msra.mxu0 0.0
    %3185 = vmatprep.subr.mxu0 0.0
    %3186 = vmatpush1.xpose.msra.mxu0 0.0
    %3187 = vmatprep.subr.mxu0 0.0
    %3188 = vmatpush1.xpose.msra.mxu0 0.0
    %3189 = vmatprep.subr.mxu0 0.0
    %3190 = vmatpush1.xpose.msra.mxu0 0.0
    %3191 = vmatprep.subr.mxu0 0.0
    %3192 = vmatpush1.xpose.msra.mxu0 0.0
    %3193 = vmatprep.mubr.f32.mxu0 0.0
    %3194 = vmatmul.mubr.f32.gmra.mrb[0].mxu0 %v3125
    %v3195 = vpop.f32.mrb[0].mxu0
    %v3196 = vadd.f32 %v263, %v3195
    %v3197 = vpop.f32.mrb[0].mxu0
    %3198 = vdwg.mxu0
    %3199 = vrot.lane.b32.xlu0 %v2134, 80
    %v3200 = vpop.permute.xlu0 %3199
    %3201 = vrot.lane.b32.xlu0 %v2129, 16
    %v3202 = vpop.permute.xlu0 %3201
    %v3203 = vsel %vm273, %v3200, 0
    %v3205 = vsel %vm273, %v3202, 0
    %3207 = vmatprep.subr.mxu0 0.0
    %3208 = vmatpush1.xpose.msra.mxu0 %v3205
    %3209 = vmatprep.subr.mxu0 0.0
    %3210 = vmatpush1.xpose.msra.mxu0 0.0
    %3211 = vmatprep.subr.mxu0 0.0
    %3212 = vmatpush1.xpose.msra.mxu0 0.0
    %3213 = vmatprep.subr.mxu0 0.0
    %3214 = vmatpush1.xpose.msra.mxu0 0.0
    %3215 = vmatprep.subr.mxu0 0.0
    %3216 = vmatpush1.xpose.msra.mxu0 0.0
    %3217 = vmatprep.subr.mxu0 0.0
    %3218 = vmatpush1.xpose.msra.mxu0 0.0
    %3219 = vmatprep.subr.mxu0 0.0
    %3220 = vmatpush1.xpose.msra.mxu0 0.0
    %3221 = vmatprep.subr.mxu0 0.0
    %3222 = vmatpush1.xpose.msra.mxu0 0.0
    %3223 = vmatprep.subr.mxu0 0.0
    %3224 = vmatpush1.xpose.msra.mxu0 0.0
    %3225 = vmatprep.subr.mxu0 0.0
    %3226 = vmatpush1.xpose.msra.mxu0 0.0
    %3227 = vmatprep.subr.mxu0 0.0
    %3228 = vmatpush1.xpose.msra.mxu0 0.0
    %3229 = vmatprep.subr.mxu0 0.0
    %3230 = vmatpush1.xpose.msra.mxu0 0.0
    %3231 = vmatprep.subr.mxu0 0.0
    %3232 = vmatpush1.xpose.msra.mxu0 0.0
    %3233 = vmatprep.subr.mxu0 0.0
    %3234 = vmatpush1.xpose.msra.mxu0 0.0
    %3235 = vmatprep.subr.mxu0 0.0
    %3236 = vmatpush1.xpose.msra.mxu0 0.0
    %3237 = vmatprep.subr.mxu0 0.0
    %3238 = vmatpush1.xpose.msra.mxu0 0.0
    %3239 = vmatprep.subr.mxu0 0.0
    %3240 = vmatpush1.xpose.msra.mxu0 0.0
    %3241 = vmatprep.subr.mxu0 0.0
    %3242 = vmatpush1.xpose.msra.mxu0 0.0
    %3243 = vmatprep.subr.mxu0 0.0
    %3244 = vmatpush1.xpose.msra.mxu0 0.0
    %3245 = vmatprep.subr.mxu0 0.0
    %3246 = vmatpush1.xpose.msra.mxu0 0.0
    %3247 = vmatprep.subr.mxu0 0.0
    %3248 = vmatpush1.xpose.msra.mxu0 0.0
    %3249 = vmatprep.subr.mxu0 0.0
    %3250 = vmatpush1.xpose.msra.mxu0 0.0
    %3251 = vmatprep.subr.mxu0 0.0
    %3252 = vmatpush1.xpose.msra.mxu0 0.0
    %3253 = vmatprep.subr.mxu0 0.0
    %3254 = vmatpush1.xpose.msra.mxu0 0.0
    %3255 = vmatprep.subr.mxu0 0.0
    %3256 = vmatpush1.xpose.msra.mxu0 0.0
    %3257 = vmatprep.subr.mxu0 0.0
    %3258 = vmatpush1.xpose.msra.mxu0 0.0
    %3259 = vmatprep.subr.mxu0 0.0
    %3260 = vmatpush1.xpose.msra.mxu0 0.0
    %3261 = vmatprep.subr.mxu0 0.0
    %3262 = vmatpush1.xpose.msra.mxu0 0.0
    %3263 = vmatprep.subr.mxu0 0.0
    %3264 = vmatpush1.xpose.msra.mxu0 0.0
    %3265 = vmatprep.subr.mxu0 0.0
    %3266 = vmatpush1.xpose.msra.mxu0 0.0
    %3267 = vmatprep.subr.mxu0 0.0
    %3268 = vmatpush1.xpose.msra.mxu0 0.0
    %3269 = vmatprep.subr.mxu0 0.0
    %3270 = vmatpush1.xpose.msra.mxu0 0.0
    %3271 = vmatprep.mubr.f32.mxu0 0.0
    %3272 = vmatmul.mubr.f32.gmra.mrb[0].mxu0 %v3203
    %v3273 = vpop.f32.mrb[0].mxu0
    %v3274 = vadd.f32 %v267, %v3273
    %v3275 = vpop.f32.mrb[0].mxu0
    %3276 = vdwg.mxu0
    %v3277 = vsel %vm427, %v3196, -inf
    %3278 = vmax.xlane.f32.xlu0 %v3277
    %v3279 = vpop.xlane.xlu0 %3278
    %v3280 = vsel %vm427, %v3274, -inf
    %3281 = vmax.xlane.f32.xlu0 %v3280
    %v3282 = vpop.xlane.xlu0 %3281
    %v3283 = vsub.f32 %v3196, %v3279
    %v3284 = vsub.f32 %v3274, %v3282
    %v3285 = vmul.f32 %v3283, 1.442695
    %v3286 = vpow.pop %v3285
    %v3287 = vmul.f32 %v3284, 1.442695
    %v3288 = vpow.pop %v3287
    %v3289 = vsel %vm427, %v3286, 0.0
    %3290 = vadd.xlane.f32.xlu0 %v3289
    %v3291 = vpop.xlane.xlu0 %3290
    %v3292 = vsel %vm427, %v3288, 0.0
    %3293 = vadd.xlane.f32.xlu0 %v3292
    %v3294 = vpop.xlane.xlu0 %3293
    %v3295 = vrcp.pop %v3291
    %v3296 = vrcp.pop %v3294
    %v3297 = vmul.f32 %v3286, %v3295
    %v3298 = vmul.f32 %v3288, %v3296
    %3299 = vrot.lane.b32.xlu0 %v2125, 80
    %v3300 = vpop.permute.xlu0 %3299
    %v3303 = vsel %vm427, %v3297, 0
    %3305 = vmatprep.subr.mxu0 0.0
    %3306 = vmatpush1.msra.mxu0 %v3300
    %3307 = vmatprep.subr.mxu0 0.0
    %3308 = vmatpush1.msra.mxu0 0.0
    %3309 = vmatprep.subr.mxu0 0.0
    %3310 = vmatpush1.msra.mxu0 0.0
    %3311 = vmatprep.subr.mxu0 0.0
    %3312 = vmatpush1.msra.mxu0 0.0
    %3313 = vmatprep.subr.mxu0 0.0
    %3314 = vmatpush1.msra.mxu0 0.0
    %3315 = vmatprep.subr.mxu0 0.0
    %3316 = vmatpush1.msra.mxu0 0.0
    %3317 = vmatprep.subr.mxu0 0.0
    %3318 = vmatpush1.msra.mxu0 0.0
    %3319 = vmatprep.subr.mxu0 0.0
    %3320 = vmatpush1.msra.mxu0 0.0
    %3321 = vmatprep.subr.mxu0 0.0
    %3322 = vmatpush1.msra.mxu0 0.0
    %3323 = vmatprep.subr.mxu0 0.0
    %3324 = vmatpush1.msra.mxu0 0.0
    %3325 = vmatprep.subr.mxu0 0.0
    %3326 = vmatpush1.msra.mxu0 0.0
    %3327 = vmatprep.subr.mxu0 0.0
    %3328 = vmatpush1.msra.mxu0 0.0
    %3329 = vmatprep.subr.mxu0 0.0
    %3330 = vmatpush1.msra.mxu0 0.0
    %3331 = vmatprep.subr.mxu0 0.0
    %3332 = vmatpush1.msra.mxu0 0.0
    %3333 = vmatprep.subr.mxu0 0.0
    %3334 = vmatpush1.msra.mxu0 0.0
    %3335 = vmatprep.subr.mxu0 0.0
    %3336 = vmatpush1.msra.mxu0 0.0
    %3337 = vmatprep.subr.mxu0 0.0
    %3338 = vmatpush1.msra.mxu0 0.0
    %3339 = vmatprep.subr.mxu0 0.0
    %3340 = vmatpush1.msra.mxu0 0.0
    %3341 = vmatprep.subr.mxu0 0.0
    %3342 = vmatpush1.msra.mxu0 0.0
    %3343 = vmatprep.subr.mxu0 0.0
    %3344 = vmatpush1.msra.mxu0 0.0
    %3345 = vmatprep.subr.mxu0 0.0
    %3346 = vmatpush1.msra.mxu0 0.0
    %3347 = vmatprep.subr.mxu0 0.0
    %3348 = vmatpush1.msra.mxu0 0.0
    %3349 = vmatprep.subr.mxu0 0.0
    %3350 = vmatpush1.msra.mxu0 0.0
    %3351 = vmatprep.subr.mxu0 0.0
    %3352 = vmatpush1.msra.mxu0 0.0
    %3353 = vmatprep.subr.mxu0 0.0
    %3354 = vmatpush1.msra.mxu0 0.0
    %3355 = vmatprep.subr.mxu0 0.0
    %3356 = vmatpush1.msra.mxu0 0.0
    %3357 = vmatprep.subr.mxu0 0.0
    %3358 = vmatpush1.msra.mxu0 0.0
    %3359 = vmatprep.subr.mxu0 0.0
    %3360 = vmatpush1.msra.mxu0 0.0
    %3361 = vmatprep.subr.mxu0 0.0
    %3362 = vmatpush1.msra.mxu0 0.0
    %3363 = vmatprep.subr.mxu0 0.0
    %3364 = vmatpush1.msra.mxu0 0.0
    %3365 = vmatprep.subr.mxu0 0.0
    %3366 = vmatpush1.msra.mxu0 0.0
    %3367 = vmatprep.subr.mxu0 0.0
    %3368 = vmatpush1.msra.mxu0 0.0
    %3369 = vmatprep.mubr.f32.mxu0 0.0
    %3370 = vmatmul.mubr.f32.gmra.mrb[0].mxu0 %v3303
    %v3371 = vpop.f32.mrb[0].mxu0
    %v3372 = vadd.f32 0.0, %v3371
    %v3373 = vpop.f32.mrb[0].mxu0
    %3374 = vdwg.mxu0
    %3375 = vrot.lane.b32.xlu0 %v2131, 80
    %v3376 = vpop.permute.xlu0 %3375
    %v3379 = vsel %vm427, %v3298, 0
    %3381 = vmatprep.subr.mxu0 0.0
    %3382 = vmatpush1.msra.mxu0 %v3376
    %3383 = vmatprep.subr.mxu0 0.0
    %3384 = vmatpush1.msra.mxu0 0.0
    %3385 = vmatprep.subr.mxu0 0.0
    %3386 = vmatpush1.msra.mxu0 0.0
    %3387 = vmatprep.subr.mxu0 0.0
    %3388 = vmatpush1.msra.mxu0 0.0
    %3389 = vmatprep.subr.mxu0 0.0
    %3390 = vmatpush1.msra.mxu0 0.0
    %3391 = vmatprep.subr.mxu0 0.0
    %3392 = vmatpush1.msra.mxu0 0.0
    %3393 = vmatprep.subr.mxu0 0.0
    %3394 = vmatpush1.msra.mxu0 0.0
    %3395 = vmatprep.subr.mxu0 0.0
    %3396 = vmatpush1.msra.mxu0 0.0
    %3397 = vmatprep.subr.mxu0 0.0
    %3398 = vmatpush1.msra.mxu0 0.0
    %3399 = vmatprep.subr.mxu0 0.0
    %3400 = vmatpush1.msra.mxu0 0.0
    %3401 = vmatprep.subr.mxu0 0.0
    %3402 = vmatpush1.msra.mxu0 0.0
    %3403 = vmatprep.subr.mxu0 0.0
    %3404 = vmatpush1.msra.mxu0 0.0
    %3405 = vmatprep.subr.mxu0 0.0
    %3406 = vmatpush1.msra.mxu0 0.0
    %3407 = vmatprep.subr.mxu0 0.0
    %3408 = vmatpush1.msra.mxu0 0.0
    %3409 = vmatprep.subr.mxu0 0.0
    %3410 = vmatpush1.msra.mxu0 0.0
    %3411 = vmatprep.subr.mxu0 0.0
    %3412 = vmatpush1.msra.mxu0 0.0
    %3413 = vmatprep.subr.mxu0 0.0
    %3414 = vmatpush1.msra.mxu0 0.0
    %3415 = vmatprep.subr.mxu0 0.0
    %3416 = vmatpush1.msra.mxu0 0.0
    %3417 = vmatprep.subr.mxu0 0.0
    %3418 = vmatpush1.msra.mxu0 0.0
    %3419 = vmatprep.subr.mxu0 0.0
    %3420 = vmatpush1.msra.mxu0 0.0
    %3421 = vmatprep.subr.mxu0 0.0
    %3422 = vmatpush1.msra.mxu0 0.0
    %3423 = vmatprep.subr.mxu0 0.0
    %3424 = vmatpush1.msra.mxu0 0.0
    %3425 = vmatprep.subr.mxu0 0.0
    %3426 = vmatpush1.msra.mxu0 0.0
    %3427 = vmatprep.subr.mxu0 0.0
    %3428 = vmatpush1.msra.mxu0 0.0
    %3429 = vmatprep.subr.mxu0 0.0
    %3430 = vmatpush1.msra.mxu0 0.0
    %3431 = vmatprep.subr.mxu0 0.0
    %3432 = vmatpush1.msra.mxu0 0.0
    %3433 = vmatprep.subr.mxu0 0.0
    %3434 = vmatpush1.msra.mxu0 0.0
    %3435 = vmatprep.subr.mxu0 0.0
    %3436 = vmatpush1.msra.mxu0 0.0
    %3437 = vmatprep.subr.mxu0 0.0
    %3438 = vmatpush1.msra.mxu0 0.0
    %3439 = vmatprep.subr.mxu0 0.0
    %3440 = vmatpush1.msra.mxu0 0.0
    %3441 = vmatprep.subr.mxu0 0.0
    %3442 = vmatpush1.msra.mxu0 0.0
    %3443 = vmatprep.subr.mxu0 0.0
    %3444 = vmatpush1.msra.mxu0 0.0
    %3445 = vmatprep.mubr.f32.mxu0 0.0
    %3446 = vmatmul.mubr.f32.gmra.mrb[0].mxu0 %v3379
    %v3447 = vpop.f32.mrb[0].mxu0
    %v3448 = vadd.f32 0.0, %v3447
    %v3449 = vpop.f32.mrb[0].mxu0
    %3450 = vdwg.mxu0
    %3453 = vrot.lane.b32.xlu0 %v2711, 16
    %v3454 = vpop.permute.xlu0 %3453
    %3455 = vrot.lane.b32.xlu0 %v2788, 16
    %v3456 = vpop.permute.xlu0 %3455
    %3461 = vrot.lane.b32.xlu0 %v3042, 32
    %v3462 = vpop.permute.xlu0 %3461
    %3463 = vrot.lane.b32.xlu0 %v3118, 32
    %v3464 = vpop.permute.xlu0 %3463
    %3469 = vrot.lane.b32.xlu0 %v3372, 48
    %v3470 = vpop.permute.xlu0 %3469
    %3471 = vrot.lane.b32.xlu0 %v3448, 48
    %v3472 = vpop.permute.xlu0 %3471
    %v3475 = vsel %vm273, %v2383, %v3454
    %v3476 = vsel %vm273, %v2456, %v3456
    %v3477 = vsel %vm1614, %v3475, %v3462
    %v3478 = vsel %vm1614, %v3476, %v3464
    %v3479 = vsel %vm1617, %v3477, %v3470
    %v3480 = vsel %vm1617, %v3478, %v3472
    %s3481 = scalar_lea.vmem %s6, 64
    %v3482 = vld [vmem:[%s3481] sm:$0xff]
    %v3483 = vld [vmem:[%s3481 + $0x8] sm:$0xff]
    %v3484 = vld [vmem:[%s3481 + $0x10] sm:$0xff]
    %v3485 = vld [vmem:[%s3481 + $0x18] sm:$0xff]
    %v3486 = vld [vmem:[%s3481 + $0x20] sm:$0xff]
    %v3487 = vld [vmem:[%s3481 + $0x28] sm:$0xff]
    %v3488 = vld [vmem:[%s3481 + $0x30] sm:$0xff]
    %v3489 = vld [vmem:[%s3481 + $0x38] sm:$0xff]
    %s3490 = scalar_lea.vmem %s7, 1
    %v3491 = vld [vmem:[%s3490] sm:$0x1]
    %v3493 = vlaneseq
    %v3494 = vshrl.u32 %v3493, 7
    %v3495 = vsub.s32 0, %v3494
    %v3496 = vrot.slane %v3491, %v3495
    %v3499 = vsel %vm77, %v3479, 0
    %v3502 = vsel %vm77, %v3480, 0
    %3504 = vmatprep.subr.mxu0 0.0
    %3505 = vmatpush1.msra.mxu0 %v3482
    %3506 = vmatprep.subr.mxu0 0.0
    %3507 = vmatpush1.msra.mxu0 %v3483
    %3508 = vmatprep.subr.mxu0 0.0
    %3509 = vmatpush1.msra.mxu0 %v3484
    %3510 = vmatprep.subr.mxu0 0.0
    %3511 = vmatpush1.msra.mxu0 %v3485
    %3512 = vmatprep.subr.mxu0 0.0
    %3513 = vmatpush1.msra.mxu0 %v3486
    %3514 = vmatprep.subr.mxu0 0.0
    %3515 = vmatpush1.msra.mxu0 %v3487
    %3516 = vmatprep.subr.mxu0 0.0
    %3517 = vmatpush1.msra.mxu0 %v3488
    %3518 = vmatprep.subr.mxu0 0.0
    %3519 = vmatpush1.msra.mxu0 %v3489
    %3520 = vmatprep.subr.mxu0 0.0
    %3521 = vmatpush1.msra.mxu0 0.0
    %3522 = vmatprep.subr.mxu0 0.0
    %3523 = vmatpush1.msra.mxu0 0.0
    %3524 = vmatprep.subr.mxu0 0.0
    %3525 = vmatpush1.msra.mxu0 0.0
    %3526 = vmatprep.subr.mxu0 0.0
    %3527 = vmatpush1.msra.mxu0 0.0
    %3528 = vmatprep.subr.mxu0 0.0
    %3529 = vmatpush1.msra.mxu0 0.0
    %3530 = vmatprep.subr.mxu0 0.0
    %3531 = vmatpush1.msra.mxu0 0.0
    %3532 = vmatprep.subr.mxu0 0.0
    %3533 = vmatpush1.msra.mxu0 0.0
    %3534 = vmatprep.subr.mxu0 0.0
    %3535 = vmatpush1.msra.mxu0 0.0
    %3536 = vmatprep.subr.mxu0 0.0
    %3537 = vmatpush1.msra.mxu0 0.0
    %3538 = vmatprep.subr.mxu0 0.0
    %3539 = vmatpush1.msra.mxu0 0.0
    %3540 = vmatprep.subr.mxu0 0.0
    %3541 = vmatpush1.msra.mxu0 0.0
    %3542 = vmatprep.subr.mxu0 0.0
    %3543 = vmatpush1.msra.mxu0 0.0
    %3544 = vmatprep.subr.mxu0 0.0
    %3545 = vmatpush1.msra.mxu0 0.0
    %3546 = vmatprep.subr.mxu0 0.0
    %3547 = vmatpush1.msra.mxu0 0.0
    %3548 = vmatprep.subr.mxu0 0.0
    %3549 = vmatpush1.msra.mxu0 0.0
    %3550 = vmatprep.subr.mxu0 0.0
    %3551 = vmatpush1.msra.mxu0 0.0
    %3552 = vmatprep.subr.mxu0 0.0
    %3553 = vmatpush1.msra.mxu0 0.0
    %3554 = vmatprep.subr.mxu0 0.0
    %3555 = vmatpush1.msra.mxu0 0.0
    %3556 = vmatprep.subr.mxu0 0.0
    %3557 = vmatpush1.msra.mxu0 0.0
    %3558 = vmatprep.subr.mxu0 0.0
    %3559 = vmatpush1.msra.mxu0 0.0
    %3560 = vmatprep.subr.mxu0 0.0
    %3561 = vmatpush1.msra.mxu0 0.0
    %3562 = vmatprep.subr.mxu0 0.0
    %3563 = vmatpush1.msra.mxu0 0.0
    %3564 = vmatprep.subr.mxu0 0.0
    %3565 = vmatpush1.msra.mxu0 0.0
    %3566 = vmatprep.subr.mxu0 0.0
    %3567 = vmatpush1.msra.mxu0 0.0
    %3568 = vmatprep.mubr.f32.mxu0 0.0
    %3569 = vmatmul.mubr.f32.gmra.mrb[0].mxu0 %v3499
    %v3570 = vpop.f32.mrb[0].mxu0
    %v3571 = vadd.f32 %v3496, %v3570
    %v3572 = vpop.f32.mrb[0].mxu0
    %3573 = vmatprep.mubr.f32.mxu0 0.0
    %3574 = vmatmul.mubr.f32.gmra.mrb[0].mxu0 %v3502
    %v3575 = vpop.f32.mrb[0].mxu0
    %v3576 = vadd.f32 %v3496, %v3575
    %v3577 = vpop.f32.mrb[0].mxu0
    %3578 = vdwg.mxu0
    %v3579 = vadd.f32 %v3571, %v2018
    %v3580 = vadd.f32 %v3576, %v2019
    %s3581 = scalar_lea.vmem %s8, 1
    %v3582 = vld [vmem:[%s3581] sm:$0x1]
    %s3583 = scalar_lea.vmem %s9, 1
    %v3584 = vld [vmem:[%s3583] sm:$0x1]
    %v3585 = vsel %vm77, %v3579, 0.0
    %3586 = vadd.xlane.f32.xlu0 %v3585
    %v3587 = vpop.xlane.xlu0 %3586
    %v3588 = vsel %vm77, %v3580, 0.0
    %3589 = vadd.xlane.f32.xlu0 %v3588
    %v3590 = vpop.xlane.xlu0 %3589
    %v3591 = vmul.f32 %v3587, %v84
    %v3592 = vmul.f32 %v3590, %v84
    %v3593 = vsub.f32 %v3579, %v3591
    %v3594 = vsub.f32 %v3580, %v3592
    %v3595 = vmul.f32 %v3593, %v3593
    %v3596 = vmul.f32 %v3594, %v3594
    %v3597 = vsel %vm77, %v3595, 0.0
    %3598 = vadd.xlane.f32.xlu0 %v3597
    %v3599 = vpop.xlane.xlu0 %3598
    %v3600 = vsel %vm77, %v3596, 0.0
    %3601 = vadd.xlane.f32.xlu0 %v3600
    %v3602 = vpop.xlane.xlu0 %3601
    %v3603 = vmul.f32 %v3599, %v84
    %v3604 = vmul.f32 %v3602, %v84
    %v3605 = vadd.f32 %v3603, 1e-07
    %v3606 = vadd.f32 %v3604, 1e-07
    %v3607 = vrsqrt.pop %v3605
    %v3608 = vrsqrt.pop %v3606
    %v3609 = vmul.f32 %v3593, %v3607
    %v3610 = vmul.f32 %v3594, %v3608
    %v3612 = vlaneseq
    %v3613 = vshrl.u32 %v3612, 7
    %v3614 = vsub.s32 0, %v3613
    %v3615 = vrot.slane %v3582, %v3614
    %v3617 = vmul.f32 %v3609, %v3615
    %v3618 = vmul.f32 %v3610, %v3615
    %v3620 = vlaneseq
    %v3621 = vshrl.u32 %v3620, 7
    %v3622 = vsub.s32 0, %v3621
    %v3623 = vrot.slane %v3584, %v3622
    %v3625 = vadd.f32 %v3617, %v3623
    %v3626 = vadd.f32 %v3618, %v3623
    %s3627 = scalar_lea.vmem [#allocation2], 64
    %v3628 = vld [vmem:[%s3627] sm:$0xff]
    %v3629 = vld [vmem:[%s3627 + $0x8] sm:$0xff]
    %v3630 = vld [vmem:[%s3627 + $0x10] sm:$0xff]
    %v3631 = vld [vmem:[%s3627 + $0x18] sm:$0xff]
    %v3632 = vld [vmem:[%s3627 + $0x20] sm:$0xff]
    %v3633 = vld [vmem:[%s3627 + $0x28] sm:$0xff]
    %v3634 = vld [vmem:[%s3627 + $0x30] sm:$0xff]
    %v3635 = vld [vmem:[%s3627 + $0x38] sm:$0xff]
    %s3636 = scalar_lea.vmem %s11, 1
    %v3637 = vld [vmem:[%s3636] sm:$0x1]
    %v3639 = vlaneseq
    %v3640 = vshrl.u32 %v3639, 7
    %v3641 = vsub.s32 0, %v3640
    %v3642 = vrot.slane %v3637, %v3641
    %v3645 = vsel %vm77, %v3625, 0
    %v3648 = vsel %vm77, %v3626, 0
    %3650 = vmatprep.subr.mxu0 0.0
    %3651 = vmatpush1.msra.mxu0 %v3628
    %3652 = vmatprep.subr.mxu0 0.0
    %3653 = vmatpush1.msra.mxu0 %v3629
    %3654 = vmatprep.subr.mxu0 0.0
    %3655 = vmatpush1.msra.mxu0 %v3630
    %3656 = vmatprep.subr.mxu0 0.0
    %3657 = vmatpush1.msra.mxu0 %v3631
    %3658 = vmatprep.subr.mxu0 0.0
    %3659 = vmatpush1.msra.mxu0 %v3632
    %3660 = vmatprep.subr.mxu0 0.0
    %3661 = vmatpush1.msra.mxu0 %v3633
    %3662 = vmatprep.subr.mxu0 0.0
    %3663 = vmatpush1.msra.mxu0 %v3634
    %3664 = vmatprep.subr.mxu0 0.0
    %3665 = vmatpush1.msra.mxu0 %v3635
    %3666 = vmatprep.subr.mxu0 0.0
    %3667 = vmatpush1.msra.mxu0 0.0
    %3668 = vmatprep.subr.mxu0 0.0
    %3669 = vmatpush1.msra.mxu0 0.0
    %3670 = vmatprep.subr.mxu0 0.0
    %3671 = vmatpush1.msra.mxu0 0.0
    %3672 = vmatprep.subr.mxu0 0.0
    %3673 = vmatpush1.msra.mxu0 0.0
    %3674 = vmatprep.subr.mxu0 0.0
    %3675 = vmatpush1.msra.mxu0 0.0
    %3676 = vmatprep.subr.mxu0 0.0
    %3677 = vmatpush1.msra.mxu0 0.0
    %3678 = vmatprep.subr.mxu0 0.0
    %3679 = vmatpush1.msra.mxu0 0.0
    %3680 = vmatprep.subr.mxu0 0.0
    %3681 = vmatpush1.msra.mxu0 0.0
    %3682 = vmatprep.subr.mxu0 0.0
    %3683 = vmatpush1.msra.mxu0 0.0
    %3684 = vmatprep.subr.mxu0 0.0
    %3685 = vmatpush1.msra.mxu0 0.0
    %3686 = vmatprep.subr.mxu0 0.0
    %3687 = vmatpush1.msra.mxu0 0.0
    %3688 = vmatprep.subr.mxu0 0.0
    %3689 = vmatpush1.msra.mxu0 0.0
    %3690 = vmatprep.subr.mxu0 0.0
    %3691 = vmatpush1.msra.mxu0 0.0
    %3692 = vmatprep.subr.mxu0 0.0
    %3693 = vmatpush1.msra.mxu0 0.0
    %3694 = vmatprep.subr.mxu0 0.0
    %3695 = vmatpush1.msra.mxu0 0.0
    %3696 = vmatprep.subr.mxu0 0.0
    %3697 = vmatpush1.msra.mxu0 0.0
    %3698 = vmatprep.subr.mxu0 0.0
    %3699 = vmatpush1.msra.mxu0 0.0
    %3700 = vmatprep.subr.mxu0 0.0
    %3701 = vmatpush1.msra.mxu0 0.0
    %3702 = vmatprep.subr.mxu0 0.0
    %3703 = vmatpush1.msra.mxu0 0.0
    %3704 = vmatprep.subr.mxu0 0.0
    %3705 = vmatpush1.msra.mxu0 0.0
    %3706 = vmatprep.subr.mxu0 0.0
    %3707 = vmatpush1.msra.mxu0 0.0
    %3708 = vmatprep.subr.mxu0 0.0
    %3709 = vmatpush1.msra.mxu0 0.0
    %3710 = vmatprep.subr.mxu0 0.0
    %3711 = vmatpush1.msra.mxu0 0.0
    %3712 = vmatprep.subr.mxu0 0.0
    %3713 = vmatpush1.msra.mxu0 0.0
    %3714 = vmatprep.mubr.f32.mxu0 0.0
    %3715 = vmatmul.mubr.f32.gmra.mrb[0].mxu0 %v3645
    %v3716 = vpop.f32.mrb[0].mxu0
    %v3717 = vadd.f32 %v3642, %v3716
    %v3718 = vpop.f32.mrb[0].mxu0
    %3719 = vmatprep.mubr.f32.mxu0 0.0
    %3720 = vmatmul.mubr.f32.gmra.mrb[0].mxu0 %v3648
    %v3721 = vpop.f32.mrb[0].mxu0
    %v3722 = vadd.f32 %v3642, %v3721
    %v3723 = vpop.f32.mrb[0].mxu0
    %3724 = vdwg.mxu0
    %v3725 = vmul.f32 %v3717, %v3717
    %v3726 = vmul.f32 %v3722, %v3722
    %v3727 = vmul.f32 %v3717, %v3725
    %v3728 = vmul.f32 %v3722, %v3726
    %v3729 = vmul.f32 %v3727, 0.044715
    %v3730 = vmul.f32 %v3728, 0.044715
    %v3731 = vadd.f32 %v3717, %v3729
    %v3732 = vadd.f32 %v3722, %v3730
    %v3733 = vmul.f32 %v3731, 0.7978846
    %v3734 = vmul.f32 %v3732, 0.7978846
    %v3735 = vtanh.pop %v3733
    %v3736 = vtanh.pop %v3734
    %v3737 = vadd.f32 %v3735, 1.0
    %v3738 = vadd.f32 %v3736, 1.0
    %v3739 = vmul.f32 %v3737, 0.5
    %v3740 = vmul.f32 %v3738, 0.5
    %v3741 = vmul.f32 %v3717, %v3739
    %v3742 = vmul.f32 %v3722, %v3740
    %s3743 = scalar_lea.vmem %s12, 128
    %v3744 = vld [vmem:[%s3743] sm:$0xff]
    %v3745 = vld [vmem:[%s3743 + $0x8] sm:$0xff]
    %v3746 = vld [vmem:[%s3743 + $0x10] sm:$0xff]
    %v3747 = vld [vmem:[%s3743 + $0x18] sm:$0xff]
    %v3748 = vld [vmem:[%s3743 + $0x20] sm:$0xff]
    %v3749 = vld [vmem:[%s3743 + $0x28] sm:$0xff]
    %v3750 = vld [vmem:[%s3743 + $0x30] sm:$0xff]
    %v3751 = vld [vmem:[%s3743 + $0x38] sm:$0xff]
    %v3752 = vld [vmem:[%s3743 + $0x40] sm:$0xff]
    %v3753 = vld [vmem:[%s3743 + $0x48] sm:$0xff]
    %v3754 = vld [vmem:[%s3743 + $0x50] sm:$0xff]
    %v3755 = vld [vmem:[%s3743 + $0x58] sm:$0xff]
    %v3756 = vld [vmem:[%s3743 + $0x60] sm:$0xff]
    %v3757 = vld [vmem:[%s3743 + $0x68] sm:$0xff]
    %v3758 = vld [vmem:[%s3743 + $0x70] sm:$0xff]
    %v3759 = vld [vmem:[%s3743 + $0x78] sm:$0xff]
    %s3760 = scalar_lea.vmem %s13, 1
    %v3761 = vld [vmem:[%s3760] sm:$0x1]
    %v3763 = vlaneseq
    %v3764 = vshrl.u32 %v3763, 7
    %v3765 = vsub.s32 0, %v3764
    %v3766 = vrot.slane %v3761, %v3765
    %3768 = vmatprep.subr.mxu0 0.0
    %3769 = vmatpush1.msra.mxu0 %v3744
    %3770 = vmatprep.subr.mxu0 0.0
    %3771 = vmatpush1.msra.mxu0 %v3745
    %3772 = vmatprep.subr.mxu0 0.0
    %3773 = vmatpush1.msra.mxu0 %v3746
    %3774 = vmatprep.subr.mxu0 0.0
    %3775 = vmatpush1.msra.mxu0 %v3747
    %3776 = vmatprep.subr.mxu0 0.0
    %3777 = vmatpush1.msra.mxu0 %v3748
    %3778 = vmatprep.subr.mxu0 0.0
    %3779 = vmatpush1.msra.mxu0 %v3749
    %3780 = vmatprep.subr.mxu0 0.0
    %3781 = vmatpush1.msra.mxu0 %v3750
    %3782 = vmatprep.subr.mxu0 0.0
    %3783 = vmatpush1.msra.mxu0 %v3751
    %3784 = vmatprep.subr.mxu0 0.0
    %3785 = vmatpush1.msra.mxu0 %v3752
    %3786 = vmatprep.subr.mxu0 0.0
    %3787 = vmatpush1.msra.mxu0 %v3753
    %3788 = vmatprep.subr.mxu0 0.0
    %3789 = vmatpush1.msra.mxu0 %v3754
    %3790 = vmatprep.subr.mxu0 0.0
    %3791 = vmatpush1.msra.mxu0 %v3755
    %3792 = vmatprep.subr.mxu0 0.0
    %3793 = vmatpush1.msra.mxu0 %v3756
    %3794 = vmatprep.subr.mxu0 0.0
    %3795 = vmatpush1.msra.mxu0 %v3757
    %3796 = vmatprep.subr.mxu0 0.0
    %3797 = vmatpush1.msra.mxu0 %v3758
    %3798 = vmatprep.subr.mxu0 0.0
    %3799 = vmatpush1.msra.mxu0 %v3759
    %3800 = vmatprep.subr.mxu0 0.0
    %3801 = vmatpush1.msra.mxu0 0.0
    %3802 = vmatprep.subr.mxu0 0.0
    %3803 = vmatpush1.msra.mxu0 0.0
    %3804 = vmatprep.subr.mxu0 0.0
    %3805 = vmatpush1.msra.mxu0 0.0
    %3806 = vmatprep.subr.mxu0 0.0
    %3807 = vmatpush1.msra.mxu0 0.0
    %3808 = vmatprep.subr.mxu0 0.0
    %3809 = vmatpush1.msra.mxu0 0.0
    %3810 = vmatprep.subr.mxu0 0.0
    %3811 = vmatpush1.msra.mxu0 0.0
    %3812 = vmatprep.subr.mxu0 0.0
    %3813 = vmatpush1.msra.mxu0 0.0
    %3814 = vmatprep.subr.mxu0 0.0
    %3815 = vmatpush1.msra.mxu0 0.0
    %3816 = vmatprep.subr.mxu0 0.0
    %3817 = vmatpush1.msra.mxu0 0.0
    %3818 = vmatprep.subr.mxu0 0.0
    %3819 = vmatpush1.msra.mxu0 0.0
    %3820 = vmatprep.subr.mxu0 0.0
    %3821 = vmatpush1.msra.mxu0 0.0
    %3822 = vmatprep.subr.mxu0 0.0
    %3823 = vmatpush1.msra.mxu0 0.0
    %3824 = vmatprep.subr.mxu0 0.0
    %3825 = vmatpush1.msra.mxu0 0.0
    %3826 = vmatprep.subr.mxu0 0.0
    %3827 = vmatpush1.msra.mxu0 0.0
    %3828 = vmatprep.subr.mxu0 0.0
    %3829 = vmatpush1.msra.mxu0 0.0
    %3830 = vmatprep.subr.mxu0 0.0
    %3831 = vmatpush1.msra.mxu0 0.0
    %3832 = vmatprep.mubr.f32.mxu0 0.0
    %3833 = vmatmul.mubr.f32.gmra.mrb[0].mxu0 %v3741
    %v3834 = vpop.f32.mrb[0].mxu0
    %v3835 = vadd.f32 %v3766, %v3834
    %v3836 = vpop.f32.mrb[0].mxu0
    %3837 = vmatprep.mubr.f32.mxu0 0.0
    %3838 = vmatmul.mubr.f32.gmra.mrb[0].mxu0 %v3742
    %v3839 = vpop.f32.mrb[0].mxu0
    %v3840 = vadd.f32 %v3766, %v3839
    %v3841 = vpop.f32.mrb[0].mxu0
    %3842 = vdwg.mxu0
    %v3843 = vadd.f32 %v3835, %v3625
    %v3844 = vadd.f32 %v3840, %v3626
    %s3845 = scalar_lea.vmem %s14, 1
    %v3846 = vld [vmem:[%s3845] sm:$0x1]
    %s3847 = scalar_lea.vmem %s15, 1
    %v3848 = vld [vmem:[%s3847] sm:$0x1]
    %v3849 = vsel %vm77, %v3843, 0.0
    %3850 = vadd.xlane.f32.xlu0 %v3849
    %v3851 = vpop.xlane.xlu0 %3850
    %v3852 = vsel %vm77, %v3844, 0.0
    %3853 = vadd.xlane.f32.xlu0 %v3852
    %v3854 = vpop.xlane.xlu0 %3853
    %v3855 = vmul.f32 %v3851, %v84
    %v3856 = vmul.f32 %v3854, %v84
    %v3857 = vsub.f32 %v3843, %v3855
    %v3858 = vsub.f32 %v3844, %v3856
    %v3859 = vmul.f32 %v3857, %v3857
    %v3860 = vmul.f32 %v3858, %v3858
    %v3861 = vsel %vm77, %v3859, 0.0
    %3862 = vadd.xlane.f32.xlu0 %v3861
    %v3863 = vpop.xlane.xlu0 %3862
    %v3864 = vsel %vm77, %v3860, 0.0
    %3865 = vadd.xlane.f32.xlu0 %v3864
    %v3866 = vpop.xlane.xlu0 %3865
    %v3867 = vmul.f32 %v3863, %v84
    %v3868 = vmul.f32 %v3866, %v84
    %v3869 = vadd.f32 %v3867, 1e-07
    %v3870 = vadd.f32 %v3868, 1e-07
    %v3871 = vrsqrt.pop %v3869
    %v3872 = vrsqrt.pop %v3870
    %v3873 = vmul.f32 %v3857, %v3871
    %v3874 = vmul.f32 %v3858, %v3872
    %v3876 = vlaneseq
    %v3877 = vshrl.u32 %v3876, 7
    %v3878 = vsub.s32 0, %v3877
    %v3879 = vrot.slane %v3846, %v3878
    %v3881 = vmul.f32 %v3873, %v3879
    %v3882 = vmul.f32 %v3874, %v3879
    %v3884 = vlaneseq
    %v3885 = vshrl.u32 %v3884, 7
    %v3886 = vsub.s32 0, %v3885
    %v3887 = vrot.slane %v3848, %v3886
    %v3889 = vadd.f32 %v3881, %v3887
    %v3890 = vadd.f32 %v3882, %v3887
    %v3891 = vld [vmem:[%s16] sm:$0xff]
    %v3892 = vld [vmem:[%s16 + $0x8] sm:$0xff]
    %v3893 = vld [vmem:[%s16 + $0x10] sm:$0xff]
    %v3894 = vld [vmem:[%s16 + $0x18] sm:$0xff]
    %v3895 = vld [vmem:[%s16 + $0x20] sm:$0xff]
    %v3896 = vld [vmem:[%s16 + $0x28] sm:$0xff]
    %v3897 = vld [vmem:[%s16 + $0x30] sm:$0xff]
    %v3898 = vld [vmem:[%s16 + $0x38] sm:$0xff]
    %v3899 = vld [vmem:[%s17] sm:$0x1]
    %v3901 = vlaneseq
    %v3902 = vshrl.u32 %v3901, 7
    %v3903 = vsub.s32 0, %v3902
    %v3904 = vrot.slane %v3899, %v3903
    %v3907 = vsel %vm77, %v3889, 0
    %v3910 = vsel %vm77, %v3890, 0
    %3912 = vmatprep.subr.mxu0 0.0
    %3913 = vmatpush1.msra.mxu0 %v3891
    %3914 = vmatprep.subr.mxu0 0.0
    %3915 = vmatpush1.msra.mxu0 %v3892
    %3916 = vmatprep.subr.mxu0 0.0
    %3917 = vmatpush1.msra.mxu0 %v3893
    %3918 = vmatprep.subr.mxu0 0.0
    %3919 = vmatpush1.msra.mxu0 %v3894
    %3920 = vmatprep.subr.mxu0 0.0
    %3921 = vmatpush1.msra.mxu0 %v3895
    %3922 = vmatprep.subr.mxu0 0.0
    %3923 = vmatpush1.msra.mxu0 %v3896
    %3924 = vmatprep.subr.mxu0 0.0
    %3925 = vmatpush1.msra.mxu0 %v3897
    %3926 = vmatprep.subr.mxu0 0.0
    %3927 = vmatpush1.msra.mxu0 %v3898
    %3928 = vmatprep.subr.mxu0 0.0
    %3929 = vmatpush1.msra.mxu0 0.0
    %3930 = vmatprep.subr.mxu0 0.0
    %3931 = vmatpush1.msra.mxu0 0.0
    %3932 = vmatprep.subr.mxu0 0.0
    %3933 = vmatpush1.msra.mxu0 0.0
    %3934 = vmatprep.subr.mxu0 0.0
    %3935 = vmatpush1.msra.mxu0 0.0
    %3936 = vmatprep.subr.mxu0 0.0
    %3937 = vmatpush1.msra.mxu0 0.0
    %3938 = vmatprep.subr.mxu0 0.0
    %3939 = vmatpush1.msra.mxu0 0.0
    %3940 = vmatprep.subr.mxu0 0.0
    %3941 = vmatpush1.msra.mxu0 0.0
    %3942 = vmatprep.subr.mxu0 0.0
    %3943 = vmatpush1.msra.mxu0 0.0
    %3944 = vmatprep.subr.mxu0 0.0
    %3945 = vmatpush1.msra.mxu0 0.0
    %3946 = vmatprep.subr.mxu0 0.0
    %3947 = vmatpush1.msra.mxu0 0.0
    %3948 = vmatprep.subr.mxu0 0.0
    %3949 = vmatpush1.msra.mxu0 0.0
    %3950 = vmatprep.subr.mxu0 0.0
    %3951 = vmatpush1.msra.mxu0 0.0
    %3952 = vmatprep.subr.mxu0 0.0
    %3953 = vmatpush1.msra.mxu0 0.0
    %3954 = vmatprep.subr.mxu0 0.0
    %3955 = vmatpush1.msra.mxu0 0.0
    %3956 = vmatprep.subr.mxu0 0.0
    %3957 = vmatpush1.msra.mxu0 0.0
    %3958 = vmatprep.subr.mxu0 0.0
    %3959 = vmatpush1.msra.mxu0 0.0
    %3960 = vmatprep.subr.mxu0 0.0
    %3961 = vmatpush1.msra.mxu0 0.0
    %3962 = vmatprep.subr.mxu0 0.0
    %3963 = vmatpush1.msra.mxu0 0.0
    %3964 = vmatprep.subr.mxu0 0.0
    %3965 = vmatpush1.msra.mxu0 0.0
    %3966 = vmatprep.subr.mxu0 0.0
    %3967 = vmatpush1.msra.mxu0 0.0
    %3968 = vmatprep.subr.mxu0 0.0
    %3969 = vmatpush1.msra.mxu0 0.0
    %3970 = vmatprep.subr.mxu0 0.0
    %3971 = vmatpush1.msra.mxu0 0.0
    %3972 = vmatprep.subr.mxu0 0.0
    %3973 = vmatpush1.msra.mxu0 0.0
    %3974 = vmatprep.subr.mxu0 0.0
    %3975 = vmatpush1.msra.mxu0 0.0
    %3976 = vmatprep.mubr.f32.mxu0 0.0
    %3977 = vmatmul.mubr.f32.gmra.mrb[0].mxu0 %v3907
    %v3978 = vpop.f32.mrb[0].mxu0
    %v3979 = vadd.f32 %v3904, %v3978
    %v3980 = vpop.f32.mrb[0].mxu0
    %3981 = vmatprep.mubr.f32.mxu0 0.0
    %3982 = vmatmul.mubr.f32.gmra.mrb[0].mxu0 %v3910
    %v3983 = vpop.f32.mrb[0].mxu0
    %v3984 = vadd.f32 %v3904, %v3983
    %v3985 = vpop.f32.mrb[0].mxu0
    %3986 = vdwg.mxu0
    %3987 = vst [vmem:[%s18] sm:$0xff] %v3979
    %3988 = vst [vmem:[%s18 + $0x8] sm:$0xff] %v3984
    // Predicated region
    $region78: #{aspect_extraction_forward.1} parent=1 // pred_check
      _
    $region79: #{aspect_extraction_forward.1} parent=1 // pred_check_branch
      %3990 = sbr.rel (0) target = $region81
    $region80: #{aspect_extraction_forward.1} parent=1 // pred_region
      _
    $region81: #{aspect_extraction_forward.1} parent=1 // pred_fallthru
      _
    // Predicated region
    $region82: #{aspect_extraction_forward.1} parent=1 // pred_check
      _
    $region83: #{aspect_extraction_forward.1} parent=1 // pred_check_branch
      %3992 = sbr.rel (0) target = $region85
    $region84: #{aspect_extraction_forward.1} parent=1 // pred_region
      _
    $region85: #{aspect_extraction_forward.1} parent=1 // pred_fallthru
      _
    %3993 = vsyncpa [#allocation3], 1

</llo_original>
